<compile_context>
chip_gen: v7x
topology: tpu7x:2x2x1
jax: 0.10.0
libtpu: 0.0.40
codegen_flags: <defaults>
</compile_context>

<pallas_src>
import jax
import jax.numpy as jnp
from jax import lax
from jax.experimental import pallas as pl
from jax.experimental.pallas import tpu as pltpu


# ----------------------------- config (small, synthetic) -----------------------------
VOCAB = 50
EMBED = 32            # config.embed
SEQ = 16              # sequence length
BATCH = 2
NUM_FILTERS = 8       # config.num_filters
FILTER_SIZES = (2, 3, 4)   # config.filter_sizes
NUM_CLASSES = 4       # config.num_classes

# ------------------------------ derived / padded sizes -------------------------------
KMAX = max(FILTER_SIZES)
T_MAX = SEQ - min(FILTER_SIZES) + 1        # 15: superset of valid time positions
S_PAD = T_MAX + KMAX - 1                   # 18: seq padded so every k_max-window is in range
VOCAB_PAD = 128                            # lane-dense one-hot width
F_LANES = 128                              # lane-dense packed feature / class width
B_PAD = 8                                  # sublane-dense batch
B_BLK = 8                                  # batch tile (grid axis -> "parallel")


def _textcnn_kernel(tok_ref, table_ref, w_ref, b_ref, tlim_ref,
                    fcw_ref, fcb_ref, out_ref):
    # --- embedding lookup fused as one-hot @ table (MXU) ---------------------------
    tok = tok_ref[...]                                                  # (B, S_PAD) i32
    vocab_iota = lax.broadcasted_iota(jnp.int32, (B_BLK, S_PAD, VOCAB_PAD), 2)
    one_hot = jnp.where(tok[:, :, None] == vocab_iota, 1.0, 0.0).astype(jnp.bfloat16)
    emb = lax.dot_general(                                              # (B, S_PAD, E) f32
        one_hot, table_ref[...],
        dimension_numbers=(((2,), (0,)), ((), ())),
        preferred_element_type=jnp.float32)
    # padded token positions use id -1 -> all-zero one-hot -> exact zero rows.

    # --- im2col windows: (B, T_MAX, KMAX*E) with contraction dim exactly 128 -------
    windows = jnp.concatenate(
        [emb[:, j:j + T_MAX, :] for j in range(KMAX)], axis=-1
    ).astype(jnp.bfloat16)                                              # (B, T_MAX, 128)

    # --- all filter banks in one lane-dense matmul ----------------------------------
    acc = lax.dot_general(                                              # (B, T_MAX, 128) f32
        windows, w_ref[...],
        dimension_numbers=(((2,), (0,)), ((), ())),
        preferred_element_type=jnp.float32)
    conv = jnp.maximum(acc + b_ref[...], 0.0)                           # bias + ReLU (f32)

    # mask time positions that are out of range for the longer filters (ReLU >= 0,
    # so masking to 0 cannot change the max over valid positions).
    t_idx = lax.broadcasted_iota(jnp.int32, (T_MAX, F_LANES), 0)
    mask = jnp.where(t_idx < tlim_ref[...], 1.0, 0.0)                   # (T_MAX, 128) f32
    conv = conv * mask

    pooled = jnp.max(conv, axis=1)                                      # (B, 128) f32

    # --- fused fully-connected (dropout = identity in eval mode) --------------------
    logits = jnp.dot(pooled.astype(jnp.bfloat16), fcw_ref[...],
                     preferred_element_type=jnp.float32) + fcb_ref[...]
    out_ref[...] = logits.astype(out_ref.dtype)                         # (B, 128) f32


def pack_params(params):
    """Pack PyTorch-layout params into lane-dense, bf16 kernel operands."""
    f32 = jnp.float32
    table = jnp.zeros((VOCAB_PAD, EMBED), f32).at[:VOCAB].set(params["emb_table"])

    W = jnp.zeros((KMAX * EMBED, F_LANES), f32)
    bias = jnp.zeros((1, F_LANES), f32)
    tlim = jnp.zeros((1, F_LANES), jnp.int32)
    for i, k in enumerate(FILTER_SIZES):
        lo, hi = i * NUM_FILTERS, (i + 1) * NUM_FILTERS
        w2d = params[f"conv_w_{k}"].reshape(k * EMBED, NUM_FILTERS)     # (k*E, F)
        W = W.at[:k * EMBED, lo:hi].set(w2d)
        bias = bias.at[0, lo:hi].set(params[f"conv_b_{k}"][0])
        tlim = tlim.at[0, lo:hi].set(SEQ - k + 1)

    nfeat = NUM_FILTERS * len(FILTER_SIZES)
    fcw = jnp.zeros((F_LANES, F_LANES), f32).at[:nfeat, :NUM_CLASSES].set(params["fc_w"])
    fcb = jnp.zeros((1, F_LANES), f32).at[0, :NUM_CLASSES].set(params["fc_b"][0])

    return {
        "table": table.astype(jnp.bfloat16),
        "W": W.astype(jnp.bfloat16),
        "bias": bias,
        "tlim": tlim,
        "fcw": fcw.astype(jnp.bfloat16),
        "fcb": fcb,
    }


def textcnn_forward(token_ids, packed):
    """token_ids: (B, S) int32. Returns (B, NUM_CLASSES) float32 logits."""
    B = token_ids.shape[0]
    # pad batch to 8 sublanes and seq so every k_max window is in range; padded
    # positions get id -1 (never matches the one-hot iota -> zero embedding rows).
    tok_pad = jnp.full((B_PAD, S_PAD), -1, jnp.int32)
    tok_pad = tok_pad.at[:B, :SEQ].set(token_ids.astype(jnp.int32))

    flops = 2 * B_PAD * (S_PAD * VOCAB_PAD * EMBED
                         + T_MAX * (KMAX * EMBED) * F_LANES
                         + F_LANES * F_LANES)
    bytes_accessed = (tok_pad.size * 4
                      + packed["table"].size * 2 + packed["W"].size * 2
                      + packed["fcw"].size * 2
                      + (packed["bias"].size + packed["tlim"].size
                         + packed["fcb"].size) * 4
                      + B_PAD * F_LANES * 4)

    out = pl.pallas_call(
        _textcnn_kernel,
        out_shape=jax.ShapeDtypeStruct((B_PAD, F_LANES), jnp.float32),
        grid=(B_PAD // B_BLK,),
        in_specs=[
            pl.BlockSpec((B_BLK, S_PAD), lambda i: (i, 0)),             # tokens
            pl.BlockSpec((VOCAB_PAD, EMBED), lambda i: (0, 0)),         # emb table (bf16)
            pl.BlockSpec((KMAX * EMBED, F_LANES), lambda i: (0, 0)),    # packed conv W
            pl.BlockSpec((1, F_LANES), lambda i: (0, 0)),               # packed conv bias
            pl.BlockSpec((1, F_LANES), lambda i: (0, 0)),               # per-lane time limit
            pl.BlockSpec((F_LANES, F_LANES), lambda i: (0, 0)),         # packed fc W
            pl.BlockSpec((1, F_LANES), lambda i: (0, 0)),               # packed fc bias
        ],
        out_specs=pl.BlockSpec((B_BLK, F_LANES), lambda i: (i, 0)),
        compiler_params=pltpu.CompilerParams(
            dimension_semantics=("parallel",)),
        cost_estimate=pl.CostEstimate(flops=flops, transcendentals=0,
                                      bytes_accessed=bytes_accessed),
    )(tok_pad, packed["table"], packed["W"], packed["bias"], packed["tlim"],
      packed["fcw"], packed["fcb"])

    return out[:B, :NUM_CLASSES]


def make_params(key):
    keys = jax.random.split(key, 3 + 2 * len(FILTER_SIZES))
    params = {}
    # pretrained embedding table (synthetic, deterministic stand-in for the pickle)
    params["emb_table"] = jax.random.normal(keys[0], (VOCAB, EMBED), jnp.float32) * 0.1
    for i, k in enumerate(FILTER_SIZES):
        wkey, bkey = keys[1 + 2 * i], keys[2 + 2 * i]
        # PyTorch Conv2d weight (F, 1, k, E) -> stored as (k, E, F)
        params[f"conv_w_{k}"] = (
            jax.random.normal(wkey, (k, EMBED, NUM_FILTERS), jnp.float32) * 0.1)
        params[f"conv_b_{k}"] = (
            jax.random.normal(bkey, (1, NUM_FILTERS), jnp.float32) * 0.01)
    fkey, fbkey = keys[-2], keys[-1]
    total_f = NUM_FILTERS * len(FILTER_SIZES)
    params["fc_w"] = jax.random.normal(fkey, (total_f, NUM_CLASSES), jnp.float32) * 0.1
    params["fc_b"] = jax.random.normal(fbkey, (1, NUM_CLASSES), jnp.float32) * 0.01
    return params


def _reference(token_ids, params):
    """Pure-JAX f32 reference mirroring the PyTorch forward."""
    emb = jnp.take(params["emb_table"], token_ids, axis=0).astype(jnp.float32)
    pooled = []
    for k in FILTER_SIZES:
        w = params[f"conv_w_{k}"]
        b = params[f"conv_b_{k}"]
        T = SEQ - k + 1
        acc = jnp.zeros((token_ids.shape[0], T, NUM_FILTERS), jnp.float32)
        for j in range(k):
            acc = acc + jnp.einsum("bte,ef->btf", emb[:, j:j + T, :], w[j])
        conv = jnp.maximum(acc + b, 0.0)
        pooled.append(jnp.max(conv, axis=1))
    feat = jnp.concatenate(pooled, axis=-1)
    return feat @ params["fc_w"] + params["fc_b"]


if __name__ == "__main__":
    key = jax.random.PRNGKey(0)
    pkey, dkey = jax.random.split(key)
    params = make_params(pkey)
    # forward(x) takes x[0] as the token-id tensor; we model that directly.
    token_ids = jax.random.randint(dkey, (BATCH, SEQ), 0, VOCAB, dtype=jnp.int32)

    packed = pack_params(params)
    out = textcnn_forward(token_ids, packed)
    out = jax.block_until_ready(out)
    assert out.shape == (BATCH, NUM_CLASSES), out.shape

    ref = _reference(token_ids, params)
    # bf16 matmul operands (f32 accumulate) vs. pure-f32 reference -> loose tolerance.
    assert jnp.allclose(out, ref, atol=2e-2, rtol=2e-2), (out, ref)

    print("KERNEL_OK")
</pallas_src>

<mosaic_0001>
module attributes {stable_mosaic.version = 11 : i64} {
  func.func @_textcnn_kernel(%arg0: i32, %arg1: memref<8x18xi32, #tpu.memory_space<vmem>>, %arg2: memref<128x32xbf16, #tpu.memory_space<vmem>>, %arg3: memref<128x128xbf16, #tpu.memory_space<vmem>>, %arg4: memref<1x128xf32, #tpu.memory_space<vmem>>, %arg5: memref<1x128xi32, #tpu.memory_space<vmem>>, %arg6: memref<128x128xbf16, #tpu.memory_space<vmem>>, %arg7: memref<1x128xf32, #tpu.memory_space<vmem>>, %arg8: memref<8x128xf32, #tpu.memory_space<vmem>>) attributes {dimension_semantics = [#tpu.dimension_semantics<parallel>], iteration_bounds = array<i64: 1>, scalar_prefetch = 0 : i64, scratch_operands = 0 : i64, tpu.core_type = #tpu.core_type<tc>, window_params = [{transform_indices = @transform_0, window_bounds = array<i64: 8, 18>}, {pipeline_mode = #tpu.pipeline_mode<synchronous>, transform_indices = @transform_1, window_bounds = array<i64: 128, 32>}, {pipeline_mode = #tpu.pipeline_mode<synchronous>, transform_indices = @transform_2, window_bounds = array<i64: 128, 128>}, {pipeline_mode = #tpu.pipeline_mode<synchronous>, transform_indices = @transform_3, window_bounds = array<i64: 1, 128>}, {pipeline_mode = #tpu.pipeline_mode<synchronous>, transform_indices = @transform_4, window_bounds = array<i64: 1, 128>}, {pipeline_mode = #tpu.pipeline_mode<synchronous>, transform_indices = @transform_5, window_bounds = array<i64: 128, 128>}, {pipeline_mode = #tpu.pipeline_mode<synchronous>, transform_indices = @transform_6, window_bounds = array<i64: 1, 128>}, {transform_indices = @transform_7, window_bounds = array<i64: 8, 128>}]} {
    %c0 = arith.constant 0 : index
    %c0_0 = arith.constant 0 : index
    %0 = vector.load %arg1[%c0, %c0_0] : memref<8x18xi32, #tpu.memory_space<vmem>>, vector<8x18xi32>
    %1 = tpu.iota {dimensions = array<i32: 2>} : vector<8x18x128xi32>
    %2 = vector.shape_cast %0 : vector<8x18xi32> to vector<8x18x1xi32>
    %3 = vector.broadcast %2 : vector<8x18x1xi32> to vector<8x18x128xi32>
    %4 = arith.cmpi eq, %3, %1 : vector<8x18x128xi32>
    %cst = arith.constant 1.000000e+00 : f32
    %cst_1 = arith.constant 0.000000e+00 : f32
    %5 = vector.broadcast %cst : f32 to vector<8x18x128xf32>
    %6 = vector.broadcast %cst_1 : f32 to vector<8x18x128xf32>
    %7 = arith.select %4, %5, %6 : vector<8x18x128xi1>, vector<8x18x128xf32>
    %8 = arith.truncf %7 : vector<8x18x128xf32> to vector<8x18x128xbf16>
    %c0_2 = arith.constant 0 : index
    %c0_3 = arith.constant 0 : index
    %9 = vector.load %arg2[%c0_2, %c0_3] : memref<128x32xbf16, #tpu.memory_space<vmem>>, vector<128x32xbf16>
    %cst_4 = arith.constant dense<0.000000e+00> : vector<8x18x32xf32>
    %10 = tpu.matmul %8, %9, %cst_4 {dimension_numbers = #tpu.dot_dimension_numbers<[2], [0], [0, 1], [1], [0, 0, 0, 1, 1, 1], [], []>} : vector<8x18x128xbf16>, vector<128x32xbf16>, vector<8x18x32xf32> -> vector<8x18x32xf32>
    %11 = vector.extract_strided_slice %10 {offsets = [0, 0, 0], sizes = [8, 15, 32], strides = [1, 1, 1]} : vector<8x18x32xf32> to vector<8x15x32xf32>
    %12 = vector.extract_strided_slice %10 {offsets = [0, 1, 0], sizes = [8, 15, 32], strides = [1, 1, 1]} : vector<8x18x32xf32> to vector<8x15x32xf32>
    %13 = vector.extract_strided_slice %10 {offsets = [0, 2, 0], sizes = [8, 15, 32], strides = [1, 1, 1]} : vector<8x18x32xf32> to vector<8x15x32xf32>
    %14 = vector.extract_strided_slice %10 {offsets = [0, 3, 0], sizes = [8, 15, 32], strides = [1, 1, 1]} : vector<8x18x32xf32> to vector<8x15x32xf32>
    %15 = tpu.concatenate %11, %12, %13, %14 in 2 : vector<8x15x32xf32>, vector<8x15x32xf32>, vector<8x15x32xf32>, vector<8x15x32xf32> -> vector<8x15x128xf32>
    %16 = arith.truncf %15 : vector<8x15x128xf32> to vector<8x15x128xbf16>
    %c0_5 = arith.constant 0 : index
    %c0_6 = arith.constant 0 : index
    %17 = vector.load %arg3[%c0_5, %c0_6] : memref<128x128xbf16, #tpu.memory_space<vmem>>, vector<128x128xbf16>
    %cst_7 = arith.constant dense<0.000000e+00> : vector<8x15x128xf32>
    %18 = tpu.matmul %16, %17, %cst_7 {dimension_numbers = #tpu.dot_dimension_numbers<[2], [0], [0, 1], [1], [0, 0, 0, 1, 1, 1], [], []>} : vector<8x15x128xbf16>, vector<128x128xbf16>, vector<8x15x128xf32> -> vector<8x15x128xf32>
    %c0_8 = arith.constant 0 : index
    %c0_9 = arith.constant 0 : index
    %19 = vector.load %arg4[%c0_8, %c0_9] : memref<1x128xf32, #tpu.memory_space<vmem>>, vector<1x128xf32>
    %20 = vector.shape_cast %19 : vector<1x128xf32> to vector<1x1x128xf32>
    %21 = vector.broadcast %20 : vector<1x1x128xf32> to vector<8x15x128xf32>
    %22 = arith.addf %18, %21 : vector<8x15x128xf32>
    %cst_10 = arith.constant 0.000000e+00 : f32
    %23 = vector.broadcast %cst_10 : f32 to vector<8x15x128xf32>
    %24 = arith.maximumf %22, %23 : vector<8x15x128xf32>
    %25 = tpu.iota {dimensions = array<i32: 0>} : vector<15x128xi32>
    %c0_11 = arith.constant 0 : index
    %c0_12 = arith.constant 0 : index
    %26 = vector.load %arg5[%c0_11, %c0_12] : memref<1x128xi32, #tpu.memory_space<vmem>>, vector<1x128xi32>
    %27 = vector.broadcast %26 : vector<1x128xi32> to vector<15x128xi32>
    %28 = arith.cmpi slt, %25, %27 : vector<15x128xi32>
    %cst_13 = arith.constant 1.000000e+00 : f32
    %cst_14 = arith.constant 0.000000e+00 : f32
    %29 = vector.broadcast %cst_13 : f32 to vector<15x128xf32>
    %30 = vector.broadcast %cst_14 : f32 to vector<15x128xf32>
    %31 = arith.select %28, %29, %30 : vector<15x128xi1>, vector<15x128xf32>
    %32 = vector.shape_cast %31 : vector<15x128xf32> to vector<1x15x128xf32>
    %33 = vector.broadcast %32 : vector<1x15x128xf32> to vector<8x15x128xf32>
    %34 = arith.mulf %24, %33 : vector<8x15x128xf32>
    %cst_15 = arith.constant dense<0xFF800000> : vector<8x128xf32>
    %35 = vector.multi_reduction <maximumf>, %34, %cst_15 [1] : vector<8x15x128xf32> to vector<8x128xf32>
    %36 = arith.truncf %35 : vector<8x128xf32> to vector<8x128xbf16>
    %c0_16 = arith.constant 0 : index
    %c0_17 = arith.constant 0 : index
    %37 = vector.load %arg6[%c0_16, %c0_17] : memref<128x128xbf16, #tpu.memory_space<vmem>>, vector<128x128xbf16>
    %cst_18 = arith.constant dense<0.000000e+00> : vector<8x128xf32>
    %38 = tpu.matmul %36, %37, %cst_18 {dimension_numbers = #tpu.dot_dimension_numbers<[1], [0], [0], [1], [0, 0, 1, 1], [], []>} : vector<8x128xbf16>, vector<128x128xbf16>, vector<8x128xf32> -> vector<8x128xf32>
    %c0_19 = arith.constant 0 : index
    %c0_20 = arith.constant 0 : index
    %39 = vector.load %arg7[%c0_19, %c0_20] : memref<1x128xf32, #tpu.memory_space<vmem>>, vector<1x128xf32>
    %40 = vector.broadcast %39 : vector<1x128xf32> to vector<8x128xf32>
    %41 = arith.addf %38, %40 : vector<8x128xf32>
    %c0_21 = arith.constant 0 : index
    %c0_22 = arith.constant 0 : index
    %42 = vector.load %arg8[%c0_21, %c0_22] : memref<8x128xf32, #tpu.memory_space<vmem>>, vector<8x128xf32>
    tpu.vector_store %arg8[%c0_21, %c0_22], %41 {strides = array<i32>} : memref<8x128xf32, #tpu.memory_space<vmem>>, vector<8x128xf32>,
    return
  }
  func.func @transform_0(%arg0: i32) -> (i32, i32) {
    %c0_i32 = arith.constant 0 : i32
    %c0_i32_0 = arith.constant 0 : i32
    return %arg0, %c0_i32 : i32, i32
  }
  func.func @transform_1(%arg0: i32) -> (i32, i32) {
    %c0_i32 = arith.constant 0 : i32
    %c0_i32_0 = arith.constant 0 : i32
    %c0_i32_1 = arith.constant 0 : i32
    return %c0_i32, %c0_i32_0 : i32, i32
  }
  func.func @transform_2(%arg0: i32) -> (i32, i32) {
    %c0_i32 = arith.constant 0 : i32
    %c0_i32_0 = arith.constant 0 : i32
    %c0_i32_1 = arith.constant 0 : i32
    return %c0_i32, %c0_i32_0 : i32, i32
  }
  func.func @transform_3(%arg0: i32) -> (i32, i32) {
    %c0_i32 = arith.constant 0 : i32
    %c0_i32_0 = arith.constant 0 : i32
    %c0_i32_1 = arith.constant 0 : i32
    return %c0_i32, %c0_i32_0 : i32, i32
  }
  func.func @transform_4(%arg0: i32) -> (i32, i32) {
    %c0_i32 = arith.constant 0 : i32
    %c0_i32_0 = arith.constant 0 : i32
    %c0_i32_1 = arith.constant 0 : i32
    return %c0_i32, %c0_i32_0 : i32, i32
  }
  func.func @transform_5(%arg0: i32) -> (i32, i32) {
    %c0_i32 = arith.constant 0 : i32
    %c0_i32_0 = arith.constant 0 : i32
    %c0_i32_1 = arith.constant 0 : i32
    return %c0_i32, %c0_i32_0 : i32, i32
  }
  func.func @transform_6(%arg0: i32) -> (i32, i32) {
    %c0_i32 = arith.constant 0 : i32
    %c0_i32_0 = arith.constant 0 : i32
    %c0_i32_1 = arith.constant 0 : i32
    return %c0_i32, %c0_i32_0 : i32, i32
  }
  func.func @transform_7(%arg0: i32) -> (i32, i32) {
    %c0_i32 = arith.constant 0 : i32
    %c0_i32_0 = arith.constant 0 : i32
    return %arg0, %c0_i32 : i32, i32
  }
}

</mosaic_0001>

<llo_original>
// kernel: tpu_custom_call.1
$region0: #{tpu_custom_call.1}
  #allocation0 [shape = 'u32[]', space=smem, size = 0x4, offset = 0x4, fixed_abs, tag = 'smem constant byte address 0x4 - core index']
  #allocation1 [shape = 'u32[144,128]{1,0:T(1,128)}', space=vmem, size = 0x12000, scoped, tag = 'internal scratch']
  %s0 = inlined_call_operand.vmem [shape: s32[8,18], index: 0, kind: input, shape index: {}]
  %s1 = inlined_call_operand.vmem [shape: bf16[128,32], index: 1, kind: input, shape index: {}]
  %s2 = inlined_call_operand.vmem [shape: bf16[128,128], index: 2, kind: input, shape index: {}]
  %s3 = inlined_call_operand.vmem [shape: f32[1,128], index: 3, kind: input, shape index: {}]
  %s4 = inlined_call_operand.vmem [shape: s32[1,128], index: 4, kind: input, shape index: {}]
  %s5 = inlined_call_operand.hbm [shape: bf16[128,128], index: 5, kind: input, shape index: {}]
  %s6 = inlined_call_operand.vmem [shape: f32[1,128], index: 6, kind: input, shape index: {}]
  %s7 = inlined_call_operand.hbm [shape: f32[8,128], index: 7, kind: output, shape index: {}]
  %s8 = sld [smem:[#allocation0]]
  $region42: #{tpu_custom_call.1} parent=0
    _
  %s10 = ssub.s32 1, %s8
  %s11 = scalar_select 0, %s10, %s8
  $region1: #{tpu_custom_call.1} parent=0
    #allocation2 [shape = 'u8[32768]{0}', space=vmem, size = 0x8000, scoped, tag = 'input window, operand 5, single buffered']
    #allocation3 [shape = 's32[1]{0}', space=sflag, size = 0x4, scoped, tag = 'scoped memory for tpu_custom_call.1']
    #allocation4 [shape = 's32[1]{0}', space=sflag, size = 0x4, scoped, tag = 'scoped memory for tpu_custom_call.1']
    #allocation5 [shape = 'u8[4096]{0}', space=vmem, size = 0x1000, scoped, tag = 'output window, operand 0, single buffered']
    %12 = vsyncpa [#allocation3], 0
    %13 = vsyncpa [#allocation4], 0
    // Predicated region
    $region2: #{tpu_custom_call.1} parent=1 // pred_check
      _
    $region3: #{tpu_custom_call.1} parent=1 // pred_check_branch
      %15 = sbr.rel (0) target = $region5
    $region4: #{tpu_custom_call.1} parent=1 // pred_region
      _
    $region5: #{tpu_custom_call.1} parent=1 // pred_fallthru
      _
    // Predicated region
    $region6: #{tpu_custom_call.1} parent=1 // pred_check
      _
    $region7: #{tpu_custom_call.1} parent=1 // pred_check_branch
      %17 = sbr.rel (0) target = $region9
    $region8: #{tpu_custom_call.1} parent=1 // pred_region
      _
    $region9: #{tpu_custom_call.1} parent=1 // pred_fallthru
      _
    // Predicated region
    $region10: #{tpu_custom_call.1} parent=1 // pred_check
      _
    $region11: #{tpu_custom_call.1} parent=1 // pred_check_branch
      %19 = sbr.rel (0) target = $region13
    $region12: #{tpu_custom_call.1} parent=1 // pred_region
      _
    $region13: #{tpu_custom_call.1} parent=1 // pred_fallthru
      _
    // Predicated region
    $region14: #{tpu_custom_call.1} parent=1 // pred_check
      _
    $region15: #{tpu_custom_call.1} parent=1 // pred_check_branch
      %21 = sbr.rel (0) target = $region17
    $region16: #{tpu_custom_call.1} parent=1 // pred_region
      _
    $region17: #{tpu_custom_call.1} parent=1 // pred_fallthru
      _
    // Predicated region
    $region18: #{tpu_custom_call.1} parent=1 // pred_check
      _
    $region19: #{tpu_custom_call.1} parent=1 // pred_check_branch
      %23 = sbr.rel (0) target = $region21
    $region20: #{tpu_custom_call.1} parent=1 // pred_region
      _
    $region21: #{tpu_custom_call.1} parent=1 // pred_fallthru
      _
    // Predicated region
    $region22: #{tpu_custom_call.1} parent=1 // pred_check
      _
    $region23: #{tpu_custom_call.1} parent=1 // pred_check_branch
      %25 = sbr.rel (0) target = $region25
    $region24: #{tpu_custom_call.1} parent=1 // pred_region
      %s27 = ssub.s32 1024, 1024
      %28 = vsyncadd [#allocation3], %s27
      %s29 = sshll.u32 [#allocation2], 4
      %s30 = int_to_ptr.vmem [resolvable:$true] %s29
      %35 = dma.hbm_to_vmem [thread:$0]  %s5, 1024, %s30, [#allocation3], 64, 64, 4
    $region25: #{tpu_custom_call.1} parent=1 // pred_fallthru
      _
    // Predicated region
    $region26: #{tpu_custom_call.1} parent=1 // pred_check
      _
    $region27: #{tpu_custom_call.1} parent=1 // pred_check_branch
      %37 = sbr.rel (0) target = $region29
    $region28: #{tpu_custom_call.1} parent=1 // pred_region
      _
    $region29: #{tpu_custom_call.1} parent=1 // pred_fallthru
      _
    // Predicated region
    $region30: #{tpu_custom_call.1} parent=1 // pred_check
      _
    $region31: #{tpu_custom_call.1} parent=1 // pred_check_branch
      %39 = sbr.rel (0) target = $region33
    $region32: #{tpu_custom_call.1} parent=1 // pred_region
      %40 = dma.done [#allocation3], 1024
    $region33: #{tpu_custom_call.1} parent=1 // pred_fallthru
      _
    %v42 = vld [vmem:[%s0] sm:$0xff]
    %v43 = vlaneseq
    %v44 = vand.u32 %v43, 127
    %v45 = vlaneseq
    %v46 = vshrl.u32 %v45, 7
    %v47 = vsub.s32 0, %v46
    %v48 = vrot.slane %v42, %v47
    %50 = vbcast.lane.b32.xlu0 %v48, 256
    %v51 = vpop.permute.xlu0 %50
    %s53 = sor.u32 256, 8
    %54 = vbcast.lane.b32.xlu0 %v48, %s53
    %v55 = vpop.permute.xlu0 %54
    %s57 = sor.u32 256, 16
    %58 = vbcast.lane.b32.xlu0 %v48, %s57
    %v59 = vpop.permute.xlu0 %58
    %v60 = vlaneseq
    %v61 = vshrl.u32 %v60, 7
    %v62 = vsub.s32 1, %v61
    %v63 = vrot.slane %v42, %v62
    %65 = vbcast.lane.b32.xlu0 %v63, 256
    %v66 = vpop.permute.xlu0 %65
    %s68 = sor.u32 256, 8
    %69 = vbcast.lane.b32.xlu0 %v63, %s68
    %v70 = vpop.permute.xlu0 %69
    %s72 = sor.u32 256, 16
    %73 = vbcast.lane.b32.xlu0 %v63, %s72
    %v74 = vpop.permute.xlu0 %73
    %v75 = vlaneseq
    %v76 = vshrl.u32 %v75, 7
    %v77 = vsub.s32 2, %v76
    %v78 = vrot.slane %v42, %v77
    %80 = vbcast.lane.b32.xlu0 %v78, 256
    %v81 = vpop.permute.xlu0 %80
    %s83 = sor.u32 256, 8
    %84 = vbcast.lane.b32.xlu0 %v78, %s83
    %v85 = vpop.permute.xlu0 %84
    %s87 = sor.u32 256, 16
    %88 = vbcast.lane.b32.xlu0 %v78, %s87
    %v89 = vpop.permute.xlu0 %88
    %v90 = vlaneseq
    %v91 = vshrl.u32 %v90, 7
    %v92 = vsub.s32 3, %v91
    %v93 = vrot.slane %v42, %v92
    %95 = vbcast.lane.b32.xlu0 %v93, 256
    %v96 = vpop.permute.xlu0 %95
    %s98 = sor.u32 256, 8
    %99 = vbcast.lane.b32.xlu0 %v93, %s98
    %v100 = vpop.permute.xlu0 %99
    %s102 = sor.u32 256, 16
    %103 = vbcast.lane.b32.xlu0 %v93, %s102
    %v104 = vpop.permute.xlu0 %103
    %v105 = vlaneseq
    %v106 = vshrl.u32 %v105, 7
    %v107 = vsub.s32 4, %v106
    %v108 = vrot.slane %v42, %v107
    %110 = vbcast.lane.b32.xlu0 %v108, 256
    %v111 = vpop.permute.xlu0 %110
    %s113 = sor.u32 256, 8
    %114 = vbcast.lane.b32.xlu0 %v108, %s113
    %v115 = vpop.permute.xlu0 %114
    %s117 = sor.u32 256, 16
    %118 = vbcast.lane.b32.xlu0 %v108, %s117
    %v119 = vpop.permute.xlu0 %118
    %v120 = vlaneseq
    %v121 = vshrl.u32 %v120, 7
    %v122 = vsub.s32 5, %v121
    %v123 = vrot.slane %v42, %v122
    %125 = vbcast.lane.b32.xlu0 %v123, 256
    %v126 = vpop.permute.xlu0 %125
    %s128 = sor.u32 256, 8
    %129 = vbcast.lane.b32.xlu0 %v123, %s128
    %v130 = vpop.permute.xlu0 %129
    %s132 = sor.u32 256, 16
    %133 = vbcast.lane.b32.xlu0 %v123, %s132
    %v134 = vpop.permute.xlu0 %133
    %v135 = vlaneseq
    %v136 = vshrl.u32 %v135, 7
    %v137 = vsub.s32 6, %v136
    %v138 = vrot.slane %v42, %v137
    %140 = vbcast.lane.b32.xlu0 %v138, 256
    %v141 = vpop.permute.xlu0 %140
    %s143 = sor.u32 256, 8
    %144 = vbcast.lane.b32.xlu0 %v138, %s143
    %v145 = vpop.permute.xlu0 %144
    %s147 = sor.u32 256, 16
    %148 = vbcast.lane.b32.xlu0 %v138, %s147
    %v149 = vpop.permute.xlu0 %148
    %v150 = vlaneseq
    %v151 = vshrl.u32 %v150, 7
    %v152 = vsub.s32 7, %v151
    %v153 = vrot.slane %v42, %v152
    %155 = vbcast.lane.b32.xlu0 %v153, 256
    %v156 = vpop.permute.xlu0 %155
    %s158 = sor.u32 256, 8
    %159 = vbcast.lane.b32.xlu0 %v153, %s158
    %v160 = vpop.permute.xlu0 %159
    %s162 = sor.u32 256, 16
    %163 = vbcast.lane.b32.xlu0 %v153, %s162
    %v164 = vpop.permute.xlu0 %163
    %vm165 = vcmp.eq.s32.totalorder %v51, %v44
    %vm166 = vcmp.eq.s32.totalorder %v55, %v44
    %vm167 = vcmp.eq.s32.totalorder %v59, %v44
    %vm168 = vcmp.eq.s32.totalorder %v66, %v44
    %vm169 = vcmp.eq.s32.totalorder %v70, %v44
    %vm170 = vcmp.eq.s32.totalorder %v74, %v44
    %vm171 = vcmp.eq.s32.totalorder %v81, %v44
    %vm172 = vcmp.eq.s32.totalorder %v85, %v44
    %vm173 = vcmp.eq.s32.totalorder %v89, %v44
    %vm174 = vcmp.eq.s32.totalorder %v96, %v44
    %vm175 = vcmp.eq.s32.totalorder %v100, %v44
    %vm176 = vcmp.eq.s32.totalorder %v104, %v44
    %vm177 = vcmp.eq.s32.totalorder %v111, %v44
    %vm178 = vcmp.eq.s32.totalorder %v115, %v44
    %vm179 = vcmp.eq.s32.totalorder %v119, %v44
    %vm180 = vcmp.eq.s32.totalorder %v126, %v44
    %vm181 = vcmp.eq.s32.totalorder %v130, %v44
    %vm182 = vcmp.eq.s32.totalorder %v134, %v44
    %vm183 = vcmp.eq.s32.totalorder %v141, %v44
    %vm184 = vcmp.eq.s32.totalorder %v145, %v44
    %vm185 = vcmp.eq.s32.totalorder %v149, %v44
    %vm186 = vcmp.eq.s32.totalorder %v156, %v44
    %vm187 = vcmp.eq.s32.totalorder %v160, %v44
    %vm188 = vcmp.eq.s32.totalorder %v164, %v44
    %v189 = vsel %vm165, 1.0, 0.0
    %v190 = vsel %vm166, 1.0, 0.0
    %v191 = vsel %vm167, 1.0, 0.0
    %v192 = vsel %vm168, 1.0, 0.0
    %v193 = vsel %vm169, 1.0, 0.0
    %v194 = vsel %vm170, 1.0, 0.0
    %v195 = vsel %vm171, 1.0, 0.0
    %v196 = vsel %vm172, 1.0, 0.0
    %v197 = vsel %vm173, 1.0, 0.0
    %v198 = vsel %vm174, 1.0, 0.0
    %v199 = vsel %vm175, 1.0, 0.0
    %v200 = vsel %vm176, 1.0, 0.0
    %v201 = vsel %vm177, 1.0, 0.0
    %v202 = vsel %vm178, 1.0, 0.0
    %v203 = vsel %vm179, 1.0, 0.0
    %v204 = vsel %vm180, 1.0, 0.0
    %v205 = vsel %vm181, 1.0, 0.0
    %v206 = vsel %vm182, 1.0, 0.0
    %v207 = vsel %vm183, 1.0, 0.0
    %v208 = vsel %vm184, 1.0, 0.0
    %v209 = vsel %vm185, 1.0, 0.0
    %v210 = vsel %vm186, 1.0, 0.0
    %v211 = vsel %vm187, 1.0, 0.0
    %v212 = vsel %vm188, 1.0, 0.0
    %v213 = vpack.c.bf16 %v190, %v189
    %v214 = vpack.c.bf16 %v191, %v191
    %v215 = vpack.c.bf16 %v193, %v192
    %v216 = vpack.c.bf16 %v194, %v194
    %v217 = vpack.c.bf16 %v196, %v195
    %v218 = vpack.c.bf16 %v197, %v197
    %v219 = vpack.c.bf16 %v199, %v198
    %v220 = vpack.c.bf16 %v200, %v200
    %v221 = vpack.c.bf16 %v202, %v201
    %v222 = vpack.c.bf16 %v203, %v203
    %v223 = vpack.c.bf16 %v205, %v204
    %v224 = vpack.c.bf16 %v206, %v206
    %v225 = vpack.c.bf16 %v208, %v207
    %v226 = vpack.c.bf16 %v209, %v209
    %v227 = vpack.c.bf16 %v211, %v210
    %v228 = vpack.c.bf16 %v212, %v212
    %v229 = vld [vmem:[%s1] sm:$0xf]
    %v230 = vld [vmem:[%s1 + $0x4] sm:$0xf]
    %v231 = vld [vmem:[%s1 + $0x8] sm:$0xf]
    %v232 = vld [vmem:[%s1 + $0xc] sm:$0xf]
    %v233 = vld [vmem:[%s1 + $0x10] sm:$0xf]
    %v234 = vld [vmem:[%s1 + $0x14] sm:$0xf]
    %v235 = vld [vmem:[%s1 + $0x18] sm:$0xf]
    %v236 = vld [vmem:[%s1 + $0x1c] sm:$0xf]
    %v237 = vld [vmem:[%s1 + $0x20] sm:$0xf]
    %v238 = vld [vmem:[%s1 + $0x24] sm:$0xf]
    %v239 = vld [vmem:[%s1 + $0x28] sm:$0xf]
    %v240 = vld [vmem:[%s1 + $0x2c] sm:$0xf]
    %v241 = vld [vmem:[%s1 + $0x30] sm:$0xf]
    %v242 = vld [vmem:[%s1 + $0x34] sm:$0xf]
    %v243 = vld [vmem:[%s1 + $0x38] sm:$0xf]
    %v244 = vld [vmem:[%s1 + $0x3c] sm:$0xf]
    %v261 = vcombine.high %v213, %v213
    %v263 = vunpack.c.l.s4 1966171168
    %v264 = vunpack.c.0.s8 %v263
    %v265 = vlaneseq
    %v266 = vshrl.u32 %v265, 7
    %v267 = vsub.s32 %v264, %v266
    %v268 = vrot.slane %v213, %v267
    %v270 = vunpack.c.l.s4 1966171168
    %v271 = vunpack.c.0.s8 %v270
    %v272 = vlaneseq
    %v273 = vshrl.u32 %v272, 7
    %v274 = vsub.s32 %v271, %v273
    %v275 = vrot.slane %v261, %v274
    %v276 = vcombine.high %v268, %v268
    %v277 = vcombine.high %v275, %v275
    %v279 = vunpack.c.l.s4 1966171168
    %v280 = vunpack.c.0.s8 %v279
    %v281 = vlaneseq
    %v282 = vshrl.u32 %v281, 7
    %v283 = vsub.s32 %v280, %v282
    %v284 = vrot.slane %v268, %v283
    %v286 = vunpack.c.l.s4 1966171168
    %v287 = vunpack.c.0.s8 %v286
    %v288 = vlaneseq
    %v289 = vshrl.u32 %v288, 7
    %v290 = vsub.s32 %v287, %v289
    %v291 = vrot.slane %v275, %v290
    %v293 = vunpack.c.l.s4 1966171168
    %v294 = vunpack.c.0.s8 %v293
    %v295 = vlaneseq
    %v296 = vshrl.u32 %v295, 7
    %v297 = vsub.s32 %v294, %v296
    %v298 = vrot.slane %v276, %v297
    %v300 = vunpack.c.l.s4 1966171168
    %v301 = vunpack.c.0.s8 %v300
    %v302 = vlaneseq
    %v303 = vshrl.u32 %v302, 7
    %v304 = vsub.s32 %v301, %v303
    %v305 = vrot.slane %v277, %v304
    %v306 = vcombine.high %v284, %v284
    %v307 = vcombine.high %v291, %v291
    %v308 = vcombine.high %v298, %v298
    %v309 = vcombine.high %v305, %v305
    %v311 = vunpack.c.l.s4 1966171168
    %v312 = vunpack.c.0.s8 %v311
    %v313 = vlaneseq
    %v314 = vshrl.u32 %v313, 7
    %v315 = vsub.s32 %v312, %v314
    %v316 = vrot.slane %v214, %v315
    %v318 = vunpack.c.l.s4 1966171168
    %v319 = vunpack.c.0.s8 %v318
    %v320 = vlaneseq
    %v321 = vshrl.u32 %v320, 7
    %v322 = vsub.s32 %v319, %v321
    %v323 = vrot.slane %v316, %v322
    %v324 = vcombine.high %v215, %v215
    %v326 = vunpack.c.l.s4 1966171168
    %v327 = vunpack.c.0.s8 %v326
    %v328 = vlaneseq
    %v329 = vshrl.u32 %v328, 7
    %v330 = vsub.s32 %v327, %v329
    %v331 = vrot.slane %v215, %v330
    %v333 = vunpack.c.l.s4 1966171168
    %v334 = vunpack.c.0.s8 %v333
    %v335 = vlaneseq
    %v336 = vshrl.u32 %v335, 7
    %v337 = vsub.s32 %v334, %v336
    %v338 = vrot.slane %v324, %v337
    %v339 = vcombine.high %v331, %v331
    %v340 = vcombine.high %v338, %v338
    %v342 = vunpack.c.l.s4 1966171168
    %v343 = vunpack.c.0.s8 %v342
    %v344 = vlaneseq
    %v345 = vshrl.u32 %v344, 7
    %v346 = vsub.s32 %v343, %v345
    %v347 = vrot.slane %v331, %v346
    %v349 = vunpack.c.l.s4 1966171168
    %v350 = vunpack.c.0.s8 %v349
    %v351 = vlaneseq
    %v352 = vshrl.u32 %v351, 7
    %v353 = vsub.s32 %v350, %v352
    %v354 = vrot.slane %v338, %v353
    %v356 = vunpack.c.l.s4 1966171168
    %v357 = vunpack.c.0.s8 %v356
    %v358 = vlaneseq
    %v359 = vshrl.u32 %v358, 7
    %v360 = vsub.s32 %v357, %v359
    %v361 = vrot.slane %v339, %v360
    %v363 = vunpack.c.l.s4 1966171168
    %v364 = vunpack.c.0.s8 %v363
    %v365 = vlaneseq
    %v366 = vshrl.u32 %v365, 7
    %v367 = vsub.s32 %v364, %v366
    %v368 = vrot.slane %v340, %v367
    %v369 = vcombine.high %v347, %v347
    %v370 = vcombine.high %v354, %v354
    %v371 = vcombine.high %v361, %v361
    %v372 = vcombine.high %v368, %v368
    %v374 = vunpack.c.l.s4 1966171168
    %v375 = vunpack.c.0.s8 %v374
    %v376 = vlaneseq
    %v377 = vshrl.u32 %v376, 7
    %v378 = vsub.s32 %v375, %v377
    %v379 = vrot.slane %v216, %v378
    %v381 = vunpack.c.l.s4 1966171168
    %v382 = vunpack.c.0.s8 %v381
    %v383 = vlaneseq
    %v384 = vshrl.u32 %v383, 7
    %v385 = vsub.s32 %v382, %v384
    %v386 = vrot.slane %v379, %v385
    %v387 = vcombine.high %v217, %v217
    %v389 = vunpack.c.l.s4 1966171168
    %v390 = vunpack.c.0.s8 %v389
    %v391 = vlaneseq
    %v392 = vshrl.u32 %v391, 7
    %v393 = vsub.s32 %v390, %v392
    %v394 = vrot.slane %v217, %v393
    %v396 = vunpack.c.l.s4 1966171168
    %v397 = vunpack.c.0.s8 %v396
    %v398 = vlaneseq
    %v399 = vshrl.u32 %v398, 7
    %v400 = vsub.s32 %v397, %v399
    %v401 = vrot.slane %v387, %v400
    %v402 = vcombine.high %v394, %v394
    %v403 = vcombine.high %v401, %v401
    %v405 = vunpack.c.l.s4 1966171168
    %v406 = vunpack.c.0.s8 %v405
    %v407 = vlaneseq
    %v408 = vshrl.u32 %v407, 7
    %v409 = vsub.s32 %v406, %v408
    %v410 = vrot.slane %v394, %v409
    %v412 = vunpack.c.l.s4 1966171168
    %v413 = vunpack.c.0.s8 %v412
    %v414 = vlaneseq
    %v415 = vshrl.u32 %v414, 7
    %v416 = vsub.s32 %v413, %v415
    %v417 = vrot.slane %v401, %v416
    %v419 = vunpack.c.l.s4 1966171168
    %v420 = vunpack.c.0.s8 %v419
    %v421 = vlaneseq
    %v422 = vshrl.u32 %v421, 7
    %v423 = vsub.s32 %v420, %v422
    %v424 = vrot.slane %v402, %v423
    %v426 = vunpack.c.l.s4 1966171168
    %v427 = vunpack.c.0.s8 %v426
    %v428 = vlaneseq
    %v429 = vshrl.u32 %v428, 7
    %v430 = vsub.s32 %v427, %v429
    %v431 = vrot.slane %v403, %v430
    %v432 = vcombine.high %v410, %v410
    %v433 = vcombine.high %v417, %v417
    %v434 = vcombine.high %v424, %v424
    %v435 = vcombine.high %v431, %v431
    %v437 = vunpack.c.l.s4 1966171168
    %v438 = vunpack.c.0.s8 %v437
    %v439 = vlaneseq
    %v440 = vshrl.u32 %v439, 7
    %v441 = vsub.s32 %v438, %v440
    %v442 = vrot.slane %v218, %v441
    %v444 = vunpack.c.l.s4 1966171168
    %v445 = vunpack.c.0.s8 %v444
    %v446 = vlaneseq
    %v447 = vshrl.u32 %v446, 7
    %v448 = vsub.s32 %v445, %v447
    %v449 = vrot.slane %v442, %v448
    %v450 = vcombine.high %v219, %v219
    %v452 = vunpack.c.l.s4 1966171168
    %v453 = vunpack.c.0.s8 %v452
    %v454 = vlaneseq
    %v455 = vshrl.u32 %v454, 7
    %v456 = vsub.s32 %v453, %v455
    %v457 = vrot.slane %v219, %v456
    %v459 = vunpack.c.l.s4 1966171168
    %v460 = vunpack.c.0.s8 %v459
    %v461 = vlaneseq
    %v462 = vshrl.u32 %v461, 7
    %v463 = vsub.s32 %v460, %v462
    %v464 = vrot.slane %v450, %v463
    %v465 = vcombine.high %v457, %v457
    %v466 = vcombine.high %v464, %v464
    %v468 = vunpack.c.l.s4 1966171168
    %v469 = vunpack.c.0.s8 %v468
    %v470 = vlaneseq
    %v471 = vshrl.u32 %v470, 7
    %v472 = vsub.s32 %v469, %v471
    %v473 = vrot.slane %v457, %v472
    %v475 = vunpack.c.l.s4 1966171168
    %v476 = vunpack.c.0.s8 %v475
    %v477 = vlaneseq
    %v478 = vshrl.u32 %v477, 7
    %v479 = vsub.s32 %v476, %v478
    %v480 = vrot.slane %v464, %v479
    %v482 = vunpack.c.l.s4 1966171168
    %v483 = vunpack.c.0.s8 %v482
    %v484 = vlaneseq
    %v485 = vshrl.u32 %v484, 7
    %v486 = vsub.s32 %v483, %v485
    %v487 = vrot.slane %v465, %v486
    %v489 = vunpack.c.l.s4 1966171168
    %v490 = vunpack.c.0.s8 %v489
    %v491 = vlaneseq
    %v492 = vshrl.u32 %v491, 7
    %v493 = vsub.s32 %v490, %v492
    %v494 = vrot.slane %v466, %v493
    %v495 = vcombine.high %v473, %v473
    %v496 = vcombine.high %v480, %v480
    %v497 = vcombine.high %v487, %v487
    %v498 = vcombine.high %v494, %v494
    %v500 = vunpack.c.l.s4 1966171168
    %v501 = vunpack.c.0.s8 %v500
    %v502 = vlaneseq
    %v503 = vshrl.u32 %v502, 7
    %v504 = vsub.s32 %v501, %v503
    %v505 = vrot.slane %v220, %v504
    %v507 = vunpack.c.l.s4 1966171168
    %v508 = vunpack.c.0.s8 %v507
    %v509 = vlaneseq
    %v510 = vshrl.u32 %v509, 7
    %v511 = vsub.s32 %v508, %v510
    %v512 = vrot.slane %v505, %v511
    %v513 = vcombine.high %v221, %v221
    %v515 = vunpack.c.l.s4 1966171168
    %v516 = vunpack.c.0.s8 %v515
    %v517 = vlaneseq
    %v518 = vshrl.u32 %v517, 7
    %v519 = vsub.s32 %v516, %v518
    %v520 = vrot.slane %v221, %v519
    %v522 = vunpack.c.l.s4 1966171168
    %v523 = vunpack.c.0.s8 %v522
    %v524 = vlaneseq
    %v525 = vshrl.u32 %v524, 7
    %v526 = vsub.s32 %v523, %v525
    %v527 = vrot.slane %v513, %v526
    %v528 = vcombine.high %v520, %v520
    %v529 = vcombine.high %v527, %v527
    %v531 = vunpack.c.l.s4 1966171168
    %v532 = vunpack.c.0.s8 %v531
    %v533 = vlaneseq
    %v534 = vshrl.u32 %v533, 7
    %v535 = vsub.s32 %v532, %v534
    %v536 = vrot.slane %v520, %v535
    %v538 = vunpack.c.l.s4 1966171168
    %v539 = vunpack.c.0.s8 %v538
    %v540 = vlaneseq
    %v541 = vshrl.u32 %v540, 7
    %v542 = vsub.s32 %v539, %v541
    %v543 = vrot.slane %v527, %v542
    %v545 = vunpack.c.l.s4 1966171168
    %v546 = vunpack.c.0.s8 %v545
    %v547 = vlaneseq
    %v548 = vshrl.u32 %v547, 7
    %v549 = vsub.s32 %v546, %v548
    %v550 = vrot.slane %v528, %v549
    %v552 = vunpack.c.l.s4 1966171168
    %v553 = vunpack.c.0.s8 %v552
    %v554 = vlaneseq
    %v555 = vshrl.u32 %v554, 7
    %v556 = vsub.s32 %v553, %v555
    %v557 = vrot.slane %v529, %v556
    %v558 = vcombine.high %v536, %v536
    %v559 = vcombine.high %v543, %v543
    %v560 = vcombine.high %v550, %v550
    %v561 = vcombine.high %v557, %v557
    %v563 = vunpack.c.l.s4 1966171168
    %v564 = vunpack.c.0.s8 %v563
    %v565 = vlaneseq
    %v566 = vshrl.u32 %v565, 7
    %v567 = vsub.s32 %v564, %v566
    %v568 = vrot.slane %v222, %v567
    %v570 = vunpack.c.l.s4 1966171168
    %v571 = vunpack.c.0.s8 %v570
    %v572 = vlaneseq
    %v573 = vshrl.u32 %v572, 7
    %v574 = vsub.s32 %v571, %v573
    %v575 = vrot.slane %v568, %v574
    %v576 = vcombine.high %v223, %v223
    %v578 = vunpack.c.l.s4 1966171168
    %v579 = vunpack.c.0.s8 %v578
    %v580 = vlaneseq
    %v581 = vshrl.u32 %v580, 7
    %v582 = vsub.s32 %v579, %v581
    %v583 = vrot.slane %v223, %v582
    %v585 = vunpack.c.l.s4 1966171168
    %v586 = vunpack.c.0.s8 %v585
    %v587 = vlaneseq
    %v588 = vshrl.u32 %v587, 7
    %v589 = vsub.s32 %v586, %v588
    %v590 = vrot.slane %v576, %v589
    %v591 = vcombine.high %v583, %v583
    %v592 = vcombine.high %v590, %v590
    %v594 = vunpack.c.l.s4 1966171168
    %v595 = vunpack.c.0.s8 %v594
    %v596 = vlaneseq
    %v597 = vshrl.u32 %v596, 7
    %v598 = vsub.s32 %v595, %v597
    %v599 = vrot.slane %v583, %v598
    %v601 = vunpack.c.l.s4 1966171168
    %v602 = vunpack.c.0.s8 %v601
    %v603 = vlaneseq
    %v604 = vshrl.u32 %v603, 7
    %v605 = vsub.s32 %v602, %v604
    %v606 = vrot.slane %v590, %v605
    %v608 = vunpack.c.l.s4 1966171168
    %v609 = vunpack.c.0.s8 %v608
    %v610 = vlaneseq
    %v611 = vshrl.u32 %v610, 7
    %v612 = vsub.s32 %v609, %v611
    %v613 = vrot.slane %v591, %v612
    %v615 = vunpack.c.l.s4 1966171168
    %v616 = vunpack.c.0.s8 %v615
    %v617 = vlaneseq
    %v618 = vshrl.u32 %v617, 7
    %v619 = vsub.s32 %v616, %v618
    %v620 = vrot.slane %v592, %v619
    %v621 = vcombine.high %v599, %v599
    %v622 = vcombine.high %v606, %v606
    %v623 = vcombine.high %v613, %v613
    %v624 = vcombine.high %v620, %v620
    %v626 = vunpack.c.l.s4 1966171168
    %v627 = vunpack.c.0.s8 %v626
    %v628 = vlaneseq
    %v629 = vshrl.u32 %v628, 7
    %v630 = vsub.s32 %v627, %v629
    %v631 = vrot.slane %v224, %v630
    %v633 = vunpack.c.l.s4 1966171168
    %v634 = vunpack.c.0.s8 %v633
    %v635 = vlaneseq
    %v636 = vshrl.u32 %v635, 7
    %v637 = vsub.s32 %v634, %v636
    %v638 = vrot.slane %v631, %v637
    %v639 = vcombine.high %v225, %v225
    %v641 = vunpack.c.l.s4 1966171168
    %v642 = vunpack.c.0.s8 %v641
    %v643 = vlaneseq
    %v644 = vshrl.u32 %v643, 7
    %v645 = vsub.s32 %v642, %v644
    %v646 = vrot.slane %v225, %v645
    %v648 = vunpack.c.l.s4 1966171168
    %v649 = vunpack.c.0.s8 %v648
    %v650 = vlaneseq
    %v651 = vshrl.u32 %v650, 7
    %v652 = vsub.s32 %v649, %v651
    %v653 = vrot.slane %v639, %v652
    %v654 = vcombine.high %v646, %v646
    %v655 = vcombine.high %v653, %v653
    %v657 = vunpack.c.l.s4 1966171168
    %v658 = vunpack.c.0.s8 %v657
    %v659 = vlaneseq
    %v660 = vshrl.u32 %v659, 7
    %v661 = vsub.s32 %v658, %v660
    %v662 = vrot.slane %v646, %v661
    %v664 = vunpack.c.l.s4 1966171168
    %v665 = vunpack.c.0.s8 %v664
    %v666 = vlaneseq
    %v667 = vshrl.u32 %v666, 7
    %v668 = vsub.s32 %v665, %v667
    %v669 = vrot.slane %v653, %v668
    %v671 = vunpack.c.l.s4 1966171168
    %v672 = vunpack.c.0.s8 %v671
    %v673 = vlaneseq
    %v674 = vshrl.u32 %v673, 7
    %v675 = vsub.s32 %v672, %v674
    %v676 = vrot.slane %v654, %v675
    %v678 = vunpack.c.l.s4 1966171168
    %v679 = vunpack.c.0.s8 %v678
    %v680 = vlaneseq
    %v681 = vshrl.u32 %v680, 7
    %v682 = vsub.s32 %v679, %v681
    %v683 = vrot.slane %v655, %v682
    %v684 = vcombine.high %v662, %v662
    %v685 = vcombine.high %v669, %v669
    %v686 = vcombine.high %v676, %v676
    %v687 = vcombine.high %v683, %v683
    %v689 = vunpack.c.l.s4 1966171168
    %v690 = vunpack.c.0.s8 %v689
    %v691 = vlaneseq
    %v692 = vshrl.u32 %v691, 7
    %v693 = vsub.s32 %v690, %v692
    %v694 = vrot.slane %v226, %v693
    %v696 = vunpack.c.l.s4 1966171168
    %v697 = vunpack.c.0.s8 %v696
    %v698 = vlaneseq
    %v699 = vshrl.u32 %v698, 7
    %v700 = vsub.s32 %v697, %v699
    %v701 = vrot.slane %v694, %v700
    %v702 = vcombine.high %v227, %v227
    %v704 = vunpack.c.l.s4 1966171168
    %v705 = vunpack.c.0.s8 %v704
    %v706 = vlaneseq
    %v707 = vshrl.u32 %v706, 7
    %v708 = vsub.s32 %v705, %v707
    %v709 = vrot.slane %v227, %v708
    %v711 = vunpack.c.l.s4 1966171168
    %v712 = vunpack.c.0.s8 %v711
    %v713 = vlaneseq
    %v714 = vshrl.u32 %v713, 7
    %v715 = vsub.s32 %v712, %v714
    %v716 = vrot.slane %v702, %v715
    %v717 = vcombine.high %v709, %v709
    %v718 = vcombine.high %v716, %v716
    %v720 = vunpack.c.l.s4 1966171168
    %v721 = vunpack.c.0.s8 %v720
    %v722 = vlaneseq
    %v723 = vshrl.u32 %v722, 7
    %v724 = vsub.s32 %v721, %v723
    %v725 = vrot.slane %v709, %v724
    %v727 = vunpack.c.l.s4 1966171168
    %v728 = vunpack.c.0.s8 %v727
    %v729 = vlaneseq
    %v730 = vshrl.u32 %v729, 7
    %v731 = vsub.s32 %v728, %v730
    %v732 = vrot.slane %v716, %v731
    %v734 = vunpack.c.l.s4 1966171168
    %v735 = vunpack.c.0.s8 %v734
    %v736 = vlaneseq
    %v737 = vshrl.u32 %v736, 7
    %v738 = vsub.s32 %v735, %v737
    %v739 = vrot.slane %v717, %v738
    %v741 = vunpack.c.l.s4 1966171168
    %v742 = vunpack.c.0.s8 %v741
    %v743 = vlaneseq
    %v744 = vshrl.u32 %v743, 7
    %v745 = vsub.s32 %v742, %v744
    %v746 = vrot.slane %v718, %v745
    %v747 = vcombine.high %v725, %v725
    %v748 = vcombine.high %v732, %v732
    %v749 = vcombine.high %v739, %v739
    %v750 = vcombine.high %v746, %v746
    %v752 = vunpack.c.l.s4 1966171168
    %v753 = vunpack.c.0.s8 %v752
    %v754 = vlaneseq
    %v755 = vshrl.u32 %v754, 7
    %v756 = vsub.s32 %v753, %v755
    %v757 = vrot.slane %v228, %v756
    %v759 = vunpack.c.l.s4 1966171168
    %v760 = vunpack.c.0.s8 %v759
    %v761 = vlaneseq
    %v762 = vshrl.u32 %v761, 7
    %v763 = vsub.s32 %v760, %v762
    %v764 = vrot.slane %v757, %v763
    %v765 = vcombine.low %v284, %v298
    %v766 = vcombine.low %v306, %v308
    %v767 = vcombine.low %v291, %v305
    %v768 = vcombine.low %v307, %v309
    %v770 = vunpack.c.l.s4 1966171168
    %v771 = vunpack.c.0.s8 %v770
    %v772 = vlaneseq
    %v773 = vshrl.u32 %v772, 7
    %v774 = vsub.s32 %v771, %v773
    %v775 = vrot.slane %v765, %v774
    %v777 = vunpack.c.l.s4 1966171168
    %v778 = vunpack.c.0.s8 %v777
    %v779 = vlaneseq
    %v780 = vshrl.u32 %v779, 7
    %v781 = vsub.s32 %v778, %v780
    %v782 = vrot.slane %v766, %v781
    %v784 = vunpack.c.l.s4 1966171168
    %v785 = vunpack.c.0.s8 %v784
    %v786 = vlaneseq
    %v787 = vshrl.u32 %v786, 7
    %v788 = vsub.s32 %v785, %v787
    %v789 = vrot.slane %v767, %v788
    %v791 = vunpack.c.l.s4 1966171168
    %v792 = vunpack.c.0.s8 %v791
    %v793 = vlaneseq
    %v794 = vshrl.u32 %v793, 7
    %v795 = vsub.s32 %v792, %v794
    %v796 = vrot.slane %v768, %v795
    %v797 = vcombine.low %v775, %v782
    %v798 = vcombine.low %v789, %v796
    %v800 = vunpack.c.l.s4 1966171168
    %v801 = vunpack.c.0.s8 %v800
    %v802 = vlaneseq
    %v803 = vshrl.u32 %v802, 7
    %v804 = vsub.s32 %v801, %v803
    %v805 = vrot.slane %v797, %v804
    %v807 = vunpack.c.l.s4 1966171168
    %v808 = vunpack.c.0.s8 %v807
    %v809 = vlaneseq
    %v810 = vshrl.u32 %v809, 7
    %v811 = vsub.s32 %v808, %v810
    %v812 = vrot.slane %v798, %v811
    %v813 = vcombine.low %v805, %v812
    %v814 = vcombine.low %v323, %v347
    %v815 = vcombine.low %v361, %v369
    %v816 = vcombine.low %v371, %v354
    %v817 = vcombine.low %v368, %v370
    %v819 = vunpack.c.l.s4 1966171168
    %v820 = vunpack.c.0.s8 %v819
    %v821 = vlaneseq
    %v822 = vshrl.u32 %v821, 7
    %v823 = vsub.s32 %v820, %v822
    %v824 = vrot.slane %v814, %v823
    %v826 = vunpack.c.l.s4 1966171168
    %v827 = vunpack.c.0.s8 %v826
    %v828 = vlaneseq
    %v829 = vshrl.u32 %v828, 7
    %v830 = vsub.s32 %v827, %v829
    %v831 = vrot.slane %v815, %v830
    %v833 = vunpack.c.l.s4 1966171168
    %v834 = vunpack.c.0.s8 %v833
    %v835 = vlaneseq
    %v836 = vshrl.u32 %v835, 7
    %v837 = vsub.s32 %v834, %v836
    %v838 = vrot.slane %v816, %v837
    %v840 = vunpack.c.l.s4 1966171168
    %v841 = vunpack.c.0.s8 %v840
    %v842 = vlaneseq
    %v843 = vshrl.u32 %v842, 7
    %v844 = vsub.s32 %v841, %v843
    %v845 = vrot.slane %v817, %v844
    %v846 = vcombine.low %v824, %v831
    %v847 = vcombine.low %v838, %v845
    %v849 = vunpack.c.l.s4 1966171168
    %v850 = vunpack.c.0.s8 %v849
    %v851 = vlaneseq
    %v852 = vshrl.u32 %v851, 7
    %v853 = vsub.s32 %v850, %v852
    %v854 = vrot.slane %v846, %v853
    %v856 = vunpack.c.l.s4 1966171168
    %v857 = vunpack.c.0.s8 %v856
    %v858 = vlaneseq
    %v859 = vshrl.u32 %v858, 7
    %v860 = vsub.s32 %v857, %v859
    %v861 = vrot.slane %v847, %v860
    %v862 = vcombine.low %v854, %v861
    %v863 = vcombine.low %v372, %v386
    %v864 = vcombine.low %v410, %v424
    %v865 = vcombine.low %v432, %v434
    %v866 = vcombine.low %v417, %v431
    %v868 = vunpack.c.l.s4 1966171168
    %v869 = vunpack.c.0.s8 %v868
    %v870 = vlaneseq
    %v871 = vshrl.u32 %v870, 7
    %v872 = vsub.s32 %v869, %v871
    %v873 = vrot.slane %v863, %v872
    %v875 = vunpack.c.l.s4 1966171168
    %v876 = vunpack.c.0.s8 %v875
    %v877 = vlaneseq
    %v878 = vshrl.u32 %v877, 7
    %v879 = vsub.s32 %v876, %v878
    %v880 = vrot.slane %v864, %v879
    %v882 = vunpack.c.l.s4 1966171168
    %v883 = vunpack.c.0.s8 %v882
    %v884 = vlaneseq
    %v885 = vshrl.u32 %v884, 7
    %v886 = vsub.s32 %v883, %v885
    %v887 = vrot.slane %v865, %v886
    %v889 = vunpack.c.l.s4 1966171168
    %v890 = vunpack.c.0.s8 %v889
    %v891 = vlaneseq
    %v892 = vshrl.u32 %v891, 7
    %v893 = vsub.s32 %v890, %v892
    %v894 = vrot.slane %v866, %v893
    %v895 = vcombine.low %v873, %v880
    %v896 = vcombine.low %v887, %v894
    %v898 = vunpack.c.l.s4 1966171168
    %v899 = vunpack.c.0.s8 %v898
    %v900 = vlaneseq
    %v901 = vshrl.u32 %v900, 7
    %v902 = vsub.s32 %v899, %v901
    %v903 = vrot.slane %v895, %v902
    %v905 = vunpack.c.l.s4 1966171168
    %v906 = vunpack.c.0.s8 %v905
    %v907 = vlaneseq
    %v908 = vshrl.u32 %v907, 7
    %v909 = vsub.s32 %v906, %v908
    %v910 = vrot.slane %v896, %v909
    %v911 = vcombine.low %v903, %v910
    %v912 = vcombine.low %v433, %v435
    %v913 = vcombine.low %v449, %v473
    %v914 = vcombine.low %v487, %v495
    %v915 = vcombine.low %v497, %v480
    %v917 = vunpack.c.l.s4 1966171168
    %v918 = vunpack.c.0.s8 %v917
    %v919 = vlaneseq
    %v920 = vshrl.u32 %v919, 7
    %v921 = vsub.s32 %v918, %v920
    %v922 = vrot.slane %v912, %v921
    %v924 = vunpack.c.l.s4 1966171168
    %v925 = vunpack.c.0.s8 %v924
    %v926 = vlaneseq
    %v927 = vshrl.u32 %v926, 7
    %v928 = vsub.s32 %v925, %v927
    %v929 = vrot.slane %v913, %v928
    %v931 = vunpack.c.l.s4 1966171168
    %v932 = vunpack.c.0.s8 %v931
    %v933 = vlaneseq
    %v934 = vshrl.u32 %v933, 7
    %v935 = vsub.s32 %v932, %v934
    %v936 = vrot.slane %v914, %v935
    %v938 = vunpack.c.l.s4 1966171168
    %v939 = vunpack.c.0.s8 %v938
    %v940 = vlaneseq
    %v941 = vshrl.u32 %v940, 7
    %v942 = vsub.s32 %v939, %v941
    %v943 = vrot.slane %v915, %v942
    %v944 = vcombine.low %v922, %v929
    %v945 = vcombine.low %v936, %v943
    %v947 = vunpack.c.l.s4 1966171168
    %v948 = vunpack.c.0.s8 %v947
    %v949 = vlaneseq
    %v950 = vshrl.u32 %v949, 7
    %v951 = vsub.s32 %v948, %v950
    %v952 = vrot.slane %v944, %v951
    %v954 = vunpack.c.l.s4 1966171168
    %v955 = vunpack.c.0.s8 %v954
    %v956 = vlaneseq
    %v957 = vshrl.u32 %v956, 7
    %v958 = vsub.s32 %v955, %v957
    %v959 = vrot.slane %v945, %v958
    %v960 = vcombine.low %v952, %v959
    %v961 = vcombine.low %v494, %v496
    %v962 = vcombine.low %v498, %v512
    %v963 = vcombine.low %v536, %v550
    %v964 = vcombine.low %v558, %v560
    %v966 = vunpack.c.l.s4 1966171168
    %v967 = vunpack.c.0.s8 %v966
    %v968 = vlaneseq
    %v969 = vshrl.u32 %v968, 7
    %v970 = vsub.s32 %v967, %v969
    %v971 = vrot.slane %v961, %v970
    %v973 = vunpack.c.l.s4 1966171168
    %v974 = vunpack.c.0.s8 %v973
    %v975 = vlaneseq
    %v976 = vshrl.u32 %v975, 7
    %v977 = vsub.s32 %v974, %v976
    %v978 = vrot.slane %v962, %v977
    %v980 = vunpack.c.l.s4 1966171168
    %v981 = vunpack.c.0.s8 %v980
    %v982 = vlaneseq
    %v983 = vshrl.u32 %v982, 7
    %v984 = vsub.s32 %v981, %v983
    %v985 = vrot.slane %v963, %v984
    %v987 = vunpack.c.l.s4 1966171168
    %v988 = vunpack.c.0.s8 %v987
    %v989 = vlaneseq
    %v990 = vshrl.u32 %v989, 7
    %v991 = vsub.s32 %v988, %v990
    %v992 = vrot.slane %v964, %v991
    %v993 = vcombine.low %v971, %v978
    %v994 = vcombine.low %v985, %v992
    %v996 = vunpack.c.l.s4 1966171168
    %v997 = vunpack.c.0.s8 %v996
    %v998 = vlaneseq
    %v999 = vshrl.u32 %v998, 7
    %v1000 = vsub.s32 %v997, %v999
    %v1001 = vrot.slane %v993, %v1000
    %v1003 = vunpack.c.l.s4 1966171168
    %v1004 = vunpack.c.0.s8 %v1003
    %v1005 = vlaneseq
    %v1006 = vshrl.u32 %v1005, 7
    %v1007 = vsub.s32 %v1004, %v1006
    %v1008 = vrot.slane %v994, %v1007
    %v1009 = vcombine.low %v1001, %v1008
    %v1010 = vcombine.low %v543, %v557
    %v1011 = vcombine.low %v559, %v561
    %v1012 = vcombine.low %v575, %v599
    %v1013 = vcombine.low %v613, %v621
    %v1015 = vunpack.c.l.s4 1966171168
    %v1016 = vunpack.c.0.s8 %v1015
    %v1017 = vlaneseq
    %v1018 = vshrl.u32 %v1017, 7
    %v1019 = vsub.s32 %v1016, %v1018
    %v1020 = vrot.slane %v1010, %v1019
    %v1022 = vunpack.c.l.s4 1966171168
    %v1023 = vunpack.c.0.s8 %v1022
    %v1024 = vlaneseq
    %v1025 = vshrl.u32 %v1024, 7
    %v1026 = vsub.s32 %v1023, %v1025
    %v1027 = vrot.slane %v1011, %v1026
    %v1029 = vunpack.c.l.s4 1966171168
    %v1030 = vunpack.c.0.s8 %v1029
    %v1031 = vlaneseq
    %v1032 = vshrl.u32 %v1031, 7
    %v1033 = vsub.s32 %v1030, %v1032
    %v1034 = vrot.slane %v1012, %v1033
    %v1036 = vunpack.c.l.s4 1966171168
    %v1037 = vunpack.c.0.s8 %v1036
    %v1038 = vlaneseq
    %v1039 = vshrl.u32 %v1038, 7
    %v1040 = vsub.s32 %v1037, %v1039
    %v1041 = vrot.slane %v1013, %v1040
    %v1042 = vcombine.low %v1020, %v1027
    %v1043 = vcombine.low %v1034, %v1041
    %v1045 = vunpack.c.l.s4 1966171168
    %v1046 = vunpack.c.0.s8 %v1045
    %v1047 = vlaneseq
    %v1048 = vshrl.u32 %v1047, 7
    %v1049 = vsub.s32 %v1046, %v1048
    %v1050 = vrot.slane %v1042, %v1049
    %v1052 = vunpack.c.l.s4 1966171168
    %v1053 = vunpack.c.0.s8 %v1052
    %v1054 = vlaneseq
    %v1055 = vshrl.u32 %v1054, 7
    %v1056 = vsub.s32 %v1053, %v1055
    %v1057 = vrot.slane %v1043, %v1056
    %v1058 = vcombine.low %v1050, %v1057
    %v1059 = vcombine.low %v623, %v606
    %v1060 = vcombine.low %v620, %v622
    %v1061 = vcombine.low %v624, %v638
    %v1062 = vcombine.low %v662, %v676
    %v1064 = vunpack.c.l.s4 1966171168
    %v1065 = vunpack.c.0.s8 %v1064
    %v1066 = vlaneseq
    %v1067 = vshrl.u32 %v1066, 7
    %v1068 = vsub.s32 %v1065, %v1067
    %v1069 = vrot.slane %v1059, %v1068
    %v1071 = vunpack.c.l.s4 1966171168
    %v1072 = vunpack.c.0.s8 %v1071
    %v1073 = vlaneseq
    %v1074 = vshrl.u32 %v1073, 7
    %v1075 = vsub.s32 %v1072, %v1074
    %v1076 = vrot.slane %v1060, %v1075
    %v1078 = vunpack.c.l.s4 1966171168
    %v1079 = vunpack.c.0.s8 %v1078
    %v1080 = vlaneseq
    %v1081 = vshrl.u32 %v1080, 7
    %v1082 = vsub.s32 %v1079, %v1081
    %v1083 = vrot.slane %v1061, %v1082
    %v1085 = vunpack.c.l.s4 1966171168
    %v1086 = vunpack.c.0.s8 %v1085
    %v1087 = vlaneseq
    %v1088 = vshrl.u32 %v1087, 7
    %v1089 = vsub.s32 %v1086, %v1088
    %v1090 = vrot.slane %v1062, %v1089
    %v1091 = vcombine.low %v1069, %v1076
    %v1092 = vcombine.low %v1083, %v1090
    %v1094 = vunpack.c.l.s4 1966171168
    %v1095 = vunpack.c.0.s8 %v1094
    %v1096 = vlaneseq
    %v1097 = vshrl.u32 %v1096, 7
    %v1098 = vsub.s32 %v1095, %v1097
    %v1099 = vrot.slane %v1091, %v1098
    %v1101 = vunpack.c.l.s4 1966171168
    %v1102 = vunpack.c.0.s8 %v1101
    %v1103 = vlaneseq
    %v1104 = vshrl.u32 %v1103, 7
    %v1105 = vsub.s32 %v1102, %v1104
    %v1106 = vrot.slane %v1092, %v1105
    %v1107 = vcombine.low %v1099, %v1106
    %v1108 = vcombine.low %v684, %v686
    %v1109 = vcombine.low %v669, %v683
    %v1110 = vcombine.low %v685, %v687
    %v1111 = vcombine.low %v701, %v725
    %v1113 = vunpack.c.l.s4 1966171168
    %v1114 = vunpack.c.0.s8 %v1113
    %v1115 = vlaneseq
    %v1116 = vshrl.u32 %v1115, 7
    %v1117 = vsub.s32 %v1114, %v1116
    %v1118 = vrot.slane %v1108, %v1117
    %v1120 = vunpack.c.l.s4 1966171168
    %v1121 = vunpack.c.0.s8 %v1120
    %v1122 = vlaneseq
    %v1123 = vshrl.u32 %v1122, 7
    %v1124 = vsub.s32 %v1121, %v1123
    %v1125 = vrot.slane %v1109, %v1124
    %v1127 = vunpack.c.l.s4 1966171168
    %v1128 = vunpack.c.0.s8 %v1127
    %v1129 = vlaneseq
    %v1130 = vshrl.u32 %v1129, 7
    %v1131 = vsub.s32 %v1128, %v1130
    %v1132 = vrot.slane %v1110, %v1131
    %v1134 = vunpack.c.l.s4 1966171168
    %v1135 = vunpack.c.0.s8 %v1134
    %v1136 = vlaneseq
    %v1137 = vshrl.u32 %v1136, 7
    %v1138 = vsub.s32 %v1135, %v1137
    %v1139 = vrot.slane %v1111, %v1138
    %v1140 = vcombine.low %v1118, %v1125
    %v1141 = vcombine.low %v1132, %v1139
    %v1143 = vunpack.c.l.s4 1966171168
    %v1144 = vunpack.c.0.s8 %v1143
    %v1145 = vlaneseq
    %v1146 = vshrl.u32 %v1145, 7
    %v1147 = vsub.s32 %v1144, %v1146
    %v1148 = vrot.slane %v1140, %v1147
    %v1150 = vunpack.c.l.s4 1966171168
    %v1151 = vunpack.c.0.s8 %v1150
    %v1152 = vlaneseq
    %v1153 = vshrl.u32 %v1152, 7
    %v1154 = vsub.s32 %v1151, %v1153
    %v1155 = vrot.slane %v1141, %v1154
    %v1156 = vcombine.low %v1148, %v1155
    %v1157 = vcombine.low %v739, %v747
    %v1158 = vcombine.low %v749, %v732
    %v1159 = vcombine.low %v746, %v748
    %v1160 = vcombine.low %v750, %v764
    %v1162 = vunpack.c.l.s4 1966171168
    %v1163 = vunpack.c.0.s8 %v1162
    %v1164 = vlaneseq
    %v1165 = vshrl.u32 %v1164, 7
    %v1166 = vsub.s32 %v1163, %v1165
    %v1167 = vrot.slane %v1157, %v1166
    %v1169 = vunpack.c.l.s4 1966171168
    %v1170 = vunpack.c.0.s8 %v1169
    %v1171 = vlaneseq
    %v1172 = vshrl.u32 %v1171, 7
    %v1173 = vsub.s32 %v1170, %v1172
    %v1174 = vrot.slane %v1158, %v1173
    %v1176 = vunpack.c.l.s4 1966171168
    %v1177 = vunpack.c.0.s8 %v1176
    %v1178 = vlaneseq
    %v1179 = vshrl.u32 %v1178, 7
    %v1180 = vsub.s32 %v1177, %v1179
    %v1181 = vrot.slane %v1159, %v1180
    %v1183 = vunpack.c.l.s4 1966171168
    %v1184 = vunpack.c.0.s8 %v1183
    %v1185 = vlaneseq
    %v1186 = vshrl.u32 %v1185, 7
    %v1187 = vsub.s32 %v1184, %v1186
    %v1188 = vrot.slane %v1160, %v1187
    %v1189 = vcombine.low %v1167, %v1174
    %v1190 = vcombine.low %v1181, %v1188
    %v1192 = vunpack.c.l.s4 1966171168
    %v1193 = vunpack.c.0.s8 %v1192
    %v1194 = vlaneseq
    %v1195 = vshrl.u32 %v1194, 7
    %v1196 = vsub.s32 %v1193, %v1195
    %v1197 = vrot.slane %v1189, %v1196
    %v1199 = vunpack.c.l.s4 1966171168
    %v1200 = vunpack.c.0.s8 %v1199
    %v1201 = vlaneseq
    %v1202 = vshrl.u32 %v1201, 7
    %v1203 = vsub.s32 %v1200, %v1202
    %v1204 = vrot.slane %v1190, %v1203
    %v1205 = vcombine.low %v1197, %v1204
    %v1231 = vunpack.c.l.b16 %v229
    %v1232 = vunpack.c.l.b16 %v230
    %v1233 = vunpack.c.l.b16 %v231
    %v1234 = vunpack.c.l.b16 %v232
    %v1235 = vunpack.c.l.b16 %v233
    %v1236 = vunpack.c.l.b16 %v234
    %v1237 = vunpack.c.l.b16 %v235
    %v1238 = vunpack.c.l.b16 %v236
    %v1239 = vunpack.c.l.b16 %v237
    %v1240 = vunpack.c.l.b16 %v238
    %v1241 = vunpack.c.l.b16 %v239
    %v1242 = vunpack.c.l.b16 %v240
    %v1243 = vunpack.c.l.b16 %v241
    %v1244 = vunpack.c.l.b16 %v242
    %v1245 = vunpack.c.l.b16 %v243
    %v1246 = vunpack.c.l.b16 %v244
    %v1247 = vpack.c.b16 %v1232, %v1231
    %v1248 = vpack.c.b16 %v1234, %v1233
    %v1249 = vpack.c.b16 %v1236, %v1235
    %v1250 = vpack.c.b16 %v1238, %v1237
    %v1251 = vpack.c.b16 %v1240, %v1239
    %v1252 = vpack.c.b16 %v1242, %v1241
    %v1253 = vpack.c.b16 %v1244, %v1243
    %v1254 = vpack.c.b16 %v1246, %v1245
    %1263 = vmatprep.subr.bf16.mxu0 0
    %1264 = vmatpush1.bf16.msra.mxu0 %v1247
    %1265 = vmatprep.subr.bf16.mxu0 0
    %1266 = vmatpush1.bf16.msra.mxu0 %v1248
    %1267 = vmatprep.subr.bf16.mxu0 0
    %1268 = vmatpush1.bf16.msra.mxu0 %v1249
    %1269 = vmatprep.subr.bf16.mxu0 0
    %1270 = vmatpush1.bf16.msra.mxu0 %v1250
    %1271 = vmatprep.subr.bf16.mxu0 0
    %1272 = vmatpush1.bf16.msra.mxu0 %v1251
    %1273 = vmatprep.subr.bf16.mxu0 0
    %1274 = vmatpush1.bf16.msra.mxu0 %v1252
    %1275 = vmatprep.subr.bf16.mxu0 0
    %1276 = vmatpush1.bf16.msra.mxu0 %v1253
    %1277 = vmatprep.subr.bf16.mxu0 0
    %1278 = vmatpush1.bf16.msra.mxu0 %v1254
    %1279 = vmatprep.subr.bf16.mxu0 0
    %1280 = vmatpush1.bf16.msra.mxu0 0
    %1281 = vmatprep.subr.bf16.mxu0 0
    %1282 = vmatpush1.bf16.msra.mxu0 0
    %1283 = vmatprep.subr.bf16.mxu0 0
    %1284 = vmatpush1.bf16.msra.mxu0 0
    %1285 = vmatprep.subr.bf16.mxu0 0
    %1286 = vmatpush1.bf16.msra.mxu0 0
    %1287 = vmatprep.subr.bf16.mxu0 0
    %1288 = vmatpush1.bf16.msra.mxu0 0
    %1289 = vmatprep.subr.bf16.mxu0 0
    %1290 = vmatpush1.bf16.msra.mxu0 0
    %1291 = vmatprep.subr.bf16.mxu0 0
    %1292 = vmatpush1.bf16.msra.mxu0 0
    %1293 = vmatprep.subr.bf16.mxu0 0
    %1294 = vmatpush1.bf16.msra.mxu0 0
    %1295 = vmatprep.mubr.bf16.mxu0 0
    %1296 = vmatmul.mubr.bf16.gmra.mrb[0].mxu0 %v813
    %v1297 = vpop.f32.mrb[0].mxu0
    %v1298 = vadd.f32 0.0, %v1297
    %v1299 = vpop.f32.mrb[0].mxu0
    %v1300 = vpop.f32.mrb[0].mxu0
    %v1301 = vadd.f32 0.0, %v1300
    %v1302 = vpop.f32.mrb[0].mxu0
    %1303 = vmatprep.mubr.bf16.mxu0 0
    %1304 = vmatmul.mubr.bf16.gmra.mrb[0].mxu0 %v862
    %v1305 = vpop.f32.mrb[0].mxu0
    %v1306 = vadd.f32 0.0, %v1305
    %v1307 = vpop.f32.mrb[0].mxu0
    %v1308 = vpop.f32.mrb[0].mxu0
    %v1309 = vadd.f32 0.0, %v1308
    %v1310 = vpop.f32.mrb[0].mxu0
    %1311 = vmatprep.mubr.bf16.mxu0 0
    %1312 = vmatmul.mubr.bf16.gmra.mrb[0].mxu0 %v911
    %v1313 = vpop.f32.mrb[0].mxu0
    %v1314 = vadd.f32 0.0, %v1313
    %v1315 = vpop.f32.mrb[0].mxu0
    %v1316 = vpop.f32.mrb[0].mxu0
    %v1317 = vadd.f32 0.0, %v1316
    %v1318 = vpop.f32.mrb[0].mxu0
    %1319 = vmatprep.mubr.bf16.mxu0 0
    %1320 = vmatmul.mubr.bf16.gmra.mrb[0].mxu0 %v960
    %v1321 = vpop.f32.mrb[0].mxu0
    %v1322 = vadd.f32 0.0, %v1321
    %v1323 = vpop.f32.mrb[0].mxu0
    %v1324 = vpop.f32.mrb[0].mxu0
    %v1325 = vadd.f32 0.0, %v1324
    %v1326 = vpop.f32.mrb[0].mxu0
    %1327 = vmatprep.mubr.bf16.mxu0 0
    %1328 = vmatmul.mubr.bf16.gmra.mrb[0].mxu0 %v1009
    %v1329 = vpop.f32.mrb[0].mxu0
    %v1330 = vadd.f32 0.0, %v1329
    %v1331 = vpop.f32.mrb[0].mxu0
    %v1332 = vpop.f32.mrb[0].mxu0
    %v1333 = vadd.f32 0.0, %v1332
    %v1334 = vpop.f32.mrb[0].mxu0
    %1335 = vmatprep.mubr.bf16.mxu0 0
    %1336 = vmatmul.mubr.bf16.gmra.mrb[0].mxu0 %v1058
    %v1337 = vpop.f32.mrb[0].mxu0
    %v1338 = vadd.f32 0.0, %v1337
    %v1339 = vpop.f32.mrb[0].mxu0
    %v1340 = vpop.f32.mrb[0].mxu0
    %v1341 = vadd.f32 0.0, %v1340
    %v1342 = vpop.f32.mrb[0].mxu0
    %1343 = vmatprep.mubr.bf16.mxu0 0
    %1344 = vmatmul.mubr.bf16.gmra.mrb[0].mxu0 %v1107
    %v1345 = vpop.f32.mrb[0].mxu0
    %v1346 = vadd.f32 0.0, %v1345
    %v1347 = vpop.f32.mrb[0].mxu0
    %v1348 = vpop.f32.mrb[0].mxu0
    %v1349 = vadd.f32 0.0, %v1348
    %v1350 = vpop.f32.mrb[0].mxu0
    %1351 = vmatprep.mubr.bf16.mxu0 0
    %1352 = vmatmul.mubr.bf16.gmra.mrb[0].mxu0 %v1156
    %v1353 = vpop.f32.mrb[0].mxu0
    %v1354 = vadd.f32 0.0, %v1353
    %v1355 = vpop.f32.mrb[0].mxu0
    %v1356 = vpop.f32.mrb[0].mxu0
    %v1357 = vadd.f32 0.0, %v1356
    %v1358 = vpop.f32.mrb[0].mxu0
    %1359 = vmatprep.mubr.bf16.mxu0 0
    %1360 = vmatmul.mubr.bf16.gmra.mrb[0].mxu0 %v1205
    %v1361 = vpop.f32.mrb[0].mxu0
    %v1362 = vadd.f32 0.0, %v1361
    %v1363 = vpop.f32.mrb[0].mxu0
    %v1364 = vpop.f32.mrb[0].mxu0
    %v1365 = vadd.f32 0.0, %v1364
    %v1366 = vpop.f32.mrb[0].mxu0
    %1367 = vdwg.mxu0
    %v1386 = vcombine.high %v1298, %v1298
    %v1388 = vunpack.c.l.s4 1983009808
    %v1389 = vunpack.c.0.s8 %v1388
    %v1390 = vlaneseq
    %v1391 = vshrl.u32 %v1390, 7
    %v1392 = vsub.s32 %v1389, %v1391
    %v1393 = vrot.slane %v1298, %v1392
    %v1395 = vunpack.c.l.s4 1983009808
    %v1396 = vunpack.c.0.s8 %v1395
    %v1397 = vlaneseq
    %v1398 = vshrl.u32 %v1397, 7
    %v1399 = vsub.s32 %v1396, %v1398
    %v1400 = vrot.slane %v1386, %v1399
    %v1401 = vcombine.high %v1393, %v1393
    %v1402 = vcombine.high %v1400, %v1400
    %v1403 = vcombine.high %v1301, %v1301
    %v1405 = vunpack.c.l.s4 1983009808
    %v1406 = vunpack.c.0.s8 %v1405
    %v1407 = vlaneseq
    %v1408 = vshrl.u32 %v1407, 7
    %v1409 = vsub.s32 %v1406, %v1408
    %v1410 = vrot.slane %v1301, %v1409
    %v1412 = vunpack.c.l.s4 1983009808
    %v1413 = vunpack.c.0.s8 %v1412
    %v1414 = vlaneseq
    %v1415 = vshrl.u32 %v1414, 7
    %v1416 = vsub.s32 %v1413, %v1415
    %v1417 = vrot.slane %v1403, %v1416
    %v1418 = vcombine.high %v1410, %v1410
    %v1419 = vcombine.high %v1417, %v1417
    %v1420 = vcombine.high %v1306, %v1306
    %v1422 = vunpack.c.l.s4 1983009808
    %v1423 = vunpack.c.0.s8 %v1422
    %v1424 = vlaneseq
    %v1425 = vshrl.u32 %v1424, 7
    %v1426 = vsub.s32 %v1423, %v1425
    %v1427 = vrot.slane %v1306, %v1426
    %v1429 = vunpack.c.l.s4 1983009808
    %v1430 = vunpack.c.0.s8 %v1429
    %v1431 = vlaneseq
    %v1432 = vshrl.u32 %v1431, 7
    %v1433 = vsub.s32 %v1430, %v1432
    %v1434 = vrot.slane %v1420, %v1433
    %v1435 = vcombine.high %v1427, %v1427
    %v1436 = vcombine.high %v1434, %v1434
    %v1437 = vcombine.high %v1309, %v1309
    %v1439 = vunpack.c.l.s4 1983009808
    %v1440 = vunpack.c.0.s8 %v1439
    %v1441 = vlaneseq
    %v1442 = vshrl.u32 %v1441, 7
    %v1443 = vsub.s32 %v1440, %v1442
    %v1444 = vrot.slane %v1309, %v1443
    %v1446 = vunpack.c.l.s4 1983009808
    %v1447 = vunpack.c.0.s8 %v1446
    %v1448 = vlaneseq
    %v1449 = vshrl.u32 %v1448, 7
    %v1450 = vsub.s32 %v1447, %v1449
    %v1451 = vrot.slane %v1437, %v1450
    %v1452 = vcombine.high %v1444, %v1444
    %v1453 = vcombine.high %v1451, %v1451
    %v1454 = vcombine.high %v1314, %v1314
    %v1456 = vunpack.c.l.s4 1983009808
    %v1457 = vunpack.c.0.s8 %v1456
    %v1458 = vlaneseq
    %v1459 = vshrl.u32 %v1458, 7
    %v1460 = vsub.s32 %v1457, %v1459
    %v1461 = vrot.slane %v1314, %v1460
    %v1463 = vunpack.c.l.s4 1983009808
    %v1464 = vunpack.c.0.s8 %v1463
    %v1465 = vlaneseq
    %v1466 = vshrl.u32 %v1465, 7
    %v1467 = vsub.s32 %v1464, %v1466
    %v1468 = vrot.slane %v1454, %v1467
    %v1469 = vcombine.high %v1461, %v1461
    %v1470 = vcombine.high %v1468, %v1468
    %v1471 = vcombine.high %v1317, %v1317
    %v1473 = vunpack.c.l.s4 1983009808
    %v1474 = vunpack.c.0.s8 %v1473
    %v1475 = vlaneseq
    %v1476 = vshrl.u32 %v1475, 7
    %v1477 = vsub.s32 %v1474, %v1476
    %v1478 = vrot.slane %v1317, %v1477
    %v1480 = vunpack.c.l.s4 1983009808
    %v1481 = vunpack.c.0.s8 %v1480
    %v1482 = vlaneseq
    %v1483 = vshrl.u32 %v1482, 7
    %v1484 = vsub.s32 %v1481, %v1483
    %v1485 = vrot.slane %v1471, %v1484
    %v1486 = vcombine.high %v1478, %v1478
    %v1487 = vcombine.high %v1485, %v1485
    %v1488 = vcombine.high %v1322, %v1322
    %v1490 = vunpack.c.l.s4 1983009808
    %v1491 = vunpack.c.0.s8 %v1490
    %v1492 = vlaneseq
    %v1493 = vshrl.u32 %v1492, 7
    %v1494 = vsub.s32 %v1491, %v1493
    %v1495 = vrot.slane %v1322, %v1494
    %v1497 = vunpack.c.l.s4 1983009808
    %v1498 = vunpack.c.0.s8 %v1497
    %v1499 = vlaneseq
    %v1500 = vshrl.u32 %v1499, 7
    %v1501 = vsub.s32 %v1498, %v1500
    %v1502 = vrot.slane %v1488, %v1501
    %v1503 = vcombine.high %v1495, %v1495
    %v1504 = vcombine.high %v1502, %v1502
    %v1505 = vcombine.high %v1325, %v1325
    %v1507 = vunpack.c.l.s4 1983009808
    %v1508 = vunpack.c.0.s8 %v1507
    %v1509 = vlaneseq
    %v1510 = vshrl.u32 %v1509, 7
    %v1511 = vsub.s32 %v1508, %v1510
    %v1512 = vrot.slane %v1325, %v1511
    %v1514 = vunpack.c.l.s4 1983009808
    %v1515 = vunpack.c.0.s8 %v1514
    %v1516 = vlaneseq
    %v1517 = vshrl.u32 %v1516, 7
    %v1518 = vsub.s32 %v1515, %v1517
    %v1519 = vrot.slane %v1505, %v1518
    %v1520 = vcombine.high %v1512, %v1512
    %v1521 = vcombine.high %v1519, %v1519
    %v1522 = vcombine.high %v1330, %v1330
    %v1524 = vunpack.c.l.s4 1983009808
    %v1525 = vunpack.c.0.s8 %v1524
    %v1526 = vlaneseq
    %v1527 = vshrl.u32 %v1526, 7
    %v1528 = vsub.s32 %v1525, %v1527
    %v1529 = vrot.slane %v1330, %v1528
    %v1531 = vunpack.c.l.s4 1983009808
    %v1532 = vunpack.c.0.s8 %v1531
    %v1533 = vlaneseq
    %v1534 = vshrl.u32 %v1533, 7
    %v1535 = vsub.s32 %v1532, %v1534
    %v1536 = vrot.slane %v1522, %v1535
    %v1537 = vcombine.high %v1529, %v1529
    %v1538 = vcombine.high %v1536, %v1536
    %v1539 = vcombine.high %v1333, %v1333
    %v1541 = vunpack.c.l.s4 1983009808
    %v1542 = vunpack.c.0.s8 %v1541
    %v1543 = vlaneseq
    %v1544 = vshrl.u32 %v1543, 7
    %v1545 = vsub.s32 %v1542, %v1544
    %v1546 = vrot.slane %v1333, %v1545
    %v1548 = vunpack.c.l.s4 1983009808
    %v1549 = vunpack.c.0.s8 %v1548
    %v1550 = vlaneseq
    %v1551 = vshrl.u32 %v1550, 7
    %v1552 = vsub.s32 %v1549, %v1551
    %v1553 = vrot.slane %v1539, %v1552
    %v1554 = vcombine.high %v1546, %v1546
    %v1555 = vcombine.high %v1553, %v1553
    %v1556 = vcombine.high %v1338, %v1338
    %v1558 = vunpack.c.l.s4 1983009808
    %v1559 = vunpack.c.0.s8 %v1558
    %v1560 = vlaneseq
    %v1561 = vshrl.u32 %v1560, 7
    %v1562 = vsub.s32 %v1559, %v1561
    %v1563 = vrot.slane %v1338, %v1562
    %v1565 = vunpack.c.l.s4 1983009808
    %v1566 = vunpack.c.0.s8 %v1565
    %v1567 = vlaneseq
    %v1568 = vshrl.u32 %v1567, 7
    %v1569 = vsub.s32 %v1566, %v1568
    %v1570 = vrot.slane %v1556, %v1569
    %v1571 = vcombine.high %v1563, %v1563
    %v1572 = vcombine.high %v1570, %v1570
    %v1573 = vcombine.high %v1341, %v1341
    %v1575 = vunpack.c.l.s4 1983009808
    %v1576 = vunpack.c.0.s8 %v1575
    %v1577 = vlaneseq
    %v1578 = vshrl.u32 %v1577, 7
    %v1579 = vsub.s32 %v1576, %v1578
    %v1580 = vrot.slane %v1341, %v1579
    %v1582 = vunpack.c.l.s4 1983009808
    %v1583 = vunpack.c.0.s8 %v1582
    %v1584 = vlaneseq
    %v1585 = vshrl.u32 %v1584, 7
    %v1586 = vsub.s32 %v1583, %v1585
    %v1587 = vrot.slane %v1573, %v1586
    %v1588 = vcombine.high %v1580, %v1580
    %v1589 = vcombine.high %v1587, %v1587
    %v1590 = vcombine.high %v1346, %v1346
    %v1592 = vunpack.c.l.s4 1983009808
    %v1593 = vunpack.c.0.s8 %v1592
    %v1594 = vlaneseq
    %v1595 = vshrl.u32 %v1594, 7
    %v1596 = vsub.s32 %v1593, %v1595
    %v1597 = vrot.slane %v1346, %v1596
    %v1599 = vunpack.c.l.s4 1983009808
    %v1600 = vunpack.c.0.s8 %v1599
    %v1601 = vlaneseq
    %v1602 = vshrl.u32 %v1601, 7
    %v1603 = vsub.s32 %v1600, %v1602
    %v1604 = vrot.slane %v1590, %v1603
    %v1605 = vcombine.high %v1597, %v1597
    %v1606 = vcombine.high %v1604, %v1604
    %v1607 = vcombine.high %v1349, %v1349
    %v1609 = vunpack.c.l.s4 1983009808
    %v1610 = vunpack.c.0.s8 %v1609
    %v1611 = vlaneseq
    %v1612 = vshrl.u32 %v1611, 7
    %v1613 = vsub.s32 %v1610, %v1612
    %v1614 = vrot.slane %v1349, %v1613
    %v1616 = vunpack.c.l.s4 1983009808
    %v1617 = vunpack.c.0.s8 %v1616
    %v1618 = vlaneseq
    %v1619 = vshrl.u32 %v1618, 7
    %v1620 = vsub.s32 %v1617, %v1619
    %v1621 = vrot.slane %v1607, %v1620
    %v1622 = vcombine.high %v1614, %v1614
    %v1623 = vcombine.high %v1621, %v1621
    %v1624 = vcombine.high %v1354, %v1354
    %v1626 = vunpack.c.l.s4 1983009808
    %v1627 = vunpack.c.0.s8 %v1626
    %v1628 = vlaneseq
    %v1629 = vshrl.u32 %v1628, 7
    %v1630 = vsub.s32 %v1627, %v1629
    %v1631 = vrot.slane %v1354, %v1630
    %v1633 = vunpack.c.l.s4 1983009808
    %v1634 = vunpack.c.0.s8 %v1633
    %v1635 = vlaneseq
    %v1636 = vshrl.u32 %v1635, 7
    %v1637 = vsub.s32 %v1634, %v1636
    %v1638 = vrot.slane %v1624, %v1637
    %v1639 = vcombine.high %v1631, %v1631
    %v1640 = vcombine.high %v1638, %v1638
    %v1641 = vcombine.high %v1357, %v1357
    %v1643 = vunpack.c.l.s4 1983009808
    %v1644 = vunpack.c.0.s8 %v1643
    %v1645 = vlaneseq
    %v1646 = vshrl.u32 %v1645, 7
    %v1647 = vsub.s32 %v1644, %v1646
    %v1648 = vrot.slane %v1357, %v1647
    %v1650 = vunpack.c.l.s4 1983009808
    %v1651 = vunpack.c.0.s8 %v1650
    %v1652 = vlaneseq
    %v1653 = vshrl.u32 %v1652, 7
    %v1654 = vsub.s32 %v1651, %v1653
    %v1655 = vrot.slane %v1641, %v1654
    %v1656 = vcombine.high %v1648, %v1648
    %v1657 = vcombine.high %v1655, %v1655
    %v1658 = vcombine.high %v1362, %v1362
    %v1660 = vunpack.c.l.s4 1983009808
    %v1661 = vunpack.c.0.s8 %v1660
    %v1662 = vlaneseq
    %v1663 = vshrl.u32 %v1662, 7
    %v1664 = vsub.s32 %v1661, %v1663
    %v1665 = vrot.slane %v1362, %v1664
    %v1667 = vunpack.c.l.s4 1983009808
    %v1668 = vunpack.c.0.s8 %v1667
    %v1669 = vlaneseq
    %v1670 = vshrl.u32 %v1669, 7
    %v1671 = vsub.s32 %v1668, %v1670
    %v1672 = vrot.slane %v1658, %v1671
    %v1673 = vcombine.high %v1665, %v1665
    %v1674 = vcombine.high %v1672, %v1672
    %v1675 = vcombine.high %v1365, %v1365
    %v1677 = vunpack.c.l.s4 1983009808
    %v1678 = vunpack.c.0.s8 %v1677
    %v1679 = vlaneseq
    %v1680 = vshrl.u32 %v1679, 7
    %v1681 = vsub.s32 %v1678, %v1680
    %v1682 = vrot.slane %v1365, %v1681
    %v1684 = vunpack.c.l.s4 1983009808
    %v1685 = vunpack.c.0.s8 %v1684
    %v1686 = vlaneseq
    %v1687 = vshrl.u32 %v1686, 7
    %v1688 = vsub.s32 %v1685, %v1687
    %v1689 = vrot.slane %v1675, %v1688
    %v1690 = vcombine.high %v1682, %v1682
    %v1691 = vcombine.high %v1689, %v1689
    %v1692 = vcombine.low %v1393, %v1401
    %v1693 = vcombine.low %v1400, %v1402
    %v1695 = vunpack.c.l.s4 1983009808
    %v1696 = vunpack.c.0.s8 %v1695
    %v1697 = vlaneseq
    %v1698 = vshrl.u32 %v1697, 7
    %v1699 = vsub.s32 %v1696, %v1698
    %v1700 = vrot.slane %v1692, %v1699
    %v1702 = vunpack.c.l.s4 1983009808
    %v1703 = vunpack.c.0.s8 %v1702
    %v1704 = vlaneseq
    %v1705 = vshrl.u32 %v1704, 7
    %v1706 = vsub.s32 %v1703, %v1705
    %v1707 = vrot.slane %v1693, %v1706
    %v1708 = vcombine.low %v1700, %v1707
    %v1709 = vcombine.low %v1410, %v1418
    %v1710 = vcombine.low %v1417, %v1419
    %v1712 = vunpack.c.l.s4 1983009808
    %v1713 = vunpack.c.0.s8 %v1712
    %v1714 = vlaneseq
    %v1715 = vshrl.u32 %v1714, 7
    %v1716 = vsub.s32 %v1713, %v1715
    %v1717 = vrot.slane %v1709, %v1716
    %v1719 = vunpack.c.l.s4 1983009808
    %v1720 = vunpack.c.0.s8 %v1719
    %v1721 = vlaneseq
    %v1722 = vshrl.u32 %v1721, 7
    %v1723 = vsub.s32 %v1720, %v1722
    %v1724 = vrot.slane %v1710, %v1723
    %v1725 = vcombine.low %v1717, %v1724
    %v1726 = vcombine.low %v1435, %v1434
    %v1727 = vcombine.low %v1436, %v1444
    %v1729 = vunpack.c.l.s4 1983009808
    %v1730 = vunpack.c.0.s8 %v1729
    %v1731 = vlaneseq
    %v1732 = vshrl.u32 %v1731, 7
    %v1733 = vsub.s32 %v1730, %v1732
    %v1734 = vrot.slane %v1726, %v1733
    %v1736 = vunpack.c.l.s4 1983009808
    %v1737 = vunpack.c.0.s8 %v1736
    %v1738 = vlaneseq
    %v1739 = vshrl.u32 %v1738, 7
    %v1740 = vsub.s32 %v1737, %v1739
    %v1741 = vrot.slane %v1727, %v1740
    %v1742 = vcombine.low %v1734, %v1741
    %v1743 = vcombine.low %v1452, %v1451
    %v1744 = vcombine.low %v1453, %v1461
    %v1746 = vunpack.c.l.s4 1983009808
    %v1747 = vunpack.c.0.s8 %v1746
    %v1748 = vlaneseq
    %v1749 = vshrl.u32 %v1748, 7
    %v1750 = vsub.s32 %v1747, %v1749
    %v1751 = vrot.slane %v1743, %v1750
    %v1753 = vunpack.c.l.s4 1983009808
    %v1754 = vunpack.c.0.s8 %v1753
    %v1755 = vlaneseq
    %v1756 = vshrl.u32 %v1755, 7
    %v1757 = vsub.s32 %v1754, %v1756
    %v1758 = vrot.slane %v1744, %v1757
    %v1759 = vcombine.low %v1751, %v1758
    %v1760 = vcombine.low %v1468, %v1470
    %v1761 = vcombine.low %v1478, %v1486
    %v1763 = vunpack.c.l.s4 1983009808
    %v1764 = vunpack.c.0.s8 %v1763
    %v1765 = vlaneseq
    %v1766 = vshrl.u32 %v1765, 7
    %v1767 = vsub.s32 %v1764, %v1766
    %v1768 = vrot.slane %v1760, %v1767
    %v1770 = vunpack.c.l.s4 1983009808
    %v1771 = vunpack.c.0.s8 %v1770
    %v1772 = vlaneseq
    %v1773 = vshrl.u32 %v1772, 7
    %v1774 = vsub.s32 %v1771, %v1773
    %v1775 = vrot.slane %v1761, %v1774
    %v1776 = vcombine.low %v1768, %v1775
    %v1777 = vcombine.low %v1485, %v1487
    %v1778 = vcombine.low %v1495, %v1503
    %v1780 = vunpack.c.l.s4 1983009808
    %v1781 = vunpack.c.0.s8 %v1780
    %v1782 = vlaneseq
    %v1783 = vshrl.u32 %v1782, 7
    %v1784 = vsub.s32 %v1781, %v1783
    %v1785 = vrot.slane %v1777, %v1784
    %v1787 = vunpack.c.l.s4 1983009808
    %v1788 = vunpack.c.0.s8 %v1787
    %v1789 = vlaneseq
    %v1790 = vshrl.u32 %v1789, 7
    %v1791 = vsub.s32 %v1788, %v1790
    %v1792 = vrot.slane %v1778, %v1791
    %v1793 = vcombine.low %v1785, %v1792
    %v1794 = vcombine.low %v1504, %v1512
    %v1795 = vcombine.low %v1520, %v1519
    %v1797 = vunpack.c.l.s4 1983009808
    %v1798 = vunpack.c.0.s8 %v1797
    %v1799 = vlaneseq
    %v1800 = vshrl.u32 %v1799, 7
    %v1801 = vsub.s32 %v1798, %v1800
    %v1802 = vrot.slane %v1794, %v1801
    %v1804 = vunpack.c.l.s4 1983009808
    %v1805 = vunpack.c.0.s8 %v1804
    %v1806 = vlaneseq
    %v1807 = vshrl.u32 %v1806, 7
    %v1808 = vsub.s32 %v1805, %v1807
    %v1809 = vrot.slane %v1795, %v1808
    %v1810 = vcombine.low %v1802, %v1809
    %v1811 = vcombine.low %v1521, %v1529
    %v1812 = vcombine.low %v1537, %v1536
    %v1814 = vunpack.c.l.s4 1983009808
    %v1815 = vunpack.c.0.s8 %v1814
    %v1816 = vlaneseq
    %v1817 = vshrl.u32 %v1816, 7
    %v1818 = vsub.s32 %v1815, %v1817
    %v1819 = vrot.slane %v1811, %v1818
    %v1821 = vunpack.c.l.s4 1983009808
    %v1822 = vunpack.c.0.s8 %v1821
    %v1823 = vlaneseq
    %v1824 = vshrl.u32 %v1823, 7
    %v1825 = vsub.s32 %v1822, %v1824
    %v1826 = vrot.slane %v1812, %v1825
    %v1827 = vcombine.low %v1819, %v1826
    %v1828 = vcombine.low %v1546, %v1554
    %v1829 = vcombine.low %v1553, %v1555
    %v1831 = vunpack.c.l.s4 1983009808
    %v1832 = vunpack.c.0.s8 %v1831
    %v1833 = vlaneseq
    %v1834 = vshrl.u32 %v1833, 7
    %v1835 = vsub.s32 %v1832, %v1834
    %v1836 = vrot.slane %v1828, %v1835
    %v1838 = vunpack.c.l.s4 1983009808
    %v1839 = vunpack.c.0.s8 %v1838
    %v1840 = vlaneseq
    %v1841 = vshrl.u32 %v1840, 7
    %v1842 = vsub.s32 %v1839, %v1841
    %v1843 = vrot.slane %v1829, %v1842
    %v1844 = vcombine.low %v1836, %v1843
    %v1845 = vcombine.low %v1563, %v1571
    %v1846 = vcombine.low %v1570, %v1572
    %v1848 = vunpack.c.l.s4 1983009808
    %v1849 = vunpack.c.0.s8 %v1848
    %v1850 = vlaneseq
    %v1851 = vshrl.u32 %v1850, 7
    %v1852 = vsub.s32 %v1849, %v1851
    %v1853 = vrot.slane %v1845, %v1852
    %v1855 = vunpack.c.l.s4 1983009808
    %v1856 = vunpack.c.0.s8 %v1855
    %v1857 = vlaneseq
    %v1858 = vshrl.u32 %v1857, 7
    %v1859 = vsub.s32 %v1856, %v1858
    %v1860 = vrot.slane %v1846, %v1859
    %v1861 = vcombine.low %v1853, %v1860
    %v1862 = vcombine.low %v1588, %v1587
    %v1863 = vcombine.low %v1589, %v1597
    %v1865 = vunpack.c.l.s4 1983009808
    %v1866 = vunpack.c.0.s8 %v1865
    %v1867 = vlaneseq
    %v1868 = vshrl.u32 %v1867, 7
    %v1869 = vsub.s32 %v1866, %v1868
    %v1870 = vrot.slane %v1862, %v1869
    %v1872 = vunpack.c.l.s4 1983009808
    %v1873 = vunpack.c.0.s8 %v1872
    %v1874 = vlaneseq
    %v1875 = vshrl.u32 %v1874, 7
    %v1876 = vsub.s32 %v1873, %v1875
    %v1877 = vrot.slane %v1863, %v1876
    %v1878 = vcombine.low %v1870, %v1877
    %v1879 = vcombine.low %v1605, %v1604
    %v1880 = vcombine.low %v1606, %v1614
    %v1882 = vunpack.c.l.s4 1983009808
    %v1883 = vunpack.c.0.s8 %v1882
    %v1884 = vlaneseq
    %v1885 = vshrl.u32 %v1884, 7
    %v1886 = vsub.s32 %v1883, %v1885
    %v1887 = vrot.slane %v1879, %v1886
    %v1889 = vunpack.c.l.s4 1983009808
    %v1890 = vunpack.c.0.s8 %v1889
    %v1891 = vlaneseq
    %v1892 = vshrl.u32 %v1891, 7
    %v1893 = vsub.s32 %v1890, %v1892
    %v1894 = vrot.slane %v1880, %v1893
    %v1895 = vcombine.low %v1887, %v1894
    %v1896 = vcombine.low %v1621, %v1623
    %v1897 = vcombine.low %v1631, %v1639
    %v1899 = vunpack.c.l.s4 1983009808
    %v1900 = vunpack.c.0.s8 %v1899
    %v1901 = vlaneseq
    %v1902 = vshrl.u32 %v1901, 7
    %v1903 = vsub.s32 %v1900, %v1902
    %v1904 = vrot.slane %v1896, %v1903
    %v1906 = vunpack.c.l.s4 1983009808
    %v1907 = vunpack.c.0.s8 %v1906
    %v1908 = vlaneseq
    %v1909 = vshrl.u32 %v1908, 7
    %v1910 = vsub.s32 %v1907, %v1909
    %v1911 = vrot.slane %v1897, %v1910
    %v1912 = vcombine.low %v1904, %v1911
    %v1913 = vcombine.low %v1638, %v1640
    %v1914 = vcombine.low %v1648, %v1656
    %v1916 = vunpack.c.l.s4 1983009808
    %v1917 = vunpack.c.0.s8 %v1916
    %v1918 = vlaneseq
    %v1919 = vshrl.u32 %v1918, 7
    %v1920 = vsub.s32 %v1917, %v1919
    %v1921 = vrot.slane %v1913, %v1920
    %v1923 = vunpack.c.l.s4 1983009808
    %v1924 = vunpack.c.0.s8 %v1923
    %v1925 = vlaneseq
    %v1926 = vshrl.u32 %v1925, 7
    %v1927 = vsub.s32 %v1924, %v1926
    %v1928 = vrot.slane %v1914, %v1927
    %v1929 = vcombine.low %v1921, %v1928
    %v1930 = vcombine.low %v1657, %v1665
    %v1931 = vcombine.low %v1673, %v1672
    %v1933 = vunpack.c.l.s4 1983009808
    %v1934 = vunpack.c.0.s8 %v1933
    %v1935 = vlaneseq
    %v1936 = vshrl.u32 %v1935, 7
    %v1937 = vsub.s32 %v1934, %v1936
    %v1938 = vrot.slane %v1930, %v1937
    %v1940 = vunpack.c.l.s4 1983009808
    %v1941 = vunpack.c.0.s8 %v1940
    %v1942 = vlaneseq
    %v1943 = vshrl.u32 %v1942, 7
    %v1944 = vsub.s32 %v1941, %v1943
    %v1945 = vrot.slane %v1931, %v1944
    %v1946 = vcombine.low %v1938, %v1945
    %v1947 = vcombine.low %v1674, %v1682
    %v1948 = vcombine.low %v1690, %v1689
    %v1950 = vunpack.c.l.s4 1983009808
    %v1951 = vunpack.c.0.s8 %v1950
    %v1952 = vlaneseq
    %v1953 = vshrl.u32 %v1952, 7
    %v1954 = vsub.s32 %v1951, %v1953
    %v1955 = vrot.slane %v1947, %v1954
    %v1957 = vunpack.c.l.s4 1983009808
    %v1958 = vunpack.c.0.s8 %v1957
    %v1959 = vlaneseq
    %v1960 = vshrl.u32 %v1959, 7
    %v1961 = vsub.s32 %v1958, %v1960
    %v1962 = vrot.slane %v1948, %v1961
    %v1963 = vcombine.low %v1955, %v1962
    %vm1980 = vcmask 1046528
    %v1981 = vrot.slane %v1708, 1
    %v1982 = vrot.slane %v1725, 1
    %v1983 = vsel %vm1980, %v1981, %v1982
    %v1984 = vrot.slane %v1742, 1
    %v1985 = vrot.slane %v1759, 1
    %v1986 = vsel %vm1980, %v1984, %v1985
    %v1987 = vrot.slane %v1776, 1
    %v1988 = vrot.slane %v1793, 1
    %v1989 = vsel %vm1980, %v1987, %v1988
    %v1990 = vrot.slane %v1810, 1
    %v1991 = vrot.slane %v1827, 1
    %v1992 = vsel %vm1980, %v1990, %v1991
    %v1993 = vrot.slane %v1844, 1
    %v1994 = vrot.slane %v1861, 1
    %v1995 = vsel %vm1980, %v1993, %v1994
    %v1996 = vrot.slane %v1878, 1
    %v1997 = vrot.slane %v1895, 1
    %v1998 = vsel %vm1980, %v1996, %v1997
    %v1999 = vrot.slane %v1912, 1
    %v2000 = vrot.slane %v1929, 1
    %v2001 = vsel %vm1980, %v1999, %v2000
    %v2002 = vrot.slane %v1946, 1
    %v2003 = vrot.slane %v1963, 1
    %v2004 = vsel %vm1980, %v2002, %v2003
    %2005 = vrot.lane.b32.xlu0 %v1983, 32
    %v2006 = vpop.permute.xlu0 %2005
    %2007 = vrot.lane.b32.xlu0 %v1982, 32
    %v2008 = vpop.permute.xlu0 %2007
    %2009 = vrot.lane.b32.xlu0 %v1986, 32
    %v2010 = vpop.permute.xlu0 %2009
    %2011 = vrot.lane.b32.xlu0 %v1985, 32
    %v2012 = vpop.permute.xlu0 %2011
    %2013 = vrot.lane.b32.xlu0 %v1989, 32
    %v2014 = vpop.permute.xlu0 %2013
    %2015 = vrot.lane.b32.xlu0 %v1988, 32
    %v2016 = vpop.permute.xlu0 %2015
    %2017 = vrot.lane.b32.xlu0 %v1992, 32
    %v2018 = vpop.permute.xlu0 %2017
    %2019 = vrot.lane.b32.xlu0 %v1991, 32
    %v2020 = vpop.permute.xlu0 %2019
    %2021 = vrot.lane.b32.xlu0 %v1995, 32
    %v2022 = vpop.permute.xlu0 %2021
    %2023 = vrot.lane.b32.xlu0 %v1994, 32
    %v2024 = vpop.permute.xlu0 %2023
    %2025 = vrot.lane.b32.xlu0 %v1998, 32
    %v2026 = vpop.permute.xlu0 %2025
    %2027 = vrot.lane.b32.xlu0 %v1997, 32
    %v2028 = vpop.permute.xlu0 %2027
    %2029 = vrot.lane.b32.xlu0 %v2001, 32
    %v2030 = vpop.permute.xlu0 %2029
    %2031 = vrot.lane.b32.xlu0 %v2000, 32
    %v2032 = vpop.permute.xlu0 %2031
    %2033 = vrot.lane.b32.xlu0 %v2004, 32
    %v2034 = vpop.permute.xlu0 %2033
    %2035 = vrot.lane.b32.xlu0 %v2003, 32
    %v2036 = vpop.permute.xlu0 %2035
    %v2053 = vcombine.low %v1401, %v1400
    %v2054 = vcombine.low %v1402, %v1410
    %v2056 = vunpack.c.l.s4 1983009808
    %v2057 = vunpack.c.0.s8 %v2056
    %v2058 = vlaneseq
    %v2059 = vshrl.u32 %v2058, 7
    %v2060 = vsub.s32 %v2057, %v2059
    %v2061 = vrot.slane %v2053, %v2060
    %v2063 = vunpack.c.l.s4 1983009808
    %v2064 = vunpack.c.0.s8 %v2063
    %v2065 = vlaneseq
    %v2066 = vshrl.u32 %v2065, 7
    %v2067 = vsub.s32 %v2064, %v2066
    %v2068 = vrot.slane %v2054, %v2067
    %v2069 = vcombine.low %v2061, %v2068
    %v2070 = vcombine.low %v1418, %v1417
    %v2071 = vcombine.low %v1419, %v1427
    %v2073 = vunpack.c.l.s4 1983009808
    %v2074 = vunpack.c.0.s8 %v2073
    %v2075 = vlaneseq
    %v2076 = vshrl.u32 %v2075, 7
    %v2077 = vsub.s32 %v2074, %v2076
    %v2078 = vrot.slane %v2070, %v2077
    %v2080 = vunpack.c.l.s4 1983009808
    %v2081 = vunpack.c.0.s8 %v2080
    %v2082 = vlaneseq
    %v2083 = vshrl.u32 %v2082, 7
    %v2084 = vsub.s32 %v2081, %v2083
    %v2085 = vrot.slane %v2071, %v2084
    %v2086 = vcombine.low %v2078, %v2085
    %v2087 = vcombine.low %v1434, %v1436
    %v2088 = vcombine.low %v1444, %v1452
    %v2090 = vunpack.c.l.s4 1983009808
    %v2091 = vunpack.c.0.s8 %v2090
    %v2092 = vlaneseq
    %v2093 = vshrl.u32 %v2092, 7
    %v2094 = vsub.s32 %v2091, %v2093
    %v2095 = vrot.slane %v2087, %v2094
    %v2097 = vunpack.c.l.s4 1983009808
    %v2098 = vunpack.c.0.s8 %v2097
    %v2099 = vlaneseq
    %v2100 = vshrl.u32 %v2099, 7
    %v2101 = vsub.s32 %v2098, %v2100
    %v2102 = vrot.slane %v2088, %v2101
    %v2103 = vcombine.low %v2095, %v2102
    %v2104 = vcombine.low %v1451, %v1453
    %v2105 = vcombine.low %v1461, %v1469
    %v2107 = vunpack.c.l.s4 1983009808
    %v2108 = vunpack.c.0.s8 %v2107
    %v2109 = vlaneseq
    %v2110 = vshrl.u32 %v2109, 7
    %v2111 = vsub.s32 %v2108, %v2110
    %v2112 = vrot.slane %v2104, %v2111
    %v2114 = vunpack.c.l.s4 1983009808
    %v2115 = vunpack.c.0.s8 %v2114
    %v2116 = vlaneseq
    %v2117 = vshrl.u32 %v2116, 7
    %v2118 = vsub.s32 %v2115, %v2117
    %v2119 = vrot.slane %v2105, %v2118
    %v2120 = vcombine.low %v2112, %v2119
    %v2121 = vcombine.low %v1470, %v1478
    %v2122 = vcombine.low %v1486, %v1485
    %v2124 = vunpack.c.l.s4 1983009808
    %v2125 = vunpack.c.0.s8 %v2124
    %v2126 = vlaneseq
    %v2127 = vshrl.u32 %v2126, 7
    %v2128 = vsub.s32 %v2125, %v2127
    %v2129 = vrot.slane %v2121, %v2128
    %v2131 = vunpack.c.l.s4 1983009808
    %v2132 = vunpack.c.0.s8 %v2131
    %v2133 = vlaneseq
    %v2134 = vshrl.u32 %v2133, 7
    %v2135 = vsub.s32 %v2132, %v2134
    %v2136 = vrot.slane %v2122, %v2135
    %v2137 = vcombine.low %v2129, %v2136
    %v2138 = vcombine.low %v1487, %v1495
    %v2139 = vcombine.low %v1503, %v1502
    %v2141 = vunpack.c.l.s4 1983009808
    %v2142 = vunpack.c.0.s8 %v2141
    %v2143 = vlaneseq
    %v2144 = vshrl.u32 %v2143, 7
    %v2145 = vsub.s32 %v2142, %v2144
    %v2146 = vrot.slane %v2138, %v2145
    %v2148 = vunpack.c.l.s4 1983009808
    %v2149 = vunpack.c.0.s8 %v2148
    %v2150 = vlaneseq
    %v2151 = vshrl.u32 %v2150, 7
    %v2152 = vsub.s32 %v2149, %v2151
    %v2153 = vrot.slane %v2139, %v2152
    %v2154 = vcombine.low %v2146, %v2153
    %v2155 = vcombine.low %v1512, %v1520
    %v2156 = vcombine.low %v1519, %v1521
    %v2158 = vunpack.c.l.s4 1983009808
    %v2159 = vunpack.c.0.s8 %v2158
    %v2160 = vlaneseq
    %v2161 = vshrl.u32 %v2160, 7
    %v2162 = vsub.s32 %v2159, %v2161
    %v2163 = vrot.slane %v2155, %v2162
    %v2165 = vunpack.c.l.s4 1983009808
    %v2166 = vunpack.c.0.s8 %v2165
    %v2167 = vlaneseq
    %v2168 = vshrl.u32 %v2167, 7
    %v2169 = vsub.s32 %v2166, %v2168
    %v2170 = vrot.slane %v2156, %v2169
    %v2171 = vcombine.low %v2163, %v2170
    %v2172 = vcombine.low %v1529, %v1537
    %v2173 = vcombine.low %v1536, %v1538
    %v2175 = vunpack.c.l.s4 1983009808
    %v2176 = vunpack.c.0.s8 %v2175
    %v2177 = vlaneseq
    %v2178 = vshrl.u32 %v2177, 7
    %v2179 = vsub.s32 %v2176, %v2178
    %v2180 = vrot.slane %v2172, %v2179
    %v2182 = vunpack.c.l.s4 1983009808
    %v2183 = vunpack.c.0.s8 %v2182
    %v2184 = vlaneseq
    %v2185 = vshrl.u32 %v2184, 7
    %v2186 = vsub.s32 %v2183, %v2185
    %v2187 = vrot.slane %v2173, %v2186
    %v2188 = vcombine.low %v2180, %v2187
    %v2189 = vcombine.low %v1554, %v1553
    %v2190 = vcombine.low %v1555, %v1563
    %v2192 = vunpack.c.l.s4 1983009808
    %v2193 = vunpack.c.0.s8 %v2192
    %v2194 = vlaneseq
    %v2195 = vshrl.u32 %v2194, 7
    %v2196 = vsub.s32 %v2193, %v2195
    %v2197 = vrot.slane %v2189, %v2196
    %v2199 = vunpack.c.l.s4 1983009808
    %v2200 = vunpack.c.0.s8 %v2199
    %v2201 = vlaneseq
    %v2202 = vshrl.u32 %v2201, 7
    %v2203 = vsub.s32 %v2200, %v2202
    %v2204 = vrot.slane %v2190, %v2203
    %v2205 = vcombine.low %v2197, %v2204
    %v2206 = vcombine.low %v1571, %v1570
    %v2207 = vcombine.low %v1572, %v1580
    %v2209 = vunpack.c.l.s4 1983009808
    %v2210 = vunpack.c.0.s8 %v2209
    %v2211 = vlaneseq
    %v2212 = vshrl.u32 %v2211, 7
    %v2213 = vsub.s32 %v2210, %v2212
    %v2214 = vrot.slane %v2206, %v2213
    %v2216 = vunpack.c.l.s4 1983009808
    %v2217 = vunpack.c.0.s8 %v2216
    %v2218 = vlaneseq
    %v2219 = vshrl.u32 %v2218, 7
    %v2220 = vsub.s32 %v2217, %v2219
    %v2221 = vrot.slane %v2207, %v2220
    %v2222 = vcombine.low %v2214, %v2221
    %v2223 = vcombine.low %v1587, %v1589
    %v2224 = vcombine.low %v1597, %v1605
    %v2226 = vunpack.c.l.s4 1983009808
    %v2227 = vunpack.c.0.s8 %v2226
    %v2228 = vlaneseq
    %v2229 = vshrl.u32 %v2228, 7
    %v2230 = vsub.s32 %v2227, %v2229
    %v2231 = vrot.slane %v2223, %v2230
    %v2233 = vunpack.c.l.s4 1983009808
    %v2234 = vunpack.c.0.s8 %v2233
    %v2235 = vlaneseq
    %v2236 = vshrl.u32 %v2235, 7
    %v2237 = vsub.s32 %v2234, %v2236
    %v2238 = vrot.slane %v2224, %v2237
    %v2239 = vcombine.low %v2231, %v2238
    %v2240 = vcombine.low %v1604, %v1606
    %v2241 = vcombine.low %v1614, %v1622
    %v2243 = vunpack.c.l.s4 1983009808
    %v2244 = vunpack.c.0.s8 %v2243
    %v2245 = vlaneseq
    %v2246 = vshrl.u32 %v2245, 7
    %v2247 = vsub.s32 %v2244, %v2246
    %v2248 = vrot.slane %v2240, %v2247
    %v2250 = vunpack.c.l.s4 1983009808
    %v2251 = vunpack.c.0.s8 %v2250
    %v2252 = vlaneseq
    %v2253 = vshrl.u32 %v2252, 7
    %v2254 = vsub.s32 %v2251, %v2253
    %v2255 = vrot.slane %v2241, %v2254
    %v2256 = vcombine.low %v2248, %v2255
    %v2257 = vcombine.low %v1623, %v1631
    %v2258 = vcombine.low %v1639, %v1638
    %v2260 = vunpack.c.l.s4 1983009808
    %v2261 = vunpack.c.0.s8 %v2260
    %v2262 = vlaneseq
    %v2263 = vshrl.u32 %v2262, 7
    %v2264 = vsub.s32 %v2261, %v2263
    %v2265 = vrot.slane %v2257, %v2264
    %v2267 = vunpack.c.l.s4 1983009808
    %v2268 = vunpack.c.0.s8 %v2267
    %v2269 = vlaneseq
    %v2270 = vshrl.u32 %v2269, 7
    %v2271 = vsub.s32 %v2268, %v2270
    %v2272 = vrot.slane %v2258, %v2271
    %v2273 = vcombine.low %v2265, %v2272
    %v2274 = vcombine.low %v1640, %v1648
    %v2275 = vcombine.low %v1656, %v1655
    %v2277 = vunpack.c.l.s4 1983009808
    %v2278 = vunpack.c.0.s8 %v2277
    %v2279 = vlaneseq
    %v2280 = vshrl.u32 %v2279, 7
    %v2281 = vsub.s32 %v2278, %v2280
    %v2282 = vrot.slane %v2274, %v2281
    %v2284 = vunpack.c.l.s4 1983009808
    %v2285 = vunpack.c.0.s8 %v2284
    %v2286 = vlaneseq
    %v2287 = vshrl.u32 %v2286, 7
    %v2288 = vsub.s32 %v2285, %v2287
    %v2289 = vrot.slane %v2275, %v2288
    %v2290 = vcombine.low %v2282, %v2289
    %v2291 = vcombine.low %v1665, %v1673
    %v2292 = vcombine.low %v1672, %v1674
    %v2294 = vunpack.c.l.s4 1983009808
    %v2295 = vunpack.c.0.s8 %v2294
    %v2296 = vlaneseq
    %v2297 = vshrl.u32 %v2296, 7
    %v2298 = vsub.s32 %v2295, %v2297
    %v2299 = vrot.slane %v2291, %v2298
    %v2301 = vunpack.c.l.s4 1983009808
    %v2302 = vunpack.c.0.s8 %v2301
    %v2303 = vlaneseq
    %v2304 = vshrl.u32 %v2303, 7
    %v2305 = vsub.s32 %v2302, %v2304
    %v2306 = vrot.slane %v2292, %v2305
    %v2307 = vcombine.low %v2299, %v2306
    %v2308 = vcombine.low %v1682, %v1690
    %v2309 = vcombine.low %v1689, %v1691
    %v2311 = vunpack.c.l.s4 1983009808
    %v2312 = vunpack.c.0.s8 %v2311
    %v2313 = vlaneseq
    %v2314 = vshrl.u32 %v2313, 7
    %v2315 = vsub.s32 %v2312, %v2314
    %v2316 = vrot.slane %v2308, %v2315
    %v2318 = vunpack.c.l.s4 1983009808
    %v2319 = vunpack.c.0.s8 %v2318
    %v2320 = vlaneseq
    %v2321 = vshrl.u32 %v2320, 7
    %v2322 = vsub.s32 %v2319, %v2321
    %v2323 = vrot.slane %v2309, %v2322
    %v2324 = vcombine.low %v2316, %v2323
    %2325 = vrot.lane.b32.xlu0 %v2069, 64
    %v2326 = vpop.permute.xlu0 %2325
    %2327 = vrot.lane.b32.xlu0 %v2086, 64
    %v2328 = vpop.permute.xlu0 %2327
    %2329 = vrot.lane.b32.xlu0 %v2103, 64
    %v2330 = vpop.permute.xlu0 %2329
    %2331 = vrot.lane.b32.xlu0 %v2120, 64
    %v2332 = vpop.permute.xlu0 %2331
    %2333 = vrot.lane.b32.xlu0 %v2137, 64
    %v2334 = vpop.permute.xlu0 %2333
    %2335 = vrot.lane.b32.xlu0 %v2154, 64
    %v2336 = vpop.permute.xlu0 %2335
    %2337 = vrot.lane.b32.xlu0 %v2171, 64
    %v2338 = vpop.permute.xlu0 %2337
    %2339 = vrot.lane.b32.xlu0 %v2188, 64
    %v2340 = vpop.permute.xlu0 %2339
    %2341 = vrot.lane.b32.xlu0 %v2205, 64
    %v2342 = vpop.permute.xlu0 %2341
    %2343 = vrot.lane.b32.xlu0 %v2222, 64
    %v2344 = vpop.permute.xlu0 %2343
    %2345 = vrot.lane.b32.xlu0 %v2239, 64
    %v2346 = vpop.permute.xlu0 %2345
    %2347 = vrot.lane.b32.xlu0 %v2256, 64
    %v2348 = vpop.permute.xlu0 %2347
    %2349 = vrot.lane.b32.xlu0 %v2273, 64
    %v2350 = vpop.permute.xlu0 %2349
    %2351 = vrot.lane.b32.xlu0 %v2290, 64
    %v2352 = vpop.permute.xlu0 %2351
    %2353 = vrot.lane.b32.xlu0 %v2307, 64
    %v2354 = vpop.permute.xlu0 %2353
    %2355 = vrot.lane.b32.xlu0 %v2324, 64
    %v2356 = vpop.permute.xlu0 %2355
    %v2373 = vrot.slane %v2069, 1
    %v2374 = vrot.slane %v2086, 1
    %v2375 = vsel %vm1980, %v2373, %v2374
    %v2376 = vrot.slane %v2103, 1
    %v2377 = vrot.slane %v2120, 1
    %v2378 = vsel %vm1980, %v2376, %v2377
    %v2379 = vrot.slane %v2137, 1
    %v2380 = vrot.slane %v2154, 1
    %v2381 = vsel %vm1980, %v2379, %v2380
    %v2382 = vrot.slane %v2171, 1
    %v2383 = vrot.slane %v2188, 1
    %v2384 = vsel %vm1980, %v2382, %v2383
    %v2385 = vrot.slane %v2205, 1
    %v2386 = vrot.slane %v2222, 1
    %v2387 = vsel %vm1980, %v2385, %v2386
    %v2388 = vrot.slane %v2239, 1
    %v2389 = vrot.slane %v2256, 1
    %v2390 = vsel %vm1980, %v2388, %v2389
    %v2391 = vrot.slane %v2273, 1
    %v2392 = vrot.slane %v2290, 1
    %v2393 = vsel %vm1980, %v2391, %v2392
    %v2394 = vrot.slane %v2307, 1
    %v2395 = vrot.slane %v2324, 1
    %v2396 = vsel %vm1980, %v2394, %v2395
    %2397 = vrot.lane.b32.xlu0 %v2375, 96
    %v2398 = vpop.permute.xlu0 %2397
    %2399 = vrot.lane.b32.xlu0 %v2374, 96
    %v2400 = vpop.permute.xlu0 %2399
    %2401 = vrot.lane.b32.xlu0 %v2378, 96
    %v2402 = vpop.permute.xlu0 %2401
    %2403 = vrot.lane.b32.xlu0 %v2377, 96
    %v2404 = vpop.permute.xlu0 %2403
    %2405 = vrot.lane.b32.xlu0 %v2381, 96
    %v2406 = vpop.permute.xlu0 %2405
    %2407 = vrot.lane.b32.xlu0 %v2380, 96
    %v2408 = vpop.permute.xlu0 %2407
    %2409 = vrot.lane.b32.xlu0 %v2384, 96
    %v2410 = vpop.permute.xlu0 %2409
    %2411 = vrot.lane.b32.xlu0 %v2383, 96
    %v2412 = vpop.permute.xlu0 %2411
    %2413 = vrot.lane.b32.xlu0 %v2387, 96
    %v2414 = vpop.permute.xlu0 %2413
    %2415 = vrot.lane.b32.xlu0 %v2386, 96
    %v2416 = vpop.permute.xlu0 %2415
    %2417 = vrot.lane.b32.xlu0 %v2390, 96
    %v2418 = vpop.permute.xlu0 %2417
    %2419 = vrot.lane.b32.xlu0 %v2389, 96
    %v2420 = vpop.permute.xlu0 %2419
    %2421 = vrot.lane.b32.xlu0 %v2393, 96
    %v2422 = vpop.permute.xlu0 %2421
    %2423 = vrot.lane.b32.xlu0 %v2392, 96
    %v2424 = vpop.permute.xlu0 %2423
    %2425 = vrot.lane.b32.xlu0 %v2396, 96
    %v2426 = vpop.permute.xlu0 %2425
    %2427 = vrot.lane.b32.xlu0 %v2395, 96
    %v2428 = vpop.permute.xlu0 %2427
    %vm2445 = vcmask 261120
    %v2446 = vsel %vm2445, %v1708, %v2006
    %v2447 = vsel %vm2445, %v1725, %v2008
    %v2448 = vsel %vm2445, %v1742, %v2010
    %v2449 = vsel %vm2445, %v1759, %v2012
    %v2450 = vsel %vm2445, %v1776, %v2014
    %v2451 = vsel %vm2445, %v1793, %v2016
    %v2452 = vsel %vm2445, %v1810, %v2018
    %v2453 = vsel %vm2445, %v1827, %v2020
    %v2454 = vsel %vm2445, %v1844, %v2022
    %v2455 = vsel %vm2445, %v1861, %v2024
    %v2456 = vsel %vm2445, %v1878, %v2026
    %v2457 = vsel %vm2445, %v1895, %v2028
    %v2458 = vsel %vm2445, %v1912, %v2030
    %v2459 = vsel %vm2445, %v1929, %v2032
    %v2460 = vsel %vm2445, %v1946, %v2034
    %v2461 = vsel %vm2445, %v1963, %v2036
    %vm2462 = vcmask 523264
    %v2463 = vsel %vm2462, %v2446, %v2326
    %v2464 = vsel %vm2462, %v2447, %v2328
    %v2465 = vsel %vm2462, %v2448, %v2330
    %v2466 = vsel %vm2462, %v2449, %v2332
    %v2467 = vsel %vm2462, %v2450, %v2334
    %v2468 = vsel %vm2462, %v2451, %v2336
    %v2469 = vsel %vm2462, %v2452, %v2338
    %v2470 = vsel %vm2462, %v2453, %v2340
    %v2471 = vsel %vm2462, %v2454, %v2342
    %v2472 = vsel %vm2462, %v2455, %v2344
    %v2473 = vsel %vm2462, %v2456, %v2346
    %v2474 = vsel %vm2462, %v2457, %v2348
    %v2475 = vsel %vm2462, %v2458, %v2350
    %v2476 = vsel %vm2462, %v2459, %v2352
    %v2477 = vsel %vm2462, %v2460, %v2354
    %v2478 = vsel %vm2462, %v2461, %v2356
    %vm2479 = vcmask 785408
    %v2480 = vsel %vm2479, %v2463, %v2398
    %v2481 = vsel %vm2479, %v2464, %v2400
    %v2482 = vsel %vm2479, %v2465, %v2402
    %v2483 = vsel %vm2479, %v2466, %v2404
    %v2484 = vsel %vm2479, %v2467, %v2406
    %v2485 = vsel %vm2479, %v2468, %v2408
    %v2486 = vsel %vm2479, %v2469, %v2410
    %v2487 = vsel %vm2479, %v2470, %v2412
    %v2488 = vsel %vm2479, %v2471, %v2414
    %v2489 = vsel %vm2479, %v2472, %v2416
    %v2490 = vsel %vm2479, %v2473, %v2418
    %v2491 = vsel %vm2479, %v2474, %v2420
    %v2492 = vsel %vm2479, %v2475, %v2422
    %v2493 = vsel %vm2479, %v2476, %v2424
    %v2494 = vsel %vm2479, %v2477, %v2426
    %v2495 = vsel %vm2479, %v2478, %v2428
    %v2496 = vpack.c.bf16 %v2481, %v2480
    %v2497 = vpack.c.bf16 %v2483, %v2482
    %v2498 = vpack.c.bf16 %v2485, %v2484
    %v2499 = vpack.c.bf16 %v2487, %v2486
    %v2500 = vpack.c.bf16 %v2489, %v2488
    %v2501 = vpack.c.bf16 %v2491, %v2490
    %v2502 = vpack.c.bf16 %v2493, %v2492
    %v2503 = vpack.c.bf16 %v2495, %v2494
    %v2504 = vld [vmem:[%s2] sm:$0xf]
    %v2505 = vld [vmem:[%s2 + $0x4] sm:$0xf]
    %v2506 = vld [vmem:[%s2 + $0x8] sm:$0xf]
    %v2507 = vld [vmem:[%s2 + $0xc] sm:$0xf]
    %v2508 = vld [vmem:[%s2 + $0x10] sm:$0xf]
    %v2509 = vld [vmem:[%s2 + $0x14] sm:$0xf]
    %v2510 = vld [vmem:[%s2 + $0x18] sm:$0xf]
    %v2511 = vld [vmem:[%s2 + $0x1c] sm:$0xf]
    %v2512 = vld [vmem:[%s2 + $0x20] sm:$0xf]
    %v2513 = vld [vmem:[%s2 + $0x24] sm:$0xf]
    %v2514 = vld [vmem:[%s2 + $0x28] sm:$0xf]
    %v2515 = vld [vmem:[%s2 + $0x2c] sm:$0xf]
    %v2516 = vld [vmem:[%s2 + $0x30] sm:$0xf]
    %v2517 = vld [vmem:[%s2 + $0x34] sm:$0xf]
    %v2518 = vld [vmem:[%s2 + $0x38] sm:$0xf]
    %v2519 = vld [vmem:[%s2 + $0x3c] sm:$0xf]
    %v2520 = vld [vmem:[%s3] sm:$0x1]
    %v2522 = vlaneseq
    %v2523 = vshrl.u32 %v2522, 7
    %v2524 = vsub.s32 0, %v2523
    %v2525 = vrot.slane %v2520, %v2524
    %v2534 = vcombine.high %v2496, %v2496
    %v2536 = vunpack.c.l.s4 1966171168
    %v2537 = vunpack.c.0.s8 %v2536
    %v2538 = vlaneseq
    %v2539 = vshrl.u32 %v2538, 7
    %v2540 = vsub.s32 %v2537, %v2539
    %v2541 = vrot.slane %v2496, %v2540
    %v2543 = vunpack.c.l.s4 1966171168
    %v2544 = vunpack.c.0.s8 %v2543
    %v2545 = vlaneseq
    %v2546 = vshrl.u32 %v2545, 7
    %v2547 = vsub.s32 %v2544, %v2546
    %v2548 = vrot.slane %v2534, %v2547
    %v2549 = vcombine.high %v2541, %v2541
    %v2550 = vcombine.high %v2548, %v2548
    %v2552 = vunpack.c.l.s4 1966171168
    %v2553 = vunpack.c.0.s8 %v2552
    %v2554 = vlaneseq
    %v2555 = vshrl.u32 %v2554, 7
    %v2556 = vsub.s32 %v2553, %v2555
    %v2557 = vrot.slane %v2541, %v2556
    %v2559 = vunpack.c.l.s4 1966171168
    %v2560 = vunpack.c.0.s8 %v2559
    %v2561 = vlaneseq
    %v2562 = vshrl.u32 %v2561, 7
    %v2563 = vsub.s32 %v2560, %v2562
    %v2564 = vrot.slane %v2548, %v2563
    %v2566 = vunpack.c.l.s4 1966171168
    %v2567 = vunpack.c.0.s8 %v2566
    %v2568 = vlaneseq
    %v2569 = vshrl.u32 %v2568, 7
    %v2570 = vsub.s32 %v2567, %v2569
    %v2571 = vrot.slane %v2549, %v2570
    %v2573 = vunpack.c.l.s4 1966171168
    %v2574 = vunpack.c.0.s8 %v2573
    %v2575 = vlaneseq
    %v2576 = vshrl.u32 %v2575, 7
    %v2577 = vsub.s32 %v2574, %v2576
    %v2578 = vrot.slane %v2550, %v2577
    %v2579 = vcombine.high %v2557, %v2557
    %v2580 = vcombine.high %v2564, %v2564
    %v2581 = vcombine.high %v2571, %v2571
    %v2582 = vcombine.high %v2578, %v2578
    %v2583 = vcombine.high %v2497, %v2497
    %v2585 = vunpack.c.l.s4 1966171168
    %v2586 = vunpack.c.0.s8 %v2585
    %v2587 = vlaneseq
    %v2588 = vshrl.u32 %v2587, 7
    %v2589 = vsub.s32 %v2586, %v2588
    %v2590 = vrot.slane %v2497, %v2589
    %v2592 = vunpack.c.l.s4 1966171168
    %v2593 = vunpack.c.0.s8 %v2592
    %v2594 = vlaneseq
    %v2595 = vshrl.u32 %v2594, 7
    %v2596 = vsub.s32 %v2593, %v2595
    %v2597 = vrot.slane %v2583, %v2596
    %v2598 = vcombine.high %v2590, %v2590
    %v2599 = vcombine.high %v2597, %v2597
    %v2601 = vunpack.c.l.s4 1966171168
    %v2602 = vunpack.c.0.s8 %v2601
    %v2603 = vlaneseq
    %v2604 = vshrl.u32 %v2603, 7
    %v2605 = vsub.s32 %v2602, %v2604
    %v2606 = vrot.slane %v2590, %v2605
    %v2608 = vunpack.c.l.s4 1966171168
    %v2609 = vunpack.c.0.s8 %v2608
    %v2610 = vlaneseq
    %v2611 = vshrl.u32 %v2610, 7
    %v2612 = vsub.s32 %v2609, %v2611
    %v2613 = vrot.slane %v2597, %v2612
    %v2615 = vunpack.c.l.s4 1966171168
    %v2616 = vunpack.c.0.s8 %v2615
    %v2617 = vlaneseq
    %v2618 = vshrl.u32 %v2617, 7
    %v2619 = vsub.s32 %v2616, %v2618
    %v2620 = vrot.slane %v2598, %v2619
    %v2622 = vunpack.c.l.s4 1966171168
    %v2623 = vunpack.c.0.s8 %v2622
    %v2624 = vlaneseq
    %v2625 = vshrl.u32 %v2624, 7
    %v2626 = vsub.s32 %v2623, %v2625
    %v2627 = vrot.slane %v2599, %v2626
    %v2628 = vcombine.high %v2606, %v2606
    %v2629 = vcombine.high %v2613, %v2613
    %v2630 = vcombine.high %v2620, %v2620
    %v2631 = vcombine.high %v2627, %v2627
    %v2632 = vcombine.high %v2498, %v2498
    %v2634 = vunpack.c.l.s4 1966171168
    %v2635 = vunpack.c.0.s8 %v2634
    %v2636 = vlaneseq
    %v2637 = vshrl.u32 %v2636, 7
    %v2638 = vsub.s32 %v2635, %v2637
    %v2639 = vrot.slane %v2498, %v2638
    %v2641 = vunpack.c.l.s4 1966171168
    %v2642 = vunpack.c.0.s8 %v2641
    %v2643 = vlaneseq
    %v2644 = vshrl.u32 %v2643, 7
    %v2645 = vsub.s32 %v2642, %v2644
    %v2646 = vrot.slane %v2632, %v2645
    %v2647 = vcombine.high %v2639, %v2639
    %v2648 = vcombine.high %v2646, %v2646
    %v2650 = vunpack.c.l.s4 1966171168
    %v2651 = vunpack.c.0.s8 %v2650
    %v2652 = vlaneseq
    %v2653 = vshrl.u32 %v2652, 7
    %v2654 = vsub.s32 %v2651, %v2653
    %v2655 = vrot.slane %v2639, %v2654
    %v2657 = vunpack.c.l.s4 1966171168
    %v2658 = vunpack.c.0.s8 %v2657
    %v2659 = vlaneseq
    %v2660 = vshrl.u32 %v2659, 7
    %v2661 = vsub.s32 %v2658, %v2660
    %v2662 = vrot.slane %v2646, %v2661
    %v2664 = vunpack.c.l.s4 1966171168
    %v2665 = vunpack.c.0.s8 %v2664
    %v2666 = vlaneseq
    %v2667 = vshrl.u32 %v2666, 7
    %v2668 = vsub.s32 %v2665, %v2667
    %v2669 = vrot.slane %v2647, %v2668
    %v2671 = vunpack.c.l.s4 1966171168
    %v2672 = vunpack.c.0.s8 %v2671
    %v2673 = vlaneseq
    %v2674 = vshrl.u32 %v2673, 7
    %v2675 = vsub.s32 %v2672, %v2674
    %v2676 = vrot.slane %v2648, %v2675
    %v2677 = vcombine.high %v2655, %v2655
    %v2678 = vcombine.high %v2662, %v2662
    %v2679 = vcombine.high %v2669, %v2669
    %v2680 = vcombine.high %v2676, %v2676
    %v2681 = vcombine.high %v2499, %v2499
    %v2683 = vunpack.c.l.s4 1966171168
    %v2684 = vunpack.c.0.s8 %v2683
    %v2685 = vlaneseq
    %v2686 = vshrl.u32 %v2685, 7
    %v2687 = vsub.s32 %v2684, %v2686
    %v2688 = vrot.slane %v2499, %v2687
    %v2690 = vunpack.c.l.s4 1966171168
    %v2691 = vunpack.c.0.s8 %v2690
    %v2692 = vlaneseq
    %v2693 = vshrl.u32 %v2692, 7
    %v2694 = vsub.s32 %v2691, %v2693
    %v2695 = vrot.slane %v2681, %v2694
    %v2696 = vcombine.high %v2688, %v2688
    %v2697 = vcombine.high %v2695, %v2695
    %v2699 = vunpack.c.l.s4 1966171168
    %v2700 = vunpack.c.0.s8 %v2699
    %v2701 = vlaneseq
    %v2702 = vshrl.u32 %v2701, 7
    %v2703 = vsub.s32 %v2700, %v2702
    %v2704 = vrot.slane %v2688, %v2703
    %v2706 = vunpack.c.l.s4 1966171168
    %v2707 = vunpack.c.0.s8 %v2706
    %v2708 = vlaneseq
    %v2709 = vshrl.u32 %v2708, 7
    %v2710 = vsub.s32 %v2707, %v2709
    %v2711 = vrot.slane %v2695, %v2710
    %v2713 = vunpack.c.l.s4 1966171168
    %v2714 = vunpack.c.0.s8 %v2713
    %v2715 = vlaneseq
    %v2716 = vshrl.u32 %v2715, 7
    %v2717 = vsub.s32 %v2714, %v2716
    %v2718 = vrot.slane %v2696, %v2717
    %v2720 = vunpack.c.l.s4 1966171168
    %v2721 = vunpack.c.0.s8 %v2720
    %v2722 = vlaneseq
    %v2723 = vshrl.u32 %v2722, 7
    %v2724 = vsub.s32 %v2721, %v2723
    %v2725 = vrot.slane %v2697, %v2724
    %v2726 = vcombine.high %v2704, %v2704
    %v2727 = vcombine.high %v2711, %v2711
    %v2728 = vcombine.high %v2718, %v2718
    %v2729 = vcombine.high %v2725, %v2725
    %v2730 = vcombine.high %v2500, %v2500
    %v2732 = vunpack.c.l.s4 1966171168
    %v2733 = vunpack.c.0.s8 %v2732
    %v2734 = vlaneseq
    %v2735 = vshrl.u32 %v2734, 7
    %v2736 = vsub.s32 %v2733, %v2735
    %v2737 = vrot.slane %v2500, %v2736
    %v2739 = vunpack.c.l.s4 1966171168
    %v2740 = vunpack.c.0.s8 %v2739
    %v2741 = vlaneseq
    %v2742 = vshrl.u32 %v2741, 7
    %v2743 = vsub.s32 %v2740, %v2742
    %v2744 = vrot.slane %v2730, %v2743
    %v2745 = vcombine.high %v2737, %v2737
    %v2746 = vcombine.high %v2744, %v2744
    %v2748 = vunpack.c.l.s4 1966171168
    %v2749 = vunpack.c.0.s8 %v2748
    %v2750 = vlaneseq
    %v2751 = vshrl.u32 %v2750, 7
    %v2752 = vsub.s32 %v2749, %v2751
    %v2753 = vrot.slane %v2737, %v2752
    %v2755 = vunpack.c.l.s4 1966171168
    %v2756 = vunpack.c.0.s8 %v2755
    %v2757 = vlaneseq
    %v2758 = vshrl.u32 %v2757, 7
    %v2759 = vsub.s32 %v2756, %v2758
    %v2760 = vrot.slane %v2744, %v2759
    %v2762 = vunpack.c.l.s4 1966171168
    %v2763 = vunpack.c.0.s8 %v2762
    %v2764 = vlaneseq
    %v2765 = vshrl.u32 %v2764, 7
    %v2766 = vsub.s32 %v2763, %v2765
    %v2767 = vrot.slane %v2745, %v2766
    %v2769 = vunpack.c.l.s4 1966171168
    %v2770 = vunpack.c.0.s8 %v2769
    %v2771 = vlaneseq
    %v2772 = vshrl.u32 %v2771, 7
    %v2773 = vsub.s32 %v2770, %v2772
    %v2774 = vrot.slane %v2746, %v2773
    %v2775 = vcombine.high %v2753, %v2753
    %v2776 = vcombine.high %v2760, %v2760
    %v2777 = vcombine.high %v2767, %v2767
    %v2778 = vcombine.high %v2774, %v2774
    %v2779 = vcombine.high %v2501, %v2501
    %v2781 = vunpack.c.l.s4 1966171168
    %v2782 = vunpack.c.0.s8 %v2781
    %v2783 = vlaneseq
    %v2784 = vshrl.u32 %v2783, 7
    %v2785 = vsub.s32 %v2782, %v2784
    %v2786 = vrot.slane %v2501, %v2785
    %v2788 = vunpack.c.l.s4 1966171168
    %v2789 = vunpack.c.0.s8 %v2788
    %v2790 = vlaneseq
    %v2791 = vshrl.u32 %v2790, 7
    %v2792 = vsub.s32 %v2789, %v2791
    %v2793 = vrot.slane %v2779, %v2792
    %v2794 = vcombine.high %v2786, %v2786
    %v2795 = vcombine.high %v2793, %v2793
    %v2797 = vunpack.c.l.s4 1966171168
    %v2798 = vunpack.c.0.s8 %v2797
    %v2799 = vlaneseq
    %v2800 = vshrl.u32 %v2799, 7
    %v2801 = vsub.s32 %v2798, %v2800
    %v2802 = vrot.slane %v2786, %v2801
    %v2804 = vunpack.c.l.s4 1966171168
    %v2805 = vunpack.c.0.s8 %v2804
    %v2806 = vlaneseq
    %v2807 = vshrl.u32 %v2806, 7
    %v2808 = vsub.s32 %v2805, %v2807
    %v2809 = vrot.slane %v2793, %v2808
    %v2811 = vunpack.c.l.s4 1966171168
    %v2812 = vunpack.c.0.s8 %v2811
    %v2813 = vlaneseq
    %v2814 = vshrl.u32 %v2813, 7
    %v2815 = vsub.s32 %v2812, %v2814
    %v2816 = vrot.slane %v2794, %v2815
    %v2818 = vunpack.c.l.s4 1966171168
    %v2819 = vunpack.c.0.s8 %v2818
    %v2820 = vlaneseq
    %v2821 = vshrl.u32 %v2820, 7
    %v2822 = vsub.s32 %v2819, %v2821
    %v2823 = vrot.slane %v2795, %v2822
    %v2824 = vcombine.high %v2802, %v2802
    %v2825 = vcombine.high %v2809, %v2809
    %v2826 = vcombine.high %v2816, %v2816
    %v2827 = vcombine.high %v2823, %v2823
    %v2828 = vcombine.high %v2502, %v2502
    %v2830 = vunpack.c.l.s4 1966171168
    %v2831 = vunpack.c.0.s8 %v2830
    %v2832 = vlaneseq
    %v2833 = vshrl.u32 %v2832, 7
    %v2834 = vsub.s32 %v2831, %v2833
    %v2835 = vrot.slane %v2502, %v2834
    %v2837 = vunpack.c.l.s4 1966171168
    %v2838 = vunpack.c.0.s8 %v2837
    %v2839 = vlaneseq
    %v2840 = vshrl.u32 %v2839, 7
    %v2841 = vsub.s32 %v2838, %v2840
    %v2842 = vrot.slane %v2828, %v2841
    %v2843 = vcombine.high %v2835, %v2835
    %v2844 = vcombine.high %v2842, %v2842
    %v2846 = vunpack.c.l.s4 1966171168
    %v2847 = vunpack.c.0.s8 %v2846
    %v2848 = vlaneseq
    %v2849 = vshrl.u32 %v2848, 7
    %v2850 = vsub.s32 %v2847, %v2849
    %v2851 = vrot.slane %v2835, %v2850
    %v2853 = vunpack.c.l.s4 1966171168
    %v2854 = vunpack.c.0.s8 %v2853
    %v2855 = vlaneseq
    %v2856 = vshrl.u32 %v2855, 7
    %v2857 = vsub.s32 %v2854, %v2856
    %v2858 = vrot.slane %v2842, %v2857
    %v2860 = vunpack.c.l.s4 1966171168
    %v2861 = vunpack.c.0.s8 %v2860
    %v2862 = vlaneseq
    %v2863 = vshrl.u32 %v2862, 7
    %v2864 = vsub.s32 %v2861, %v2863
    %v2865 = vrot.slane %v2843, %v2864
    %v2867 = vunpack.c.l.s4 1966171168
    %v2868 = vunpack.c.0.s8 %v2867
    %v2869 = vlaneseq
    %v2870 = vshrl.u32 %v2869, 7
    %v2871 = vsub.s32 %v2868, %v2870
    %v2872 = vrot.slane %v2844, %v2871
    %v2873 = vcombine.high %v2851, %v2851
    %v2874 = vcombine.high %v2858, %v2858
    %v2875 = vcombine.high %v2865, %v2865
    %v2876 = vcombine.high %v2872, %v2872
    %v2877 = vcombine.high %v2503, %v2503
    %v2879 = vunpack.c.l.s4 1966171168
    %v2880 = vunpack.c.0.s8 %v2879
    %v2881 = vlaneseq
    %v2882 = vshrl.u32 %v2881, 7
    %v2883 = vsub.s32 %v2880, %v2882
    %v2884 = vrot.slane %v2503, %v2883
    %v2886 = vunpack.c.l.s4 1966171168
    %v2887 = vunpack.c.0.s8 %v2886
    %v2888 = vlaneseq
    %v2889 = vshrl.u32 %v2888, 7
    %v2890 = vsub.s32 %v2887, %v2889
    %v2891 = vrot.slane %v2877, %v2890
    %v2892 = vcombine.high %v2884, %v2884
    %v2893 = vcombine.high %v2891, %v2891
    %v2895 = vunpack.c.l.s4 1966171168
    %v2896 = vunpack.c.0.s8 %v2895
    %v2897 = vlaneseq
    %v2898 = vshrl.u32 %v2897, 7
    %v2899 = vsub.s32 %v2896, %v2898
    %v2900 = vrot.slane %v2884, %v2899
    %v2902 = vunpack.c.l.s4 1966171168
    %v2903 = vunpack.c.0.s8 %v2902
    %v2904 = vlaneseq
    %v2905 = vshrl.u32 %v2904, 7
    %v2906 = vsub.s32 %v2903, %v2905
    %v2907 = vrot.slane %v2891, %v2906
    %v2909 = vunpack.c.l.s4 1966171168
    %v2910 = vunpack.c.0.s8 %v2909
    %v2911 = vlaneseq
    %v2912 = vshrl.u32 %v2911, 7
    %v2913 = vsub.s32 %v2910, %v2912
    %v2914 = vrot.slane %v2892, %v2913
    %v2916 = vunpack.c.l.s4 1966171168
    %v2917 = vunpack.c.0.s8 %v2916
    %v2918 = vlaneseq
    %v2919 = vshrl.u32 %v2918, 7
    %v2920 = vsub.s32 %v2917, %v2919
    %v2921 = vrot.slane %v2893, %v2920
    %v2922 = vcombine.high %v2900, %v2900
    %v2923 = vcombine.high %v2907, %v2907
    %v2924 = vcombine.high %v2914, %v2914
    %v2925 = vcombine.high %v2921, %v2921
    %v2926 = vunpack.i.l.s16 %v2557
    %v2927 = vunpack.i.h.s16 %v2557
    %v2928 = vunpack.i.l.s16 %v2571
    %v2929 = vunpack.i.h.s16 %v2571
    %v2930 = vunpack.i.l.s16 %v2579
    %v2931 = vunpack.i.h.s16 %v2579
    %v2932 = vunpack.i.l.s16 %v2581
    %v2933 = vunpack.i.h.s16 %v2581
    %v2934 = vunpack.i.l.s16 %v2564
    %v2935 = vunpack.i.h.s16 %v2564
    %v2936 = vunpack.i.l.s16 %v2578
    %v2937 = vunpack.i.h.s16 %v2578
    %v2938 = vunpack.i.l.s16 %v2580
    %v2939 = vunpack.i.h.s16 %v2580
    %v2940 = vunpack.i.l.s16 %v2582
    %v2941 = vunpack.i.l.s16 %v2606
    %v2942 = vunpack.i.h.s16 %v2606
    %v2943 = vunpack.i.l.s16 %v2620
    %v2944 = vunpack.i.h.s16 %v2620
    %v2945 = vunpack.i.l.s16 %v2628
    %v2946 = vunpack.i.h.s16 %v2628
    %v2947 = vunpack.i.l.s16 %v2630
    %v2948 = vunpack.i.h.s16 %v2630
    %v2949 = vunpack.i.l.s16 %v2613
    %v2950 = vunpack.i.h.s16 %v2613
    %v2951 = vunpack.i.l.s16 %v2627
    %v2952 = vunpack.i.h.s16 %v2627
    %v2953 = vunpack.i.l.s16 %v2629
    %v2954 = vunpack.i.h.s16 %v2629
    %v2955 = vunpack.i.l.s16 %v2631
    %v2956 = vunpack.i.l.s16 %v2655
    %v2957 = vunpack.i.h.s16 %v2655
    %v2958 = vunpack.i.l.s16 %v2669
    %v2959 = vunpack.i.h.s16 %v2669
    %v2960 = vunpack.i.l.s16 %v2677
    %v2961 = vunpack.i.h.s16 %v2677
    %v2962 = vunpack.i.l.s16 %v2679
    %v2963 = vunpack.i.h.s16 %v2679
    %v2964 = vunpack.i.l.s16 %v2662
    %v2965 = vunpack.i.h.s16 %v2662
    %v2966 = vunpack.i.l.s16 %v2676
    %v2967 = vunpack.i.h.s16 %v2676
    %v2968 = vunpack.i.l.s16 %v2678
    %v2969 = vunpack.i.h.s16 %v2678
    %v2970 = vunpack.i.l.s16 %v2680
    %v2971 = vunpack.i.l.s16 %v2704
    %v2972 = vunpack.i.h.s16 %v2704
    %v2973 = vunpack.i.l.s16 %v2718
    %v2974 = vunpack.i.h.s16 %v2718
    %v2975 = vunpack.i.l.s16 %v2726
    %v2976 = vunpack.i.h.s16 %v2726
    %v2977 = vunpack.i.l.s16 %v2728
    %v2978 = vunpack.i.h.s16 %v2728
    %v2979 = vunpack.i.l.s16 %v2711
    %v2980 = vunpack.i.h.s16 %v2711
    %v2981 = vunpack.i.l.s16 %v2725
    %v2982 = vunpack.i.h.s16 %v2725
    %v2983 = vunpack.i.l.s16 %v2727
    %v2984 = vunpack.i.h.s16 %v2727
    %v2985 = vunpack.i.l.s16 %v2729
    %v2986 = vunpack.i.l.s16 %v2753
    %v2987 = vunpack.i.h.s16 %v2753
    %v2988 = vunpack.i.l.s16 %v2767
    %v2989 = vunpack.i.h.s16 %v2767
    %v2990 = vunpack.i.l.s16 %v2775
    %v2991 = vunpack.i.h.s16 %v2775
    %v2992 = vunpack.i.l.s16 %v2777
    %v2993 = vunpack.i.h.s16 %v2777
    %v2994 = vunpack.i.l.s16 %v2760
    %v2995 = vunpack.i.h.s16 %v2760
    %v2996 = vunpack.i.l.s16 %v2774
    %v2997 = vunpack.i.h.s16 %v2774
    %v2998 = vunpack.i.l.s16 %v2776
    %v2999 = vunpack.i.h.s16 %v2776
    %v3000 = vunpack.i.l.s16 %v2778
    %v3001 = vunpack.i.l.s16 %v2802
    %v3002 = vunpack.i.h.s16 %v2802
    %v3003 = vunpack.i.l.s16 %v2816
    %v3004 = vunpack.i.h.s16 %v2816
    %v3005 = vunpack.i.l.s16 %v2824
    %v3006 = vunpack.i.h.s16 %v2824
    %v3007 = vunpack.i.l.s16 %v2826
    %v3008 = vunpack.i.h.s16 %v2826
    %v3009 = vunpack.i.l.s16 %v2809
    %v3010 = vunpack.i.h.s16 %v2809
    %v3011 = vunpack.i.l.s16 %v2823
    %v3012 = vunpack.i.h.s16 %v2823
    %v3013 = vunpack.i.l.s16 %v2825
    %v3014 = vunpack.i.h.s16 %v2825
    %v3015 = vunpack.i.l.s16 %v2827
    %v3016 = vunpack.i.l.s16 %v2851
    %v3017 = vunpack.i.h.s16 %v2851
    %v3018 = vunpack.i.l.s16 %v2865
    %v3019 = vunpack.i.h.s16 %v2865
    %v3020 = vunpack.i.l.s16 %v2873
    %v3021 = vunpack.i.h.s16 %v2873
    %v3022 = vunpack.i.l.s16 %v2875
    %v3023 = vunpack.i.h.s16 %v2875
    %v3024 = vunpack.i.l.s16 %v2858
    %v3025 = vunpack.i.h.s16 %v2858
    %v3026 = vunpack.i.l.s16 %v2872
    %v3027 = vunpack.i.h.s16 %v2872
    %v3028 = vunpack.i.l.s16 %v2874
    %v3029 = vunpack.i.h.s16 %v2874
    %v3030 = vunpack.i.l.s16 %v2876
    %v3031 = vunpack.i.l.s16 %v2900
    %v3032 = vunpack.i.h.s16 %v2900
    %v3033 = vunpack.i.l.s16 %v2914
    %v3034 = vunpack.i.h.s16 %v2914
    %v3035 = vunpack.i.l.s16 %v2922
    %v3036 = vunpack.i.h.s16 %v2922
    %v3037 = vunpack.i.l.s16 %v2924
    %v3038 = vunpack.i.h.s16 %v2924
    %v3039 = vunpack.i.l.s16 %v2907
    %v3040 = vunpack.i.h.s16 %v2907
    %v3041 = vunpack.i.l.s16 %v2921
    %v3042 = vunpack.i.h.s16 %v2921
    %v3043 = vunpack.i.l.s16 %v2923
    %v3044 = vunpack.i.h.s16 %v2923
    %v3045 = vunpack.i.l.s16 %v2925
    %v3046 = vcombine.high %v2525, %v2525
    %v3048 = vunpack.c.l.s4 1966171168
    %v3049 = vunpack.c.0.s8 %v3048
    %v3050 = vlaneseq
    %v3051 = vshrl.u32 %v3050, 7
    %v3052 = vsub.s32 %v3049, %v3051
    %v3053 = vrot.slane %v2525, %v3052
    %v3055 = vunpack.c.l.s4 1966171168
    %v3056 = vunpack.c.0.s8 %v3055
    %v3057 = vlaneseq
    %v3058 = vshrl.u32 %v3057, 7
    %v3059 = vsub.s32 %v3056, %v3058
    %v3060 = vrot.slane %v3046, %v3059
    %v3061 = vcombine.high %v3053, %v3053
    %v3062 = vcombine.high %v3060, %v3060
    %v3064 = vunpack.c.l.s4 1966171168
    %v3065 = vunpack.c.0.s8 %v3064
    %v3066 = vlaneseq
    %v3067 = vshrl.u32 %v3066, 7
    %v3068 = vsub.s32 %v3065, %v3067
    %v3069 = vrot.slane %v3053, %v3068
    %v3071 = vunpack.c.l.s4 1966171168
    %v3072 = vunpack.c.0.s8 %v3071
    %v3073 = vlaneseq
    %v3074 = vshrl.u32 %v3073, 7
    %v3075 = vsub.s32 %v3072, %v3074
    %v3076 = vrot.slane %v3060, %v3075
    %v3078 = vunpack.c.l.s4 1966171168
    %v3079 = vunpack.c.0.s8 %v3078
    %v3080 = vlaneseq
    %v3081 = vshrl.u32 %v3080, 7
    %v3082 = vsub.s32 %v3079, %v3081
    %v3083 = vrot.slane %v3061, %v3082
    %v3085 = vunpack.c.l.s4 1966171168
    %v3086 = vunpack.c.0.s8 %v3085
    %v3087 = vlaneseq
    %v3088 = vshrl.u32 %v3087, 7
    %v3089 = vsub.s32 %v3086, %v3088
    %v3090 = vrot.slane %v3062, %v3089
    %v3091 = vcombine.high %v3069, %v3069
    %v3092 = vcombine.high %v3076, %v3076
    %v3093 = vcombine.high %v3083, %v3083
    %v3094 = vcombine.high %v3090, %v3090
    %v3095 = vpack.i.b16 %v2927, %v2926
    %v3096 = vpack.i.b16 %v2929, %v2928
    %v3097 = vpack.i.b16 %v2931, %v2930
    %v3098 = vpack.i.b16 %v2933, %v2932
    %v3099 = vpack.i.b16 %v2935, %v2934
    %v3100 = vpack.i.b16 %v2937, %v2936
    %v3101 = vpack.i.b16 %v2939, %v2938
    %v3102 = vpack.i.b16 %v2941, %v2940
    %v3103 = vpack.i.b16 %v2943, %v2942
    %v3104 = vpack.i.b16 %v2945, %v2944
    %v3105 = vpack.i.b16 %v2947, %v2946
    %v3106 = vpack.i.b16 %v2949, %v2948
    %v3107 = vpack.i.b16 %v2951, %v2950
    %v3108 = vpack.i.b16 %v2953, %v2952
    %v3109 = vpack.i.b16 %v2955, %v2954
    %v3110 = vpack.i.b16 %v2957, %v2956
    %v3111 = vpack.i.b16 %v2959, %v2958
    %v3112 = vpack.i.b16 %v2961, %v2960
    %v3113 = vpack.i.b16 %v2963, %v2962
    %v3114 = vpack.i.b16 %v2965, %v2964
    %v3115 = vpack.i.b16 %v2967, %v2966
    %v3116 = vpack.i.b16 %v2969, %v2968
    %v3117 = vpack.i.b16 %v2971, %v2970
    %v3118 = vpack.i.b16 %v2973, %v2972
    %v3119 = vpack.i.b16 %v2975, %v2974
    %v3120 = vpack.i.b16 %v2977, %v2976
    %v3121 = vpack.i.b16 %v2979, %v2978
    %v3122 = vpack.i.b16 %v2981, %v2980
    %v3123 = vpack.i.b16 %v2983, %v2982
    %v3124 = vpack.i.b16 %v2985, %v2984
    %v3125 = vpack.i.b16 %v2987, %v2986
    %v3126 = vpack.i.b16 %v2989, %v2988
    %v3127 = vpack.i.b16 %v2991, %v2990
    %v3128 = vpack.i.b16 %v2993, %v2992
    %v3129 = vpack.i.b16 %v2995, %v2994
    %v3130 = vpack.i.b16 %v2997, %v2996
    %v3131 = vpack.i.b16 %v2999, %v2998
    %v3132 = vpack.i.b16 %v3001, %v3000
    %v3133 = vpack.i.b16 %v3003, %v3002
    %v3134 = vpack.i.b16 %v3005, %v3004
    %v3135 = vpack.i.b16 %v3007, %v3006
    %v3136 = vpack.i.b16 %v3009, %v3008
    %v3137 = vpack.i.b16 %v3011, %v3010
    %v3138 = vpack.i.b16 %v3013, %v3012
    %v3139 = vpack.i.b16 %v3015, %v3014
    %v3140 = vpack.i.b16 %v3017, %v3016
    %v3141 = vpack.i.b16 %v3019, %v3018
    %v3142 = vpack.i.b16 %v3021, %v3020
    %v3143 = vpack.i.b16 %v3023, %v3022
    %v3144 = vpack.i.b16 %v3025, %v3024
    %v3145 = vpack.i.b16 %v3027, %v3026
    %v3146 = vpack.i.b16 %v3029, %v3028
    %v3147 = vpack.i.b16 %v3031, %v3030
    %v3148 = vpack.i.b16 %v3033, %v3032
    %v3149 = vpack.i.b16 %v3035, %v3034
    %v3150 = vpack.i.b16 %v3037, %v3036
    %v3151 = vpack.i.b16 %v3039, %v3038
    %v3152 = vpack.i.b16 %v3041, %v3040
    %v3153 = vpack.i.b16 %v3043, %v3042
    %v3154 = vpack.i.b16 %v3045, %v3044
    %v3155 = vcombine.low %v3095, %v3096
    %v3156 = vcombine.low %v3097, %v3098
    %v3157 = vcombine.low %v3099, %v3100
    %v3158 = vcombine.low %v3101, %v3102
    %v3160 = vunpack.c.l.s4 1966171168
    %v3161 = vunpack.c.0.s8 %v3160
    %v3162 = vlaneseq
    %v3163 = vshrl.u32 %v3162, 7
    %v3164 = vsub.s32 %v3161, %v3163
    %v3165 = vrot.slane %v3155, %v3164
    %v3167 = vunpack.c.l.s4 1966171168
    %v3168 = vunpack.c.0.s8 %v3167
    %v3169 = vlaneseq
    %v3170 = vshrl.u32 %v3169, 7
    %v3171 = vsub.s32 %v3168, %v3170
    %v3172 = vrot.slane %v3156, %v3171
    %v3174 = vunpack.c.l.s4 1966171168
    %v3175 = vunpack.c.0.s8 %v3174
    %v3176 = vlaneseq
    %v3177 = vshrl.u32 %v3176, 7
    %v3178 = vsub.s32 %v3175, %v3177
    %v3179 = vrot.slane %v3157, %v3178
    %v3181 = vunpack.c.l.s4 1966171168
    %v3182 = vunpack.c.0.s8 %v3181
    %v3183 = vlaneseq
    %v3184 = vshrl.u32 %v3183, 7
    %v3185 = vsub.s32 %v3182, %v3184
    %v3186 = vrot.slane %v3158, %v3185
    %v3187 = vcombine.low %v3165, %v3172
    %v3188 = vcombine.low %v3179, %v3186
    %v3190 = vunpack.c.l.s4 1966171168
    %v3191 = vunpack.c.0.s8 %v3190
    %v3192 = vlaneseq
    %v3193 = vshrl.u32 %v3192, 7
    %v3194 = vsub.s32 %v3191, %v3193
    %v3195 = vrot.slane %v3187, %v3194
    %v3197 = vunpack.c.l.s4 1966171168
    %v3198 = vunpack.c.0.s8 %v3197
    %v3199 = vlaneseq
    %v3200 = vshrl.u32 %v3199, 7
    %v3201 = vsub.s32 %v3198, %v3200
    %v3202 = vrot.slane %v3188, %v3201
    %v3203 = vcombine.low %v3195, %v3202
    %v3204 = vcombine.low %v3103, %v3104
    %v3205 = vcombine.low %v3105, %v3106
    %v3206 = vcombine.low %v3107, %v3108
    %v3207 = vcombine.low %v3109, %v3110
    %v3209 = vunpack.c.l.s4 1966171168
    %v3210 = vunpack.c.0.s8 %v3209
    %v3211 = vlaneseq
    %v3212 = vshrl.u32 %v3211, 7
    %v3213 = vsub.s32 %v3210, %v3212
    %v3214 = vrot.slane %v3204, %v3213
    %v3216 = vunpack.c.l.s4 1966171168
    %v3217 = vunpack.c.0.s8 %v3216
    %v3218 = vlaneseq
    %v3219 = vshrl.u32 %v3218, 7
    %v3220 = vsub.s32 %v3217, %v3219
    %v3221 = vrot.slane %v3205, %v3220
    %v3223 = vunpack.c.l.s4 1966171168
    %v3224 = vunpack.c.0.s8 %v3223
    %v3225 = vlaneseq
    %v3226 = vshrl.u32 %v3225, 7
    %v3227 = vsub.s32 %v3224, %v3226
    %v3228 = vrot.slane %v3206, %v3227
    %v3230 = vunpack.c.l.s4 1966171168
    %v3231 = vunpack.c.0.s8 %v3230
    %v3232 = vlaneseq
    %v3233 = vshrl.u32 %v3232, 7
    %v3234 = vsub.s32 %v3231, %v3233
    %v3235 = vrot.slane %v3207, %v3234
    %v3236 = vcombine.low %v3214, %v3221
    %v3237 = vcombine.low %v3228, %v3235
    %v3239 = vunpack.c.l.s4 1966171168
    %v3240 = vunpack.c.0.s8 %v3239
    %v3241 = vlaneseq
    %v3242 = vshrl.u32 %v3241, 7
    %v3243 = vsub.s32 %v3240, %v3242
    %v3244 = vrot.slane %v3236, %v3243
    %v3246 = vunpack.c.l.s4 1966171168
    %v3247 = vunpack.c.0.s8 %v3246
    %v3248 = vlaneseq
    %v3249 = vshrl.u32 %v3248, 7
    %v3250 = vsub.s32 %v3247, %v3249
    %v3251 = vrot.slane %v3237, %v3250
    %v3252 = vcombine.low %v3244, %v3251
    %v3253 = vcombine.low %v3111, %v3112
    %v3254 = vcombine.low %v3113, %v3114
    %v3255 = vcombine.low %v3115, %v3116
    %v3256 = vcombine.low %v3117, %v3118
    %v3258 = vunpack.c.l.s4 1966171168
    %v3259 = vunpack.c.0.s8 %v3258
    %v3260 = vlaneseq
    %v3261 = vshrl.u32 %v3260, 7
    %v3262 = vsub.s32 %v3259, %v3261
    %v3263 = vrot.slane %v3253, %v3262
    %v3265 = vunpack.c.l.s4 1966171168
    %v3266 = vunpack.c.0.s8 %v3265
    %v3267 = vlaneseq
    %v3268 = vshrl.u32 %v3267, 7
    %v3269 = vsub.s32 %v3266, %v3268
    %v3270 = vrot.slane %v3254, %v3269
    %v3272 = vunpack.c.l.s4 1966171168
    %v3273 = vunpack.c.0.s8 %v3272
    %v3274 = vlaneseq
    %v3275 = vshrl.u32 %v3274, 7
    %v3276 = vsub.s32 %v3273, %v3275
    %v3277 = vrot.slane %v3255, %v3276
    %v3279 = vunpack.c.l.s4 1966171168
    %v3280 = vunpack.c.0.s8 %v3279
    %v3281 = vlaneseq
    %v3282 = vshrl.u32 %v3281, 7
    %v3283 = vsub.s32 %v3280, %v3282
    %v3284 = vrot.slane %v3256, %v3283
    %v3285 = vcombine.low %v3263, %v3270
    %v3286 = vcombine.low %v3277, %v3284
    %v3288 = vunpack.c.l.s4 1966171168
    %v3289 = vunpack.c.0.s8 %v3288
    %v3290 = vlaneseq
    %v3291 = vshrl.u32 %v3290, 7
    %v3292 = vsub.s32 %v3289, %v3291
    %v3293 = vrot.slane %v3285, %v3292
    %v3295 = vunpack.c.l.s4 1966171168
    %v3296 = vunpack.c.0.s8 %v3295
    %v3297 = vlaneseq
    %v3298 = vshrl.u32 %v3297, 7
    %v3299 = vsub.s32 %v3296, %v3298
    %v3300 = vrot.slane %v3286, %v3299
    %v3301 = vcombine.low %v3293, %v3300
    %v3302 = vcombine.low %v3119, %v3120
    %v3303 = vcombine.low %v3121, %v3122
    %v3304 = vcombine.low %v3123, %v3124
    %v3305 = vcombine.low %v3125, %v3126
    %v3307 = vunpack.c.l.s4 1966171168
    %v3308 = vunpack.c.0.s8 %v3307
    %v3309 = vlaneseq
    %v3310 = vshrl.u32 %v3309, 7
    %v3311 = vsub.s32 %v3308, %v3310
    %v3312 = vrot.slane %v3302, %v3311
    %v3314 = vunpack.c.l.s4 1966171168
    %v3315 = vunpack.c.0.s8 %v3314
    %v3316 = vlaneseq
    %v3317 = vshrl.u32 %v3316, 7
    %v3318 = vsub.s32 %v3315, %v3317
    %v3319 = vrot.slane %v3303, %v3318
    %v3321 = vunpack.c.l.s4 1966171168
    %v3322 = vunpack.c.0.s8 %v3321
    %v3323 = vlaneseq
    %v3324 = vshrl.u32 %v3323, 7
    %v3325 = vsub.s32 %v3322, %v3324
    %v3326 = vrot.slane %v3304, %v3325
    %v3328 = vunpack.c.l.s4 1966171168
    %v3329 = vunpack.c.0.s8 %v3328
    %v3330 = vlaneseq
    %v3331 = vshrl.u32 %v3330, 7
    %v3332 = vsub.s32 %v3329, %v3331
    %v3333 = vrot.slane %v3305, %v3332
    %v3334 = vcombine.low %v3312, %v3319
    %v3335 = vcombine.low %v3326, %v3333
    %v3337 = vunpack.c.l.s4 1966171168
    %v3338 = vunpack.c.0.s8 %v3337
    %v3339 = vlaneseq
    %v3340 = vshrl.u32 %v3339, 7
    %v3341 = vsub.s32 %v3338, %v3340
    %v3342 = vrot.slane %v3334, %v3341
    %v3344 = vunpack.c.l.s4 1966171168
    %v3345 = vunpack.c.0.s8 %v3344
    %v3346 = vlaneseq
    %v3347 = vshrl.u32 %v3346, 7
    %v3348 = vsub.s32 %v3345, %v3347
    %v3349 = vrot.slane %v3335, %v3348
    %v3350 = vcombine.low %v3342, %v3349
    %v3351 = vcombine.low %v3127, %v3128
    %v3352 = vcombine.low %v3129, %v3130
    %v3353 = vcombine.low %v3131, %v3132
    %v3354 = vcombine.low %v3133, %v3134
    %v3356 = vunpack.c.l.s4 1966171168
    %v3357 = vunpack.c.0.s8 %v3356
    %v3358 = vlaneseq
    %v3359 = vshrl.u32 %v3358, 7
    %v3360 = vsub.s32 %v3357, %v3359
    %v3361 = vrot.slane %v3351, %v3360
    %v3363 = vunpack.c.l.s4 1966171168
    %v3364 = vunpack.c.0.s8 %v3363
    %v3365 = vlaneseq
    %v3366 = vshrl.u32 %v3365, 7
    %v3367 = vsub.s32 %v3364, %v3366
    %v3368 = vrot.slane %v3352, %v3367
    %v3370 = vunpack.c.l.s4 1966171168
    %v3371 = vunpack.c.0.s8 %v3370
    %v3372 = vlaneseq
    %v3373 = vshrl.u32 %v3372, 7
    %v3374 = vsub.s32 %v3371, %v3373
    %v3375 = vrot.slane %v3353, %v3374
    %v3377 = vunpack.c.l.s4 1966171168
    %v3378 = vunpack.c.0.s8 %v3377
    %v3379 = vlaneseq
    %v3380 = vshrl.u32 %v3379, 7
    %v3381 = vsub.s32 %v3378, %v3380
    %v3382 = vrot.slane %v3354, %v3381
    %v3383 = vcombine.low %v3361, %v3368
    %v3384 = vcombine.low %v3375, %v3382
    %v3386 = vunpack.c.l.s4 1966171168
    %v3387 = vunpack.c.0.s8 %v3386
    %v3388 = vlaneseq
    %v3389 = vshrl.u32 %v3388, 7
    %v3390 = vsub.s32 %v3387, %v3389
    %v3391 = vrot.slane %v3383, %v3390
    %v3393 = vunpack.c.l.s4 1966171168
    %v3394 = vunpack.c.0.s8 %v3393
    %v3395 = vlaneseq
    %v3396 = vshrl.u32 %v3395, 7
    %v3397 = vsub.s32 %v3394, %v3396
    %v3398 = vrot.slane %v3384, %v3397
    %v3399 = vcombine.low %v3391, %v3398
    %v3400 = vcombine.low %v3135, %v3136
    %v3401 = vcombine.low %v3137, %v3138
    %v3402 = vcombine.low %v3139, %v3140
    %v3403 = vcombine.low %v3141, %v3142
    %v3405 = vunpack.c.l.s4 1966171168
    %v3406 = vunpack.c.0.s8 %v3405
    %v3407 = vlaneseq
    %v3408 = vshrl.u32 %v3407, 7
    %v3409 = vsub.s32 %v3406, %v3408
    %v3410 = vrot.slane %v3400, %v3409
    %v3412 = vunpack.c.l.s4 1966171168
    %v3413 = vunpack.c.0.s8 %v3412
    %v3414 = vlaneseq
    %v3415 = vshrl.u32 %v3414, 7
    %v3416 = vsub.s32 %v3413, %v3415
    %v3417 = vrot.slane %v3401, %v3416
    %v3419 = vunpack.c.l.s4 1966171168
    %v3420 = vunpack.c.0.s8 %v3419
    %v3421 = vlaneseq
    %v3422 = vshrl.u32 %v3421, 7
    %v3423 = vsub.s32 %v3420, %v3422
    %v3424 = vrot.slane %v3402, %v3423
    %v3426 = vunpack.c.l.s4 1966171168
    %v3427 = vunpack.c.0.s8 %v3426
    %v3428 = vlaneseq
    %v3429 = vshrl.u32 %v3428, 7
    %v3430 = vsub.s32 %v3427, %v3429
    %v3431 = vrot.slane %v3403, %v3430
    %v3432 = vcombine.low %v3410, %v3417
    %v3433 = vcombine.low %v3424, %v3431
    %v3435 = vunpack.c.l.s4 1966171168
    %v3436 = vunpack.c.0.s8 %v3435
    %v3437 = vlaneseq
    %v3438 = vshrl.u32 %v3437, 7
    %v3439 = vsub.s32 %v3436, %v3438
    %v3440 = vrot.slane %v3432, %v3439
    %v3442 = vunpack.c.l.s4 1966171168
    %v3443 = vunpack.c.0.s8 %v3442
    %v3444 = vlaneseq
    %v3445 = vshrl.u32 %v3444, 7
    %v3446 = vsub.s32 %v3443, %v3445
    %v3447 = vrot.slane %v3433, %v3446
    %v3448 = vcombine.low %v3440, %v3447
    %v3449 = vcombine.low %v3143, %v3144
    %v3450 = vcombine.low %v3145, %v3146
    %v3451 = vcombine.low %v3147, %v3148
    %v3452 = vcombine.low %v3149, %v3150
    %v3454 = vunpack.c.l.s4 1966171168
    %v3455 = vunpack.c.0.s8 %v3454
    %v3456 = vlaneseq
    %v3457 = vshrl.u32 %v3456, 7
    %v3458 = vsub.s32 %v3455, %v3457
    %v3459 = vrot.slane %v3449, %v3458
    %v3461 = vunpack.c.l.s4 1966171168
    %v3462 = vunpack.c.0.s8 %v3461
    %v3463 = vlaneseq
    %v3464 = vshrl.u32 %v3463, 7
    %v3465 = vsub.s32 %v3462, %v3464
    %v3466 = vrot.slane %v3450, %v3465
    %v3468 = vunpack.c.l.s4 1966171168
    %v3469 = vunpack.c.0.s8 %v3468
    %v3470 = vlaneseq
    %v3471 = vshrl.u32 %v3470, 7
    %v3472 = vsub.s32 %v3469, %v3471
    %v3473 = vrot.slane %v3451, %v3472
    %v3475 = vunpack.c.l.s4 1966171168
    %v3476 = vunpack.c.0.s8 %v3475
    %v3477 = vlaneseq
    %v3478 = vshrl.u32 %v3477, 7
    %v3479 = vsub.s32 %v3476, %v3478
    %v3480 = vrot.slane %v3452, %v3479
    %v3481 = vcombine.low %v3459, %v3466
    %v3482 = vcombine.low %v3473, %v3480
    %v3484 = vunpack.c.l.s4 1966171168
    %v3485 = vunpack.c.0.s8 %v3484
    %v3486 = vlaneseq
    %v3487 = vshrl.u32 %v3486, 7
    %v3488 = vsub.s32 %v3485, %v3487
    %v3489 = vrot.slane %v3481, %v3488
    %v3491 = vunpack.c.l.s4 1966171168
    %v3492 = vunpack.c.0.s8 %v3491
    %v3493 = vlaneseq
    %v3494 = vshrl.u32 %v3493, 7
    %v3495 = vsub.s32 %v3492, %v3494
    %v3496 = vrot.slane %v3482, %v3495
    %v3497 = vcombine.low %v3489, %v3496
    %v3498 = vcombine.low %v3151, %v3152
    %v3499 = vcombine.low %v3153, %v3154
    %v3501 = vunpack.c.l.s4 1966171168
    %v3502 = vunpack.c.0.s8 %v3501
    %v3503 = vlaneseq
    %v3504 = vshrl.u32 %v3503, 7
    %v3505 = vsub.s32 %v3502, %v3504
    %v3506 = vrot.slane %v3498, %v3505
    %v3508 = vunpack.c.l.s4 1966171168
    %v3509 = vunpack.c.0.s8 %v3508
    %v3510 = vlaneseq
    %v3511 = vshrl.u32 %v3510, 7
    %v3512 = vsub.s32 %v3509, %v3511
    %v3513 = vrot.slane %v3499, %v3512
    %v3514 = vcombine.low %v3506, %v3513
    %v3516 = vunpack.c.l.s4 1966171168
    %v3517 = vunpack.c.0.s8 %v3516
    %v3518 = vlaneseq
    %v3519 = vshrl.u32 %v3518, 7
    %v3520 = vsub.s32 %v3517, %v3519
    %v3521 = vrot.slane %v3514, %v3520
    %v3546 = vunpack.c.l.b16 %v2504
    %v3547 = vunpack.c.l.b16 %v2505
    %v3548 = vunpack.c.l.b16 %v2506
    %v3549 = vunpack.c.l.b16 %v2507
    %v3550 = vunpack.c.l.b16 %v2508
    %v3551 = vunpack.c.l.b16 %v2509
    %v3552 = vunpack.c.l.b16 %v2510
    %v3553 = vunpack.c.l.b16 %v2511
    %v3554 = vunpack.c.l.b16 %v2512
    %v3555 = vunpack.c.l.b16 %v2513
    %v3556 = vunpack.c.l.b16 %v2514
    %v3557 = vunpack.c.l.b16 %v2515
    %v3558 = vunpack.c.l.b16 %v2516
    %v3559 = vunpack.c.l.b16 %v2517
    %v3560 = vunpack.c.l.b16 %v2518
    %v3561 = vunpack.c.l.b16 %v2519
    %v3562 = vpack.c.b16 %v3547, %v3546
    %v3563 = vpack.c.b16 %v3549, %v3548
    %v3564 = vpack.c.b16 %v3551, %v3550
    %v3565 = vpack.c.b16 %v3553, %v3552
    %v3566 = vpack.c.b16 %v3555, %v3554
    %v3567 = vpack.c.b16 %v3557, %v3556
    %v3568 = vpack.c.b16 %v3559, %v3558
    %v3569 = vpack.c.b16 %v3561, %v3560
    %v3578 = vcombine.low %v3069, %v3083
    %v3579 = vcombine.low %v3091, %v3093
    %v3580 = vcombine.low %v3076, %v3090
    %v3581 = vcombine.low %v3092, %v3094
    %v3583 = vunpack.c.l.s4 1966171168
    %v3584 = vunpack.c.0.s8 %v3583
    %v3585 = vlaneseq
    %v3586 = vshrl.u32 %v3585, 7
    %v3587 = vsub.s32 %v3584, %v3586
    %v3588 = vrot.slane %v3578, %v3587
    %v3590 = vunpack.c.l.s4 1966171168
    %v3591 = vunpack.c.0.s8 %v3590
    %v3592 = vlaneseq
    %v3593 = vshrl.u32 %v3592, 7
    %v3594 = vsub.s32 %v3591, %v3593
    %v3595 = vrot.slane %v3579, %v3594
    %v3597 = vunpack.c.l.s4 1966171168
    %v3598 = vunpack.c.0.s8 %v3597
    %v3599 = vlaneseq
    %v3600 = vshrl.u32 %v3599, 7
    %v3601 = vsub.s32 %v3598, %v3600
    %v3602 = vrot.slane %v3580, %v3601
    %v3604 = vunpack.c.l.s4 1966171168
    %v3605 = vunpack.c.0.s8 %v3604
    %v3606 = vlaneseq
    %v3607 = vshrl.u32 %v3606, 7
    %v3608 = vsub.s32 %v3605, %v3607
    %v3609 = vrot.slane %v3581, %v3608
    %v3610 = vcombine.low %v3588, %v3595
    %v3611 = vcombine.low %v3602, %v3609
    %v3613 = vunpack.c.l.s4 1966171168
    %v3614 = vunpack.c.0.s8 %v3613
    %v3615 = vlaneseq
    %v3616 = vshrl.u32 %v3615, 7
    %v3617 = vsub.s32 %v3614, %v3616
    %v3618 = vrot.slane %v3610, %v3617
    %v3620 = vunpack.c.l.s4 1966171168
    %v3621 = vunpack.c.0.s8 %v3620
    %v3622 = vlaneseq
    %v3623 = vshrl.u32 %v3622, 7
    %v3624 = vsub.s32 %v3621, %v3623
    %v3625 = vrot.slane %v3611, %v3624
    %v3626 = vcombine.low %v3618, %v3625
    %v3627 = vcombine.low %v3092, %v3069
    %v3629 = vunpack.c.l.s4 1966171168
    %v3630 = vunpack.c.0.s8 %v3629
    %v3631 = vlaneseq
    %v3632 = vshrl.u32 %v3631, 7
    %v3633 = vsub.s32 %v3630, %v3632
    %v3634 = vrot.slane %v3627, %v3633
    %v3635 = vcombine.low %v3602, %v3634
    %v3637 = vunpack.c.l.s4 1966171168
    %v3638 = vunpack.c.0.s8 %v3637
    %v3639 = vlaneseq
    %v3640 = vshrl.u32 %v3639, 7
    %v3641 = vsub.s32 %v3638, %v3640
    %v3642 = vrot.slane %v3635, %v3641
    %v3643 = vcombine.low %v3618, %v3642
    %v3644 = vcombine.low %v3083, %v3091
    %v3645 = vcombine.low %v3093, %v3076
    %v3646 = vcombine.low %v3090, %v3092
    %v3647 = vcombine.low %v3094, %v3069
    %v3649 = vunpack.c.l.s4 1966171168
    %v3650 = vunpack.c.0.s8 %v3649
    %v3651 = vlaneseq
    %v3652 = vshrl.u32 %v3651, 7
    %v3653 = vsub.s32 %v3650, %v3652
    %v3654 = vrot.slane %v3644, %v3653
    %v3656 = vunpack.c.l.s4 1966171168
    %v3657 = vunpack.c.0.s8 %v3656
    %v3658 = vlaneseq
    %v3659 = vshrl.u32 %v3658, 7
    %v3660 = vsub.s32 %v3657, %v3659
    %v3661 = vrot.slane %v3645, %v3660
    %v3663 = vunpack.c.l.s4 1966171168
    %v3664 = vunpack.c.0.s8 %v3663
    %v3665 = vlaneseq
    %v3666 = vshrl.u32 %v3665, 7
    %v3667 = vsub.s32 %v3664, %v3666
    %v3668 = vrot.slane %v3646, %v3667
    %v3670 = vunpack.c.l.s4 1966171168
    %v3671 = vunpack.c.0.s8 %v3670
    %v3672 = vlaneseq
    %v3673 = vshrl.u32 %v3672, 7
    %v3674 = vsub.s32 %v3671, %v3673
    %v3675 = vrot.slane %v3647, %v3674
    %v3676 = vcombine.low %v3654, %v3661
    %v3677 = vcombine.low %v3668, %v3675
    %v3679 = vunpack.c.l.s4 1966171168
    %v3680 = vunpack.c.0.s8 %v3679
    %v3681 = vlaneseq
    %v3682 = vshrl.u32 %v3681, 7
    %v3683 = vsub.s32 %v3680, %v3682
    %v3684 = vrot.slane %v3676, %v3683
    %v3686 = vunpack.c.l.s4 1966171168
    %v3687 = vunpack.c.0.s8 %v3686
    %v3688 = vlaneseq
    %v3689 = vshrl.u32 %v3688, 7
    %v3690 = vsub.s32 %v3687, %v3689
    %v3691 = vrot.slane %v3677, %v3690
    %v3692 = vcombine.low %v3684, %v3691
    %v3693 = vcombine.low %v3668, %v3588
    %v3695 = vunpack.c.l.s4 1966171168
    %v3696 = vunpack.c.0.s8 %v3695
    %v3697 = vlaneseq
    %v3698 = vshrl.u32 %v3697, 7
    %v3699 = vsub.s32 %v3696, %v3698
    %v3700 = vrot.slane %v3693, %v3699
    %v3701 = vcombine.low %v3684, %v3700
    %v3702 = vcombine.low %v3595, %v3602
    %v3703 = vcombine.low %v3609, %v3588
    %v3705 = vunpack.c.l.s4 1966171168
    %v3706 = vunpack.c.0.s8 %v3705
    %v3707 = vlaneseq
    %v3708 = vshrl.u32 %v3707, 7
    %v3709 = vsub.s32 %v3706, %v3708
    %v3710 = vrot.slane %v3702, %v3709
    %v3712 = vunpack.c.l.s4 1966171168
    %v3713 = vunpack.c.0.s8 %v3712
    %v3714 = vlaneseq
    %v3715 = vshrl.u32 %v3714, 7
    %v3716 = vsub.s32 %v3713, %v3715
    %v3717 = vrot.slane %v3703, %v3716
    %v3718 = vcombine.low %v3710, %v3717
    %v3719 = vcombine.low %v3634, %v3654
    %v3721 = vunpack.c.l.s4 1966171168
    %v3722 = vunpack.c.0.s8 %v3721
    %v3723 = vlaneseq
    %v3724 = vshrl.u32 %v3723, 7
    %v3725 = vsub.s32 %v3722, %v3724
    %v3726 = vrot.slane %v3719, %v3725
    %v3727 = vcombine.low %v3710, %v3726
    %v3728 = vcombine.low %v3661, %v3668
    %v3729 = vcombine.low %v3675, %v3654
    %v3731 = vunpack.c.l.s4 1966171168
    %v3732 = vunpack.c.0.s8 %v3731
    %v3733 = vlaneseq
    %v3734 = vshrl.u32 %v3733, 7
    %v3735 = vsub.s32 %v3732, %v3734
    %v3736 = vrot.slane %v3728, %v3735
    %v3738 = vunpack.c.l.s4 1966171168
    %v3739 = vunpack.c.0.s8 %v3738
    %v3740 = vlaneseq
    %v3741 = vshrl.u32 %v3740, 7
    %v3742 = vsub.s32 %v3739, %v3741
    %v3743 = vrot.slane %v3729, %v3742
    %v3744 = vcombine.low %v3736, %v3743
    %v3745 = vcombine.low %v3736, %v3618
    %v3746 = vcombine.low %v3625, %v3618
    %v3747 = vcombine.low %v3642, %v3684
    %v3748 = vcombine.low %v3691, %v3684
    %v3749 = vcombine.low %v3700, %v3710
    %v3750 = vcombine.low %v3717, %v3710
    %v3751 = vcombine.low %v3726, %v3736
    %v3752 = vcombine.low %v3743, %v3736
    %3768 = vmatprep.subr.bf16.mxu0 0
    %3769 = vmatpush1.bf16.msra.mxu0 %v3562
    %3770 = vmatprep.subr.bf16.mxu0 0
    %3771 = vmatpush1.bf16.msra.mxu0 %v3563
    %3772 = vmatprep.subr.bf16.mxu0 0
    %3773 = vmatpush1.bf16.msra.mxu0 %v3564
    %3774 = vmatprep.subr.bf16.mxu0 0
    %3775 = vmatpush1.bf16.msra.mxu0 %v3565
    %3776 = vmatprep.subr.bf16.mxu0 0
    %3777 = vmatpush1.bf16.msra.mxu0 %v3566
    %3778 = vmatprep.subr.bf16.mxu0 0
    %3779 = vmatpush1.bf16.msra.mxu0 %v3567
    %3780 = vmatprep.subr.bf16.mxu0 0
    %3781 = vmatpush1.bf16.msra.mxu0 %v3568
    %3782 = vmatprep.subr.bf16.mxu0 0
    %3783 = vmatpush1.bf16.msra.mxu0 %v3569
    %3784 = vmatprep.subr.bf16.mxu0 0
    %3785 = vmatpush1.bf16.msra.mxu0 0
    %3786 = vmatprep.subr.bf16.mxu0 0
    %3787 = vmatpush1.bf16.msra.mxu0 0
    %3788 = vmatprep.subr.bf16.mxu0 0
    %3789 = vmatpush1.bf16.msra.mxu0 0
    %3790 = vmatprep.subr.bf16.mxu0 0
    %3791 = vmatpush1.bf16.msra.mxu0 0
    %3792 = vmatprep.subr.bf16.mxu0 0
    %3793 = vmatpush1.bf16.msra.mxu0 0
    %3794 = vmatprep.subr.bf16.mxu0 0
    %3795 = vmatpush1.bf16.msra.mxu0 0
    %3796 = vmatprep.subr.bf16.mxu0 0
    %3797 = vmatpush1.bf16.msra.mxu0 0
    %3798 = vmatprep.subr.bf16.mxu0 0
    %3799 = vmatpush1.bf16.msra.mxu0 0
    %3800 = vmatprep.mubr.bf16.mxu0 0
    %3801 = vmatmul.mubr.bf16.gmra.mrb[0].mxu0 %v3203
    %v3802 = vpop.f32.mrb[0].mxu0
    %v3803 = vadd.f32 %v3626, %v3802
    %v3804 = vpop.f32.mrb[0].mxu0
    %v3805 = vpop.f32.mrb[0].mxu0
    %v3806 = vadd.f32 %v3643, %v3805
    %v3807 = vpop.f32.mrb[0].mxu0
    %3808 = vmatprep.mubr.bf16.mxu0 0
    %3809 = vmatmul.mubr.bf16.gmra.mrb[0].mxu0 %v3252
    %v3810 = vpop.f32.mrb[0].mxu0
    %v3811 = vadd.f32 %v3692, %v3810
    %v3812 = vpop.f32.mrb[0].mxu0
    %v3813 = vpop.f32.mrb[0].mxu0
    %v3814 = vadd.f32 %v3701, %v3813
    %v3815 = vpop.f32.mrb[0].mxu0
    %3816 = vmatprep.mubr.bf16.mxu0 0
    %3817 = vmatmul.mubr.bf16.gmra.mrb[0].mxu0 %v3301
    %v3818 = vpop.f32.mrb[0].mxu0
    %v3819 = vadd.f32 %v3718, %v3818
    %v3820 = vpop.f32.mrb[0].mxu0
    %v3821 = vpop.f32.mrb[0].mxu0
    %v3822 = vadd.f32 %v3727, %v3821
    %v3823 = vpop.f32.mrb[0].mxu0
    %3824 = vmatprep.mubr.bf16.mxu0 0
    %3825 = vmatmul.mubr.bf16.gmra.mrb[0].mxu0 %v3350
    %v3826 = vpop.f32.mrb[0].mxu0
    %v3827 = vadd.f32 %v3744, %v3826
    %v3828 = vpop.f32.mrb[0].mxu0
    %v3829 = vpop.f32.mrb[0].mxu0
    %v3830 = vadd.f32 %v3745, %v3829
    %v3831 = vpop.f32.mrb[0].mxu0
    %3832 = vmatprep.mubr.bf16.mxu0 0
    %3833 = vmatmul.mubr.bf16.gmra.mrb[0].mxu0 %v3399
    %v3834 = vpop.f32.mrb[0].mxu0
    %v3835 = vadd.f32 %v3746, %v3834
    %v3836 = vpop.f32.mrb[0].mxu0
    %v3837 = vpop.f32.mrb[0].mxu0
    %v3838 = vadd.f32 %v3747, %v3837
    %v3839 = vpop.f32.mrb[0].mxu0
    %3840 = vmatprep.mubr.bf16.mxu0 0
    %3841 = vmatmul.mubr.bf16.gmra.mrb[0].mxu0 %v3448
    %v3842 = vpop.f32.mrb[0].mxu0
    %v3843 = vadd.f32 %v3748, %v3842
    %v3844 = vpop.f32.mrb[0].mxu0
    %v3845 = vpop.f32.mrb[0].mxu0
    %v3846 = vadd.f32 %v3749, %v3845
    %v3847 = vpop.f32.mrb[0].mxu0
    %3848 = vmatprep.mubr.bf16.mxu0 0
    %3849 = vmatmul.mubr.bf16.gmra.mrb[0].mxu0 %v3497
    %v3850 = vpop.f32.mrb[0].mxu0
    %v3851 = vadd.f32 %v3750, %v3850
    %v3852 = vpop.f32.mrb[0].mxu0
    %v3853 = vpop.f32.mrb[0].mxu0
    %v3854 = vadd.f32 %v3751, %v3853
    %v3855 = vpop.f32.mrb[0].mxu0
    %3856 = vmatprep.mubr.bf16.mxu0 0
    %3857 = vmatmul.mubr.bf16.gmra.mrb[0].mxu0 %v3521
    %v3858 = vpop.f32.mrb[0].mxu0
    %v3859 = vadd.f32 %v3752, %v3858
    %v3860 = vpop.f32.mrb[0].mxu0
    %v3861 = vpop.f32.mrb[0].mxu0
    %v3862 = vpop.f32.mrb[0].mxu0
    %3863 = vdwg.mxu0
    %v3879 = vcombine.high %v3803, %v3803
    %v3881 = vunpack.c.l.s4 1966171168
    %v3882 = vunpack.c.0.s8 %v3881
    %v3883 = vlaneseq
    %v3884 = vshrl.u32 %v3883, 7
    %v3885 = vsub.s32 %v3882, %v3884
    %v3886 = vrot.slane %v3803, %v3885
    %v3888 = vunpack.c.l.s4 1966171168
    %v3889 = vunpack.c.0.s8 %v3888
    %v3890 = vlaneseq
    %v3891 = vshrl.u32 %v3890, 7
    %v3892 = vsub.s32 %v3889, %v3891
    %v3893 = vrot.slane %v3879, %v3892
    %v3894 = vcombine.high %v3886, %v3886
    %v3895 = vcombine.high %v3893, %v3893
    %v3897 = vunpack.c.l.s4 1966171168
    %v3898 = vunpack.c.0.s8 %v3897
    %v3899 = vlaneseq
    %v3900 = vshrl.u32 %v3899, 7
    %v3901 = vsub.s32 %v3898, %v3900
    %v3902 = vrot.slane %v3886, %v3901
    %v3904 = vunpack.c.l.s4 1966171168
    %v3905 = vunpack.c.0.s8 %v3904
    %v3906 = vlaneseq
    %v3907 = vshrl.u32 %v3906, 7
    %v3908 = vsub.s32 %v3905, %v3907
    %v3909 = vrot.slane %v3893, %v3908
    %v3911 = vunpack.c.l.s4 1966171168
    %v3912 = vunpack.c.0.s8 %v3911
    %v3913 = vlaneseq
    %v3914 = vshrl.u32 %v3913, 7
    %v3915 = vsub.s32 %v3912, %v3914
    %v3916 = vrot.slane %v3894, %v3915
    %v3918 = vunpack.c.l.s4 1966171168
    %v3919 = vunpack.c.0.s8 %v3918
    %v3920 = vlaneseq
    %v3921 = vshrl.u32 %v3920, 7
    %v3922 = vsub.s32 %v3919, %v3921
    %v3923 = vrot.slane %v3895, %v3922
    %v3924 = vcombine.high %v3902, %v3902
    %v3925 = vcombine.high %v3909, %v3909
    %v3926 = vcombine.high %v3916, %v3916
    %v3927 = vcombine.high %v3923, %v3923
    %v3928 = vcombine.high %v3806, %v3806
    %v3930 = vunpack.c.l.s4 1966171168
    %v3931 = vunpack.c.0.s8 %v3930
    %v3932 = vlaneseq
    %v3933 = vshrl.u32 %v3932, 7
    %v3934 = vsub.s32 %v3931, %v3933
    %v3935 = vrot.slane %v3806, %v3934
    %v3937 = vunpack.c.l.s4 1966171168
    %v3938 = vunpack.c.0.s8 %v3937
    %v3939 = vlaneseq
    %v3940 = vshrl.u32 %v3939, 7
    %v3941 = vsub.s32 %v3938, %v3940
    %v3942 = vrot.slane %v3928, %v3941
    %v3943 = vcombine.high %v3935, %v3935
    %v3944 = vcombine.high %v3942, %v3942
    %v3946 = vunpack.c.l.s4 1966171168
    %v3947 = vunpack.c.0.s8 %v3946
    %v3948 = vlaneseq
    %v3949 = vshrl.u32 %v3948, 7
    %v3950 = vsub.s32 %v3947, %v3949
    %v3951 = vrot.slane %v3935, %v3950
    %v3953 = vunpack.c.l.s4 1966171168
    %v3954 = vunpack.c.0.s8 %v3953
    %v3955 = vlaneseq
    %v3956 = vshrl.u32 %v3955, 7
    %v3957 = vsub.s32 %v3954, %v3956
    %v3958 = vrot.slane %v3942, %v3957
    %v3960 = vunpack.c.l.s4 1966171168
    %v3961 = vunpack.c.0.s8 %v3960
    %v3962 = vlaneseq
    %v3963 = vshrl.u32 %v3962, 7
    %v3964 = vsub.s32 %v3961, %v3963
    %v3965 = vrot.slane %v3943, %v3964
    %v3967 = vunpack.c.l.s4 1966171168
    %v3968 = vunpack.c.0.s8 %v3967
    %v3969 = vlaneseq
    %v3970 = vshrl.u32 %v3969, 7
    %v3971 = vsub.s32 %v3968, %v3970
    %v3972 = vrot.slane %v3944, %v3971
    %v3973 = vcombine.high %v3951, %v3951
    %v3974 = vcombine.high %v3958, %v3958
    %v3975 = vcombine.high %v3965, %v3965
    %v3976 = vcombine.high %v3972, %v3972
    %v3977 = vcombine.high %v3811, %v3811
    %v3979 = vunpack.c.l.s4 1966171168
    %v3980 = vunpack.c.0.s8 %v3979
    %v3981 = vlaneseq
    %v3982 = vshrl.u32 %v3981, 7
    %v3983 = vsub.s32 %v3980, %v3982
    %v3984 = vrot.slane %v3811, %v3983
    %v3986 = vunpack.c.l.s4 1966171168
    %v3987 = vunpack.c.0.s8 %v3986
    %v3988 = vlaneseq
    %v3989 = vshrl.u32 %v3988, 7
    %v3990 = vsub.s32 %v3987, %v3989
    %v3991 = vrot.slane %v3977, %v3990
    %v3992 = vcombine.high %v3984, %v3984
    %v3993 = vcombine.high %v3991, %v3991
    %v3995 = vunpack.c.l.s4 1966171168
    %v3996 = vunpack.c.0.s8 %v3995
    %v3997 = vlaneseq
    %v3998 = vshrl.u32 %v3997, 7
    %v3999 = vsub.s32 %v3996, %v3998
    %v4000 = vrot.slane %v3984, %v3999
    %v4002 = vunpack.c.l.s4 1966171168
    %v4003 = vunpack.c.0.s8 %v4002
    %v4004 = vlaneseq
    %v4005 = vshrl.u32 %v4004, 7
    %v4006 = vsub.s32 %v4003, %v4005
    %v4007 = vrot.slane %v3991, %v4006
    %v4009 = vunpack.c.l.s4 1966171168
    %v4010 = vunpack.c.0.s8 %v4009
    %v4011 = vlaneseq
    %v4012 = vshrl.u32 %v4011, 7
    %v4013 = vsub.s32 %v4010, %v4012
    %v4014 = vrot.slane %v3992, %v4013
    %v4016 = vunpack.c.l.s4 1966171168
    %v4017 = vunpack.c.0.s8 %v4016
    %v4018 = vlaneseq
    %v4019 = vshrl.u32 %v4018, 7
    %v4020 = vsub.s32 %v4017, %v4019
    %v4021 = vrot.slane %v3993, %v4020
    %v4022 = vcombine.high %v4000, %v4000
    %v4023 = vcombine.high %v4007, %v4007
    %v4024 = vcombine.high %v4014, %v4014
    %v4025 = vcombine.high %v4021, %v4021
    %v4026 = vcombine.high %v3814, %v3814
    %v4028 = vunpack.c.l.s4 1966171168
    %v4029 = vunpack.c.0.s8 %v4028
    %v4030 = vlaneseq
    %v4031 = vshrl.u32 %v4030, 7
    %v4032 = vsub.s32 %v4029, %v4031
    %v4033 = vrot.slane %v3814, %v4032
    %v4035 = vunpack.c.l.s4 1966171168
    %v4036 = vunpack.c.0.s8 %v4035
    %v4037 = vlaneseq
    %v4038 = vshrl.u32 %v4037, 7
    %v4039 = vsub.s32 %v4036, %v4038
    %v4040 = vrot.slane %v4026, %v4039
    %v4041 = vcombine.high %v4033, %v4033
    %v4042 = vcombine.high %v4040, %v4040
    %v4044 = vunpack.c.l.s4 1966171168
    %v4045 = vunpack.c.0.s8 %v4044
    %v4046 = vlaneseq
    %v4047 = vshrl.u32 %v4046, 7
    %v4048 = vsub.s32 %v4045, %v4047
    %v4049 = vrot.slane %v4033, %v4048
    %v4051 = vunpack.c.l.s4 1966171168
    %v4052 = vunpack.c.0.s8 %v4051
    %v4053 = vlaneseq
    %v4054 = vshrl.u32 %v4053, 7
    %v4055 = vsub.s32 %v4052, %v4054
    %v4056 = vrot.slane %v4040, %v4055
    %v4058 = vunpack.c.l.s4 1966171168
    %v4059 = vunpack.c.0.s8 %v4058
    %v4060 = vlaneseq
    %v4061 = vshrl.u32 %v4060, 7
    %v4062 = vsub.s32 %v4059, %v4061
    %v4063 = vrot.slane %v4041, %v4062
    %v4065 = vunpack.c.l.s4 1966171168
    %v4066 = vunpack.c.0.s8 %v4065
    %v4067 = vlaneseq
    %v4068 = vshrl.u32 %v4067, 7
    %v4069 = vsub.s32 %v4066, %v4068
    %v4070 = vrot.slane %v4042, %v4069
    %v4071 = vcombine.high %v4049, %v4049
    %v4072 = vcombine.high %v4056, %v4056
    %v4073 = vcombine.high %v4063, %v4063
    %v4074 = vcombine.high %v4070, %v4070
    %v4075 = vcombine.high %v3819, %v3819
    %v4077 = vunpack.c.l.s4 1966171168
    %v4078 = vunpack.c.0.s8 %v4077
    %v4079 = vlaneseq
    %v4080 = vshrl.u32 %v4079, 7
    %v4081 = vsub.s32 %v4078, %v4080
    %v4082 = vrot.slane %v3819, %v4081
    %v4084 = vunpack.c.l.s4 1966171168
    %v4085 = vunpack.c.0.s8 %v4084
    %v4086 = vlaneseq
    %v4087 = vshrl.u32 %v4086, 7
    %v4088 = vsub.s32 %v4085, %v4087
    %v4089 = vrot.slane %v4075, %v4088
    %v4090 = vcombine.high %v4082, %v4082
    %v4091 = vcombine.high %v4089, %v4089
    %v4093 = vunpack.c.l.s4 1966171168
    %v4094 = vunpack.c.0.s8 %v4093
    %v4095 = vlaneseq
    %v4096 = vshrl.u32 %v4095, 7
    %v4097 = vsub.s32 %v4094, %v4096
    %v4098 = vrot.slane %v4082, %v4097
    %v4100 = vunpack.c.l.s4 1966171168
    %v4101 = vunpack.c.0.s8 %v4100
    %v4102 = vlaneseq
    %v4103 = vshrl.u32 %v4102, 7
    %v4104 = vsub.s32 %v4101, %v4103
    %v4105 = vrot.slane %v4089, %v4104
    %v4107 = vunpack.c.l.s4 1966171168
    %v4108 = vunpack.c.0.s8 %v4107
    %v4109 = vlaneseq
    %v4110 = vshrl.u32 %v4109, 7
    %v4111 = vsub.s32 %v4108, %v4110
    %v4112 = vrot.slane %v4090, %v4111
    %v4114 = vunpack.c.l.s4 1966171168
    %v4115 = vunpack.c.0.s8 %v4114
    %v4116 = vlaneseq
    %v4117 = vshrl.u32 %v4116, 7
    %v4118 = vsub.s32 %v4115, %v4117
    %v4119 = vrot.slane %v4091, %v4118
    %v4120 = vcombine.high %v4098, %v4098
    %v4121 = vcombine.high %v4105, %v4105
    %v4122 = vcombine.high %v4112, %v4112
    %v4123 = vcombine.high %v4119, %v4119
    %v4124 = vcombine.high %v3822, %v3822
    %v4126 = vunpack.c.l.s4 1966171168
    %v4127 = vunpack.c.0.s8 %v4126
    %v4128 = vlaneseq
    %v4129 = vshrl.u32 %v4128, 7
    %v4130 = vsub.s32 %v4127, %v4129
    %v4131 = vrot.slane %v3822, %v4130
    %v4133 = vunpack.c.l.s4 1966171168
    %v4134 = vunpack.c.0.s8 %v4133
    %v4135 = vlaneseq
    %v4136 = vshrl.u32 %v4135, 7
    %v4137 = vsub.s32 %v4134, %v4136
    %v4138 = vrot.slane %v4124, %v4137
    %v4139 = vcombine.high %v4131, %v4131
    %v4140 = vcombine.high %v4138, %v4138
    %v4142 = vunpack.c.l.s4 1966171168
    %v4143 = vunpack.c.0.s8 %v4142
    %v4144 = vlaneseq
    %v4145 = vshrl.u32 %v4144, 7
    %v4146 = vsub.s32 %v4143, %v4145
    %v4147 = vrot.slane %v4131, %v4146
    %v4149 = vunpack.c.l.s4 1966171168
    %v4150 = vunpack.c.0.s8 %v4149
    %v4151 = vlaneseq
    %v4152 = vshrl.u32 %v4151, 7
    %v4153 = vsub.s32 %v4150, %v4152
    %v4154 = vrot.slane %v4138, %v4153
    %v4156 = vunpack.c.l.s4 1966171168
    %v4157 = vunpack.c.0.s8 %v4156
    %v4158 = vlaneseq
    %v4159 = vshrl.u32 %v4158, 7
    %v4160 = vsub.s32 %v4157, %v4159
    %v4161 = vrot.slane %v4139, %v4160
    %v4163 = vunpack.c.l.s4 1966171168
    %v4164 = vunpack.c.0.s8 %v4163
    %v4165 = vlaneseq
    %v4166 = vshrl.u32 %v4165, 7
    %v4167 = vsub.s32 %v4164, %v4166
    %v4168 = vrot.slane %v4140, %v4167
    %v4169 = vcombine.high %v4147, %v4147
    %v4170 = vcombine.high %v4154, %v4154
    %v4171 = vcombine.high %v4161, %v4161
    %v4172 = vcombine.high %v4168, %v4168
    %v4173 = vcombine.high %v3827, %v3827
    %v4175 = vunpack.c.l.s4 1966171168
    %v4176 = vunpack.c.0.s8 %v4175
    %v4177 = vlaneseq
    %v4178 = vshrl.u32 %v4177, 7
    %v4179 = vsub.s32 %v4176, %v4178
    %v4180 = vrot.slane %v3827, %v4179
    %v4182 = vunpack.c.l.s4 1966171168
    %v4183 = vunpack.c.0.s8 %v4182
    %v4184 = vlaneseq
    %v4185 = vshrl.u32 %v4184, 7
    %v4186 = vsub.s32 %v4183, %v4185
    %v4187 = vrot.slane %v4173, %v4186
    %v4188 = vcombine.high %v4180, %v4180
    %v4189 = vcombine.high %v4187, %v4187
    %v4191 = vunpack.c.l.s4 1966171168
    %v4192 = vunpack.c.0.s8 %v4191
    %v4193 = vlaneseq
    %v4194 = vshrl.u32 %v4193, 7
    %v4195 = vsub.s32 %v4192, %v4194
    %v4196 = vrot.slane %v4180, %v4195
    %v4198 = vunpack.c.l.s4 1966171168
    %v4199 = vunpack.c.0.s8 %v4198
    %v4200 = vlaneseq
    %v4201 = vshrl.u32 %v4200, 7
    %v4202 = vsub.s32 %v4199, %v4201
    %v4203 = vrot.slane %v4187, %v4202
    %v4205 = vunpack.c.l.s4 1966171168
    %v4206 = vunpack.c.0.s8 %v4205
    %v4207 = vlaneseq
    %v4208 = vshrl.u32 %v4207, 7
    %v4209 = vsub.s32 %v4206, %v4208
    %v4210 = vrot.slane %v4188, %v4209
    %v4212 = vunpack.c.l.s4 1966171168
    %v4213 = vunpack.c.0.s8 %v4212
    %v4214 = vlaneseq
    %v4215 = vshrl.u32 %v4214, 7
    %v4216 = vsub.s32 %v4213, %v4215
    %v4217 = vrot.slane %v4189, %v4216
    %v4218 = vcombine.high %v4196, %v4196
    %v4219 = vcombine.high %v4203, %v4203
    %v4220 = vcombine.high %v4210, %v4210
    %v4221 = vcombine.high %v4217, %v4217
    %v4222 = vcombine.high %v3830, %v3830
    %v4224 = vunpack.c.l.s4 1966171168
    %v4225 = vunpack.c.0.s8 %v4224
    %v4226 = vlaneseq
    %v4227 = vshrl.u32 %v4226, 7
    %v4228 = vsub.s32 %v4225, %v4227
    %v4229 = vrot.slane %v3830, %v4228
    %v4231 = vunpack.c.l.s4 1966171168
    %v4232 = vunpack.c.0.s8 %v4231
    %v4233 = vlaneseq
    %v4234 = vshrl.u32 %v4233, 7
    %v4235 = vsub.s32 %v4232, %v4234
    %v4236 = vrot.slane %v4222, %v4235
    %v4237 = vcombine.high %v4229, %v4229
    %v4238 = vcombine.high %v4236, %v4236
    %v4240 = vunpack.c.l.s4 1966171168
    %v4241 = vunpack.c.0.s8 %v4240
    %v4242 = vlaneseq
    %v4243 = vshrl.u32 %v4242, 7
    %v4244 = vsub.s32 %v4241, %v4243
    %v4245 = vrot.slane %v4229, %v4244
    %v4247 = vunpack.c.l.s4 1966171168
    %v4248 = vunpack.c.0.s8 %v4247
    %v4249 = vlaneseq
    %v4250 = vshrl.u32 %v4249, 7
    %v4251 = vsub.s32 %v4248, %v4250
    %v4252 = vrot.slane %v4236, %v4251
    %v4254 = vunpack.c.l.s4 1966171168
    %v4255 = vunpack.c.0.s8 %v4254
    %v4256 = vlaneseq
    %v4257 = vshrl.u32 %v4256, 7
    %v4258 = vsub.s32 %v4255, %v4257
    %v4259 = vrot.slane %v4237, %v4258
    %v4261 = vunpack.c.l.s4 1966171168
    %v4262 = vunpack.c.0.s8 %v4261
    %v4263 = vlaneseq
    %v4264 = vshrl.u32 %v4263, 7
    %v4265 = vsub.s32 %v4262, %v4264
    %v4266 = vrot.slane %v4238, %v4265
    %v4267 = vcombine.high %v4245, %v4245
    %v4268 = vcombine.high %v4252, %v4252
    %v4269 = vcombine.high %v4259, %v4259
    %v4270 = vcombine.high %v4266, %v4266
    %v4271 = vcombine.high %v3835, %v3835
    %v4273 = vunpack.c.l.s4 1966171168
    %v4274 = vunpack.c.0.s8 %v4273
    %v4275 = vlaneseq
    %v4276 = vshrl.u32 %v4275, 7
    %v4277 = vsub.s32 %v4274, %v4276
    %v4278 = vrot.slane %v3835, %v4277
    %v4280 = vunpack.c.l.s4 1966171168
    %v4281 = vunpack.c.0.s8 %v4280
    %v4282 = vlaneseq
    %v4283 = vshrl.u32 %v4282, 7
    %v4284 = vsub.s32 %v4281, %v4283
    %v4285 = vrot.slane %v4271, %v4284
    %v4286 = vcombine.high %v4278, %v4278
    %v4287 = vcombine.high %v4285, %v4285
    %v4289 = vunpack.c.l.s4 1966171168
    %v4290 = vunpack.c.0.s8 %v4289
    %v4291 = vlaneseq
    %v4292 = vshrl.u32 %v4291, 7
    %v4293 = vsub.s32 %v4290, %v4292
    %v4294 = vrot.slane %v4278, %v4293
    %v4296 = vunpack.c.l.s4 1966171168
    %v4297 = vunpack.c.0.s8 %v4296
    %v4298 = vlaneseq
    %v4299 = vshrl.u32 %v4298, 7
    %v4300 = vsub.s32 %v4297, %v4299
    %v4301 = vrot.slane %v4285, %v4300
    %v4303 = vunpack.c.l.s4 1966171168
    %v4304 = vunpack.c.0.s8 %v4303
    %v4305 = vlaneseq
    %v4306 = vshrl.u32 %v4305, 7
    %v4307 = vsub.s32 %v4304, %v4306
    %v4308 = vrot.slane %v4286, %v4307
    %v4310 = vunpack.c.l.s4 1966171168
    %v4311 = vunpack.c.0.s8 %v4310
    %v4312 = vlaneseq
    %v4313 = vshrl.u32 %v4312, 7
    %v4314 = vsub.s32 %v4311, %v4313
    %v4315 = vrot.slane %v4287, %v4314
    %v4316 = vcombine.high %v4294, %v4294
    %v4317 = vcombine.high %v4301, %v4301
    %v4318 = vcombine.high %v4308, %v4308
    %v4319 = vcombine.high %v4315, %v4315
    %v4320 = vcombine.high %v3838, %v3838
    %v4322 = vunpack.c.l.s4 1966171168
    %v4323 = vunpack.c.0.s8 %v4322
    %v4324 = vlaneseq
    %v4325 = vshrl.u32 %v4324, 7
    %v4326 = vsub.s32 %v4323, %v4325
    %v4327 = vrot.slane %v3838, %v4326
    %v4329 = vunpack.c.l.s4 1966171168
    %v4330 = vunpack.c.0.s8 %v4329
    %v4331 = vlaneseq
    %v4332 = vshrl.u32 %v4331, 7
    %v4333 = vsub.s32 %v4330, %v4332
    %v4334 = vrot.slane %v4320, %v4333
    %v4335 = vcombine.high %v4327, %v4327
    %v4336 = vcombine.high %v4334, %v4334
    %v4338 = vunpack.c.l.s4 1966171168
    %v4339 = vunpack.c.0.s8 %v4338
    %v4340 = vlaneseq
    %v4341 = vshrl.u32 %v4340, 7
    %v4342 = vsub.s32 %v4339, %v4341
    %v4343 = vrot.slane %v4327, %v4342
    %v4345 = vunpack.c.l.s4 1966171168
    %v4346 = vunpack.c.0.s8 %v4345
    %v4347 = vlaneseq
    %v4348 = vshrl.u32 %v4347, 7
    %v4349 = vsub.s32 %v4346, %v4348
    %v4350 = vrot.slane %v4334, %v4349
    %v4352 = vunpack.c.l.s4 1966171168
    %v4353 = vunpack.c.0.s8 %v4352
    %v4354 = vlaneseq
    %v4355 = vshrl.u32 %v4354, 7
    %v4356 = vsub.s32 %v4353, %v4355
    %v4357 = vrot.slane %v4335, %v4356
    %v4359 = vunpack.c.l.s4 1966171168
    %v4360 = vunpack.c.0.s8 %v4359
    %v4361 = vlaneseq
    %v4362 = vshrl.u32 %v4361, 7
    %v4363 = vsub.s32 %v4360, %v4362
    %v4364 = vrot.slane %v4336, %v4363
    %v4365 = vcombine.high %v4343, %v4343
    %v4366 = vcombine.high %v4350, %v4350
    %v4367 = vcombine.high %v4357, %v4357
    %v4368 = vcombine.high %v4364, %v4364
    %v4369 = vcombine.high %v3843, %v3843
    %v4371 = vunpack.c.l.s4 1966171168
    %v4372 = vunpack.c.0.s8 %v4371
    %v4373 = vlaneseq
    %v4374 = vshrl.u32 %v4373, 7
    %v4375 = vsub.s32 %v4372, %v4374
    %v4376 = vrot.slane %v3843, %v4375
    %v4378 = vunpack.c.l.s4 1966171168
    %v4379 = vunpack.c.0.s8 %v4378
    %v4380 = vlaneseq
    %v4381 = vshrl.u32 %v4380, 7
    %v4382 = vsub.s32 %v4379, %v4381
    %v4383 = vrot.slane %v4369, %v4382
    %v4384 = vcombine.high %v4376, %v4376
    %v4385 = vcombine.high %v4383, %v4383
    %v4387 = vunpack.c.l.s4 1966171168
    %v4388 = vunpack.c.0.s8 %v4387
    %v4389 = vlaneseq
    %v4390 = vshrl.u32 %v4389, 7
    %v4391 = vsub.s32 %v4388, %v4390
    %v4392 = vrot.slane %v4376, %v4391
    %v4394 = vunpack.c.l.s4 1966171168
    %v4395 = vunpack.c.0.s8 %v4394
    %v4396 = vlaneseq
    %v4397 = vshrl.u32 %v4396, 7
    %v4398 = vsub.s32 %v4395, %v4397
    %v4399 = vrot.slane %v4383, %v4398
    %v4401 = vunpack.c.l.s4 1966171168
    %v4402 = vunpack.c.0.s8 %v4401
    %v4403 = vlaneseq
    %v4404 = vshrl.u32 %v4403, 7
    %v4405 = vsub.s32 %v4402, %v4404
    %v4406 = vrot.slane %v4384, %v4405
    %v4408 = vunpack.c.l.s4 1966171168
    %v4409 = vunpack.c.0.s8 %v4408
    %v4410 = vlaneseq
    %v4411 = vshrl.u32 %v4410, 7
    %v4412 = vsub.s32 %v4409, %v4411
    %v4413 = vrot.slane %v4385, %v4412
    %v4414 = vcombine.high %v4392, %v4392
    %v4415 = vcombine.high %v4399, %v4399
    %v4416 = vcombine.high %v4406, %v4406
    %v4417 = vcombine.high %v4413, %v4413
    %v4418 = vcombine.high %v3846, %v3846
    %v4420 = vunpack.c.l.s4 1966171168
    %v4421 = vunpack.c.0.s8 %v4420
    %v4422 = vlaneseq
    %v4423 = vshrl.u32 %v4422, 7
    %v4424 = vsub.s32 %v4421, %v4423
    %v4425 = vrot.slane %v3846, %v4424
    %v4427 = vunpack.c.l.s4 1966171168
    %v4428 = vunpack.c.0.s8 %v4427
    %v4429 = vlaneseq
    %v4430 = vshrl.u32 %v4429, 7
    %v4431 = vsub.s32 %v4428, %v4430
    %v4432 = vrot.slane %v4418, %v4431
    %v4433 = vcombine.high %v4425, %v4425
    %v4434 = vcombine.high %v4432, %v4432
    %v4436 = vunpack.c.l.s4 1966171168
    %v4437 = vunpack.c.0.s8 %v4436
    %v4438 = vlaneseq
    %v4439 = vshrl.u32 %v4438, 7
    %v4440 = vsub.s32 %v4437, %v4439
    %v4441 = vrot.slane %v4425, %v4440
    %v4443 = vunpack.c.l.s4 1966171168
    %v4444 = vunpack.c.0.s8 %v4443
    %v4445 = vlaneseq
    %v4446 = vshrl.u32 %v4445, 7
    %v4447 = vsub.s32 %v4444, %v4446
    %v4448 = vrot.slane %v4432, %v4447
    %v4450 = vunpack.c.l.s4 1966171168
    %v4451 = vunpack.c.0.s8 %v4450
    %v4452 = vlaneseq
    %v4453 = vshrl.u32 %v4452, 7
    %v4454 = vsub.s32 %v4451, %v4453
    %v4455 = vrot.slane %v4433, %v4454
    %v4457 = vunpack.c.l.s4 1966171168
    %v4458 = vunpack.c.0.s8 %v4457
    %v4459 = vlaneseq
    %v4460 = vshrl.u32 %v4459, 7
    %v4461 = vsub.s32 %v4458, %v4460
    %v4462 = vrot.slane %v4434, %v4461
    %v4463 = vcombine.high %v4441, %v4441
    %v4464 = vcombine.high %v4448, %v4448
    %v4465 = vcombine.high %v4455, %v4455
    %v4466 = vcombine.high %v4462, %v4462
    %v4467 = vcombine.high %v3851, %v3851
    %v4469 = vunpack.c.l.s4 1966171168
    %v4470 = vunpack.c.0.s8 %v4469
    %v4471 = vlaneseq
    %v4472 = vshrl.u32 %v4471, 7
    %v4473 = vsub.s32 %v4470, %v4472
    %v4474 = vrot.slane %v3851, %v4473
    %v4476 = vunpack.c.l.s4 1966171168
    %v4477 = vunpack.c.0.s8 %v4476
    %v4478 = vlaneseq
    %v4479 = vshrl.u32 %v4478, 7
    %v4480 = vsub.s32 %v4477, %v4479
    %v4481 = vrot.slane %v4467, %v4480
    %v4482 = vcombine.high %v4474, %v4474
    %v4483 = vcombine.high %v4481, %v4481
    %v4485 = vunpack.c.l.s4 1966171168
    %v4486 = vunpack.c.0.s8 %v4485
    %v4487 = vlaneseq
    %v4488 = vshrl.u32 %v4487, 7
    %v4489 = vsub.s32 %v4486, %v4488
    %v4490 = vrot.slane %v4474, %v4489
    %v4492 = vunpack.c.l.s4 1966171168
    %v4493 = vunpack.c.0.s8 %v4492
    %v4494 = vlaneseq
    %v4495 = vshrl.u32 %v4494, 7
    %v4496 = vsub.s32 %v4493, %v4495
    %v4497 = vrot.slane %v4481, %v4496
    %v4499 = vunpack.c.l.s4 1966171168
    %v4500 = vunpack.c.0.s8 %v4499
    %v4501 = vlaneseq
    %v4502 = vshrl.u32 %v4501, 7
    %v4503 = vsub.s32 %v4500, %v4502
    %v4504 = vrot.slane %v4482, %v4503
    %v4506 = vunpack.c.l.s4 1966171168
    %v4507 = vunpack.c.0.s8 %v4506
    %v4508 = vlaneseq
    %v4509 = vshrl.u32 %v4508, 7
    %v4510 = vsub.s32 %v4507, %v4509
    %v4511 = vrot.slane %v4483, %v4510
    %v4512 = vcombine.high %v4490, %v4490
    %v4513 = vcombine.high %v4497, %v4497
    %v4514 = vcombine.high %v4504, %v4504
    %v4515 = vcombine.high %v4511, %v4511
    %v4516 = vcombine.high %v3854, %v3854
    %v4518 = vunpack.c.l.s4 1966171168
    %v4519 = vunpack.c.0.s8 %v4518
    %v4520 = vlaneseq
    %v4521 = vshrl.u32 %v4520, 7
    %v4522 = vsub.s32 %v4519, %v4521
    %v4523 = vrot.slane %v3854, %v4522
    %v4525 = vunpack.c.l.s4 1966171168
    %v4526 = vunpack.c.0.s8 %v4525
    %v4527 = vlaneseq
    %v4528 = vshrl.u32 %v4527, 7
    %v4529 = vsub.s32 %v4526, %v4528
    %v4530 = vrot.slane %v4516, %v4529
    %v4531 = vcombine.high %v4523, %v4523
    %v4532 = vcombine.high %v4530, %v4530
    %v4534 = vunpack.c.l.s4 1966171168
    %v4535 = vunpack.c.0.s8 %v4534
    %v4536 = vlaneseq
    %v4537 = vshrl.u32 %v4536, 7
    %v4538 = vsub.s32 %v4535, %v4537
    %v4539 = vrot.slane %v4523, %v4538
    %v4541 = vunpack.c.l.s4 1966171168
    %v4542 = vunpack.c.0.s8 %v4541
    %v4543 = vlaneseq
    %v4544 = vshrl.u32 %v4543, 7
    %v4545 = vsub.s32 %v4542, %v4544
    %v4546 = vrot.slane %v4530, %v4545
    %v4548 = vunpack.c.l.s4 1966171168
    %v4549 = vunpack.c.0.s8 %v4548
    %v4550 = vlaneseq
    %v4551 = vshrl.u32 %v4550, 7
    %v4552 = vsub.s32 %v4549, %v4551
    %v4553 = vrot.slane %v4531, %v4552
    %v4555 = vunpack.c.l.s4 1966171168
    %v4556 = vunpack.c.0.s8 %v4555
    %v4557 = vlaneseq
    %v4558 = vshrl.u32 %v4557, 7
    %v4559 = vsub.s32 %v4556, %v4558
    %v4560 = vrot.slane %v4532, %v4559
    %v4561 = vcombine.high %v4539, %v4539
    %v4562 = vcombine.high %v4546, %v4546
    %v4563 = vcombine.high %v4553, %v4553
    %v4564 = vcombine.high %v4560, %v4560
    %v4565 = vcombine.high %v3859, %v3859
    %v4567 = vunpack.c.l.s4 1966171168
    %v4568 = vunpack.c.0.s8 %v4567
    %v4569 = vlaneseq
    %v4570 = vshrl.u32 %v4569, 7
    %v4571 = vsub.s32 %v4568, %v4570
    %v4572 = vrot.slane %v3859, %v4571
    %v4574 = vunpack.c.l.s4 1966171168
    %v4575 = vunpack.c.0.s8 %v4574
    %v4576 = vlaneseq
    %v4577 = vshrl.u32 %v4576, 7
    %v4578 = vsub.s32 %v4575, %v4577
    %v4579 = vrot.slane %v4565, %v4578
    %v4580 = vcombine.high %v4572, %v4572
    %v4581 = vcombine.high %v4579, %v4579
    %v4583 = vunpack.c.l.s4 1966171168
    %v4584 = vunpack.c.0.s8 %v4583
    %v4585 = vlaneseq
    %v4586 = vshrl.u32 %v4585, 7
    %v4587 = vsub.s32 %v4584, %v4586
    %v4588 = vrot.slane %v4572, %v4587
    %v4590 = vunpack.c.l.s4 1966171168
    %v4591 = vunpack.c.0.s8 %v4590
    %v4592 = vlaneseq
    %v4593 = vshrl.u32 %v4592, 7
    %v4594 = vsub.s32 %v4591, %v4593
    %v4595 = vrot.slane %v4579, %v4594
    %v4597 = vunpack.c.l.s4 1966171168
    %v4598 = vunpack.c.0.s8 %v4597
    %v4599 = vlaneseq
    %v4600 = vshrl.u32 %v4599, 7
    %v4601 = vsub.s32 %v4598, %v4600
    %v4602 = vrot.slane %v4580, %v4601
    %v4604 = vunpack.c.l.s4 1966171168
    %v4605 = vunpack.c.0.s8 %v4604
    %v4606 = vlaneseq
    %v4607 = vshrl.u32 %v4606, 7
    %v4608 = vsub.s32 %v4605, %v4607
    %v4609 = vrot.slane %v4581, %v4608
    %v4610 = vcombine.high %v4588, %v4588
    %v4611 = vcombine.high %v4595, %v4595
    %v4612 = vcombine.high %v4602, %v4602
    %v4613 = vcombine.high %v4609, %v4609
    %v4734 = vmax.f32 %v3902, 0.0
    %v4735 = vmax.f32 %v3916, 0.0
    %v4736 = vmax.f32 %v3924, 0.0
    %v4737 = vmax.f32 %v3926, 0.0
    %v4738 = vmax.f32 %v3909, 0.0
    %v4739 = vmax.f32 %v3923, 0.0
    %v4740 = vmax.f32 %v3925, 0.0
    %v4741 = vmax.f32 %v3927, 0.0
    %v4742 = vmax.f32 %v3951, 0.0
    %v4743 = vmax.f32 %v3965, 0.0
    %v4744 = vmax.f32 %v3973, 0.0
    %v4745 = vmax.f32 %v3975, 0.0
    %v4746 = vmax.f32 %v3958, 0.0
    %v4747 = vmax.f32 %v3972, 0.0
    %v4748 = vmax.f32 %v3974, 0.0
    %v4749 = vmax.f32 %v3976, 0.0
    %v4750 = vmax.f32 %v4000, 0.0
    %v4751 = vmax.f32 %v4014, 0.0
    %v4752 = vmax.f32 %v4022, 0.0
    %v4753 = vmax.f32 %v4024, 0.0
    %v4754 = vmax.f32 %v4007, 0.0
    %v4755 = vmax.f32 %v4021, 0.0
    %v4756 = vmax.f32 %v4023, 0.0
    %v4757 = vmax.f32 %v4025, 0.0
    %v4758 = vmax.f32 %v4049, 0.0
    %v4759 = vmax.f32 %v4063, 0.0
    %v4760 = vmax.f32 %v4071, 0.0
    %v4761 = vmax.f32 %v4073, 0.0
    %v4762 = vmax.f32 %v4056, 0.0
    %v4763 = vmax.f32 %v4070, 0.0
    %v4764 = vmax.f32 %v4072, 0.0
    %v4765 = vmax.f32 %v4074, 0.0
    %v4766 = vmax.f32 %v4098, 0.0
    %v4767 = vmax.f32 %v4112, 0.0
    %v4768 = vmax.f32 %v4120, 0.0
    %v4769 = vmax.f32 %v4122, 0.0
    %v4770 = vmax.f32 %v4105, 0.0
    %v4771 = vmax.f32 %v4119, 0.0
    %v4772 = vmax.f32 %v4121, 0.0
    %v4773 = vmax.f32 %v4123, 0.0
    %v4774 = vmax.f32 %v4147, 0.0
    %v4775 = vmax.f32 %v4161, 0.0
    %v4776 = vmax.f32 %v4169, 0.0
    %v4777 = vmax.f32 %v4171, 0.0
    %v4778 = vmax.f32 %v4154, 0.0
    %v4779 = vmax.f32 %v4168, 0.0
    %v4780 = vmax.f32 %v4170, 0.0
    %v4781 = vmax.f32 %v4172, 0.0
    %v4782 = vmax.f32 %v4196, 0.0
    %v4783 = vmax.f32 %v4210, 0.0
    %v4784 = vmax.f32 %v4218, 0.0
    %v4785 = vmax.f32 %v4220, 0.0
    %v4786 = vmax.f32 %v4203, 0.0
    %v4787 = vmax.f32 %v4217, 0.0
    %v4788 = vmax.f32 %v4219, 0.0
    %v4789 = vmax.f32 %v4221, 0.0
    %v4790 = vmax.f32 %v4245, 0.0
    %v4791 = vmax.f32 %v4259, 0.0
    %v4792 = vmax.f32 %v4267, 0.0
    %v4793 = vmax.f32 %v4269, 0.0
    %v4794 = vmax.f32 %v4252, 0.0
    %v4795 = vmax.f32 %v4266, 0.0
    %v4796 = vmax.f32 %v4268, 0.0
    %v4797 = vmax.f32 %v4270, 0.0
    %v4798 = vmax.f32 %v4294, 0.0
    %v4799 = vmax.f32 %v4308, 0.0
    %v4800 = vmax.f32 %v4316, 0.0
    %v4801 = vmax.f32 %v4318, 0.0
    %v4802 = vmax.f32 %v4301, 0.0
    %v4803 = vmax.f32 %v4315, 0.0
    %v4804 = vmax.f32 %v4317, 0.0
    %v4805 = vmax.f32 %v4319, 0.0
    %v4806 = vmax.f32 %v4343, 0.0
    %v4807 = vmax.f32 %v4357, 0.0
    %v4808 = vmax.f32 %v4365, 0.0
    %v4809 = vmax.f32 %v4367, 0.0
    %v4810 = vmax.f32 %v4350, 0.0
    %v4811 = vmax.f32 %v4364, 0.0
    %v4812 = vmax.f32 %v4366, 0.0
    %v4813 = vmax.f32 %v4368, 0.0
    %v4814 = vmax.f32 %v4392, 0.0
    %v4815 = vmax.f32 %v4406, 0.0
    %v4816 = vmax.f32 %v4414, 0.0
    %v4817 = vmax.f32 %v4416, 0.0
    %v4818 = vmax.f32 %v4399, 0.0
    %v4819 = vmax.f32 %v4413, 0.0
    %v4820 = vmax.f32 %v4415, 0.0
    %v4821 = vmax.f32 %v4417, 0.0
    %v4822 = vmax.f32 %v4441, 0.0
    %v4823 = vmax.f32 %v4455, 0.0
    %v4824 = vmax.f32 %v4463, 0.0
    %v4825 = vmax.f32 %v4465, 0.0
    %v4826 = vmax.f32 %v4448, 0.0
    %v4827 = vmax.f32 %v4462, 0.0
    %v4828 = vmax.f32 %v4464, 0.0
    %v4829 = vmax.f32 %v4466, 0.0
    %v4830 = vmax.f32 %v4490, 0.0
    %v4831 = vmax.f32 %v4504, 0.0
    %v4832 = vmax.f32 %v4512, 0.0
    %v4833 = vmax.f32 %v4514, 0.0
    %v4834 = vmax.f32 %v4497, 0.0
    %v4835 = vmax.f32 %v4511, 0.0
    %v4836 = vmax.f32 %v4513, 0.0
    %v4837 = vmax.f32 %v4515, 0.0
    %v4838 = vmax.f32 %v4539, 0.0
    %v4839 = vmax.f32 %v4553, 0.0
    %v4840 = vmax.f32 %v4561, 0.0
    %v4841 = vmax.f32 %v4563, 0.0
    %v4842 = vmax.f32 %v4546, 0.0
    %v4843 = vmax.f32 %v4560, 0.0
    %v4844 = vmax.f32 %v4562, 0.0
    %v4845 = vmax.f32 %v4564, 0.0
    %v4846 = vmax.f32 %v4588, 0.0
    %v4847 = vmax.f32 %v4602, 0.0
    %v4848 = vmax.f32 %v4610, 0.0
    %v4849 = vmax.f32 %v4612, 0.0
    %v4850 = vmax.f32 %v4595, 0.0
    %v4851 = vmax.f32 %v4609, 0.0
    %v4852 = vmax.f32 %v4611, 0.0
    %v4853 = vmax.f32 %v4613, 0.0
    %v4854 = vlaneseq
    %v4855 = vshrl.u32 %v4854, 7
    %v4856 = vadd.s32 %v4855, 8
    %v4857 = vld [vmem:[%s4] sm:$0x1]
    %v4858 = vlaneseq
    %v4859 = vshrl.u32 %v4858, 7
    %v4860 = vsub.s32 0, %v4859
    %v4861 = vrot.slane %v4857, %v4860
    %vm4862 = vcmp.lt.s32.totalorder %v4855, %v4861
    %vm4863 = vcmp.lt.s32.totalorder %v4856, %v4861
    %v4864 = vsel %vm4862, 1.0, 0.0
    %v4865 = vsel %vm4863, 1.0, 0.0
    %v4868 = vcombine.high %v4864, %v4864
    %v4870 = vunpack.c.l.s4 1966171168
    %v4871 = vunpack.c.0.s8 %v4870
    %v4872 = vlaneseq
    %v4873 = vshrl.u32 %v4872, 7
    %v4874 = vsub.s32 %v4871, %v4873
    %v4875 = vrot.slane %v4864, %v4874
    %v4877 = vunpack.c.l.s4 1966171168
    %v4878 = vunpack.c.0.s8 %v4877
    %v4879 = vlaneseq
    %v4880 = vshrl.u32 %v4879, 7
    %v4881 = vsub.s32 %v4878, %v4880
    %v4882 = vrot.slane %v4868, %v4881
    %v4883 = vcombine.high %v4875, %v4875
    %v4884 = vcombine.high %v4882, %v4882
    %v4886 = vunpack.c.l.s4 1966171168
    %v4887 = vunpack.c.0.s8 %v4886
    %v4888 = vlaneseq
    %v4889 = vshrl.u32 %v4888, 7
    %v4890 = vsub.s32 %v4887, %v4889
    %v4891 = vrot.slane %v4875, %v4890
    %v4893 = vunpack.c.l.s4 1966171168
    %v4894 = vunpack.c.0.s8 %v4893
    %v4895 = vlaneseq
    %v4896 = vshrl.u32 %v4895, 7
    %v4897 = vsub.s32 %v4894, %v4896
    %v4898 = vrot.slane %v4882, %v4897
    %v4900 = vunpack.c.l.s4 1966171168
    %v4901 = vunpack.c.0.s8 %v4900
    %v4902 = vlaneseq
    %v4903 = vshrl.u32 %v4902, 7
    %v4904 = vsub.s32 %v4901, %v4903
    %v4905 = vrot.slane %v4883, %v4904
    %v4907 = vunpack.c.l.s4 1966171168
    %v4908 = vunpack.c.0.s8 %v4907
    %v4909 = vlaneseq
    %v4910 = vshrl.u32 %v4909, 7
    %v4911 = vsub.s32 %v4908, %v4910
    %v4912 = vrot.slane %v4884, %v4911
    %v4913 = vcombine.high %v4891, %v4891
    %v4914 = vcombine.high %v4898, %v4898
    %v4915 = vcombine.high %v4905, %v4905
    %v4916 = vcombine.high %v4912, %v4912
    %v4917 = vcombine.high %v4865, %v4865
    %v4919 = vunpack.c.l.s4 1966171168
    %v4920 = vunpack.c.0.s8 %v4919
    %v4921 = vlaneseq
    %v4922 = vshrl.u32 %v4921, 7
    %v4923 = vsub.s32 %v4920, %v4922
    %v4924 = vrot.slane %v4865, %v4923
    %v4926 = vunpack.c.l.s4 1966171168
    %v4927 = vunpack.c.0.s8 %v4926
    %v4928 = vlaneseq
    %v4929 = vshrl.u32 %v4928, 7
    %v4930 = vsub.s32 %v4927, %v4929
    %v4931 = vrot.slane %v4917, %v4930
    %v4932 = vcombine.high %v4924, %v4924
    %v4933 = vcombine.high %v4931, %v4931
    %v4935 = vunpack.c.l.s4 1966171168
    %v4936 = vunpack.c.0.s8 %v4935
    %v4937 = vlaneseq
    %v4938 = vshrl.u32 %v4937, 7
    %v4939 = vsub.s32 %v4936, %v4938
    %v4940 = vrot.slane %v4924, %v4939
    %v4942 = vunpack.c.l.s4 1966171168
    %v4943 = vunpack.c.0.s8 %v4942
    %v4944 = vlaneseq
    %v4945 = vshrl.u32 %v4944, 7
    %v4946 = vsub.s32 %v4943, %v4945
    %v4947 = vrot.slane %v4931, %v4946
    %v4949 = vunpack.c.l.s4 1966171168
    %v4950 = vunpack.c.0.s8 %v4949
    %v4951 = vlaneseq
    %v4952 = vshrl.u32 %v4951, 7
    %v4953 = vsub.s32 %v4950, %v4952
    %v4954 = vrot.slane %v4932, %v4953
    %v4956 = vunpack.c.l.s4 1966171168
    %v4957 = vunpack.c.0.s8 %v4956
    %v4958 = vlaneseq
    %v4959 = vshrl.u32 %v4958, 7
    %v4960 = vsub.s32 %v4957, %v4959
    %v4961 = vrot.slane %v4933, %v4960
    %v4962 = vcombine.high %v4940, %v4940
    %v4963 = vcombine.high %v4947, %v4947
    %v4964 = vcombine.high %v4954, %v4954
    %v4980 = vmul.f32 %v4734, %v4891
    %v4981 = vmul.f32 %v4735, %v4905
    %v4982 = vmul.f32 %v4736, %v4913
    %v4983 = vmul.f32 %v4737, %v4915
    %v4984 = vmul.f32 %v4738, %v4898
    %v4985 = vmul.f32 %v4739, %v4912
    %v4986 = vmul.f32 %v4740, %v4914
    %v4987 = vmul.f32 %v4741, %v4916
    %v4988 = vmul.f32 %v4742, %v4940
    %v4989 = vmul.f32 %v4743, %v4954
    %v4990 = vmul.f32 %v4744, %v4962
    %v4991 = vmul.f32 %v4745, %v4964
    %v4992 = vmul.f32 %v4746, %v4947
    %v4993 = vmul.f32 %v4747, %v4961
    %v4994 = vmul.f32 %v4748, %v4963
    %v4995 = vmul.f32 %v4749, %v4891
    %v4996 = vmul.f32 %v4750, %v4905
    %v4997 = vmul.f32 %v4751, %v4913
    %v4998 = vmul.f32 %v4752, %v4915
    %v4999 = vmul.f32 %v4753, %v4898
    %v5000 = vmul.f32 %v4754, %v4912
    %v5001 = vmul.f32 %v4755, %v4914
    %v5002 = vmul.f32 %v4756, %v4916
    %v5003 = vmul.f32 %v4757, %v4940
    %v5004 = vmul.f32 %v4758, %v4954
    %v5005 = vmul.f32 %v4759, %v4962
    %v5006 = vmul.f32 %v4760, %v4964
    %v5007 = vmul.f32 %v4761, %v4947
    %v5008 = vmul.f32 %v4762, %v4961
    %v5009 = vmul.f32 %v4763, %v4963
    %v5010 = vmul.f32 %v4764, %v4891
    %v5011 = vmul.f32 %v4765, %v4905
    %v5012 = vmul.f32 %v4766, %v4913
    %v5013 = vmul.f32 %v4767, %v4915
    %v5014 = vmul.f32 %v4768, %v4898
    %v5015 = vmul.f32 %v4769, %v4912
    %v5016 = vmul.f32 %v4770, %v4914
    %v5017 = vmul.f32 %v4771, %v4916
    %v5018 = vmul.f32 %v4772, %v4940
    %v5019 = vmul.f32 %v4773, %v4954
    %v5020 = vmul.f32 %v4774, %v4962
    %v5021 = vmul.f32 %v4775, %v4964
    %v5022 = vmul.f32 %v4776, %v4947
    %v5023 = vmul.f32 %v4777, %v4961
    %v5024 = vmul.f32 %v4778, %v4963
    %v5025 = vmul.f32 %v4779, %v4891
    %v5026 = vmul.f32 %v4780, %v4905
    %v5027 = vmul.f32 %v4781, %v4913
    %v5028 = vmul.f32 %v4782, %v4915
    %v5029 = vmul.f32 %v4783, %v4898
    %v5030 = vmul.f32 %v4784, %v4912
    %v5031 = vmul.f32 %v4785, %v4914
    %v5032 = vmul.f32 %v4786, %v4916
    %v5033 = vmul.f32 %v4787, %v4940
    %v5034 = vmul.f32 %v4788, %v4954
    %v5035 = vmul.f32 %v4789, %v4962
    %v5036 = vmul.f32 %v4790, %v4964
    %v5037 = vmul.f32 %v4791, %v4947
    %v5038 = vmul.f32 %v4792, %v4961
    %v5039 = vmul.f32 %v4793, %v4963
    %v5040 = vmul.f32 %v4794, %v4891
    %v5041 = vmul.f32 %v4795, %v4905
    %v5042 = vmul.f32 %v4796, %v4913
    %v5043 = vmul.f32 %v4797, %v4915
    %v5044 = vmul.f32 %v4798, %v4898
    %v5045 = vmul.f32 %v4799, %v4912
    %v5046 = vmul.f32 %v4800, %v4914
    %v5047 = vmul.f32 %v4801, %v4916
    %v5048 = vmul.f32 %v4802, %v4940
    %v5049 = vmul.f32 %v4803, %v4954
    %v5050 = vmul.f32 %v4804, %v4962
    %v5051 = vmul.f32 %v4805, %v4964
    %v5052 = vmul.f32 %v4806, %v4947
    %v5053 = vmul.f32 %v4807, %v4961
    %v5054 = vmul.f32 %v4808, %v4963
    %v5055 = vmul.f32 %v4809, %v4891
    %v5056 = vmul.f32 %v4810, %v4905
    %v5057 = vmul.f32 %v4811, %v4913
    %v5058 = vmul.f32 %v4812, %v4915
    %v5059 = vmul.f32 %v4813, %v4898
    %v5060 = vmul.f32 %v4814, %v4912
    %v5061 = vmul.f32 %v4815, %v4914
    %v5062 = vmul.f32 %v4816, %v4916
    %v5063 = vmul.f32 %v4817, %v4940
    %v5064 = vmul.f32 %v4818, %v4954
    %v5065 = vmul.f32 %v4819, %v4962
    %v5066 = vmul.f32 %v4820, %v4964
    %v5067 = vmul.f32 %v4821, %v4947
    %v5068 = vmul.f32 %v4822, %v4961
    %v5069 = vmul.f32 %v4823, %v4963
    %v5070 = vmul.f32 %v4824, %v4891
    %v5071 = vmul.f32 %v4825, %v4905
    %v5072 = vmul.f32 %v4826, %v4913
    %v5073 = vmul.f32 %v4827, %v4915
    %v5074 = vmul.f32 %v4828, %v4898
    %v5075 = vmul.f32 %v4829, %v4912
    %v5076 = vmul.f32 %v4830, %v4914
    %v5077 = vmul.f32 %v4831, %v4916
    %v5078 = vmul.f32 %v4832, %v4940
    %v5079 = vmul.f32 %v4833, %v4954
    %v5080 = vmul.f32 %v4834, %v4962
    %v5081 = vmul.f32 %v4835, %v4964
    %v5082 = vmul.f32 %v4836, %v4947
    %v5083 = vmul.f32 %v4837, %v4961
    %v5084 = vmul.f32 %v4838, %v4963
    %v5085 = vmul.f32 %v4839, %v4891
    %v5086 = vmul.f32 %v4840, %v4905
    %v5087 = vmul.f32 %v4841, %v4913
    %v5088 = vmul.f32 %v4842, %v4915
    %v5089 = vmul.f32 %v4843, %v4898
    %v5090 = vmul.f32 %v4844, %v4912
    %v5091 = vmul.f32 %v4845, %v4914
    %v5092 = vmul.f32 %v4846, %v4916
    %v5093 = vmul.f32 %v4847, %v4940
    %v5094 = vmul.f32 %v4848, %v4954
    %v5095 = vmul.f32 %v4849, %v4962
    %v5096 = vmul.f32 %v4850, %v4964
    %v5097 = vmul.f32 %v4851, %v4947
    %v5098 = vmul.f32 %v4852, %v4961
    %v5099 = vmul.f32 %v4853, %v4963
    %v5220 = vcombine.low %v4980, %v4981
    %v5221 = vcombine.low %v4982, %v4983
    %v5222 = vcombine.low %v4984, %v4985
    %v5223 = vcombine.low %v4986, %v4987
    %v5225 = vunpack.c.l.s4 1966171168
    %v5226 = vunpack.c.0.s8 %v5225
    %v5227 = vlaneseq
    %v5228 = vshrl.u32 %v5227, 7
    %v5229 = vsub.s32 %v5226, %v5228
    %v5230 = vrot.slane %v5220, %v5229
    %v5232 = vunpack.c.l.s4 1966171168
    %v5233 = vunpack.c.0.s8 %v5232
    %v5234 = vlaneseq
    %v5235 = vshrl.u32 %v5234, 7
    %v5236 = vsub.s32 %v5233, %v5235
    %v5237 = vrot.slane %v5221, %v5236
    %v5239 = vunpack.c.l.s4 1966171168
    %v5240 = vunpack.c.0.s8 %v5239
    %v5241 = vlaneseq
    %v5242 = vshrl.u32 %v5241, 7
    %v5243 = vsub.s32 %v5240, %v5242
    %v5244 = vrot.slane %v5222, %v5243
    %v5246 = vunpack.c.l.s4 1966171168
    %v5247 = vunpack.c.0.s8 %v5246
    %v5248 = vlaneseq
    %v5249 = vshrl.u32 %v5248, 7
    %v5250 = vsub.s32 %v5247, %v5249
    %v5251 = vrot.slane %v5223, %v5250
    %v5252 = vcombine.low %v5230, %v5237
    %v5253 = vcombine.low %v5244, %v5251
    %v5255 = vunpack.c.l.s4 1966171168
    %v5256 = vunpack.c.0.s8 %v5255
    %v5257 = vlaneseq
    %v5258 = vshrl.u32 %v5257, 7
    %v5259 = vsub.s32 %v5256, %v5258
    %v5260 = vrot.slane %v5252, %v5259
    %v5262 = vunpack.c.l.s4 1966171168
    %v5263 = vunpack.c.0.s8 %v5262
    %v5264 = vlaneseq
    %v5265 = vshrl.u32 %v5264, 7
    %v5266 = vsub.s32 %v5263, %v5265
    %v5267 = vrot.slane %v5253, %v5266
    %v5268 = vcombine.low %v5260, %v5267
    %v5269 = vcombine.low %v4988, %v4989
    %v5270 = vcombine.low %v4990, %v4991
    %v5271 = vcombine.low %v4992, %v4993
    %v5273 = vunpack.c.l.s4 1966171168
    %v5274 = vunpack.c.0.s8 %v5273
    %v5275 = vlaneseq
    %v5276 = vshrl.u32 %v5275, 7
    %v5277 = vsub.s32 %v5274, %v5276
    %v5278 = vrot.slane %v5269, %v5277
    %v5280 = vunpack.c.l.s4 1966171168
    %v5281 = vunpack.c.0.s8 %v5280
    %v5282 = vlaneseq
    %v5283 = vshrl.u32 %v5282, 7
    %v5284 = vsub.s32 %v5281, %v5283
    %v5285 = vrot.slane %v5270, %v5284
    %v5287 = vunpack.c.l.s4 1966171168
    %v5288 = vunpack.c.0.s8 %v5287
    %v5289 = vlaneseq
    %v5290 = vshrl.u32 %v5289, 7
    %v5291 = vsub.s32 %v5288, %v5290
    %v5292 = vrot.slane %v5271, %v5291
    %v5294 = vunpack.c.l.s4 1966171168
    %v5295 = vunpack.c.0.s8 %v5294
    %v5296 = vlaneseq
    %v5297 = vshrl.u32 %v5296, 7
    %v5298 = vsub.s32 %v5295, %v5297
    %v5299 = vrot.slane %v4994, %v5298
    %v5300 = vcombine.low %v5278, %v5285
    %v5301 = vcombine.low %v5292, %v5299
    %v5303 = vunpack.c.l.s4 1966171168
    %v5304 = vunpack.c.0.s8 %v5303
    %v5305 = vlaneseq
    %v5306 = vshrl.u32 %v5305, 7
    %v5307 = vsub.s32 %v5304, %v5306
    %v5308 = vrot.slane %v5300, %v5307
    %v5310 = vunpack.c.l.s4 1966171168
    %v5311 = vunpack.c.0.s8 %v5310
    %v5312 = vlaneseq
    %v5313 = vshrl.u32 %v5312, 7
    %v5314 = vsub.s32 %v5311, %v5313
    %v5315 = vrot.slane %v5301, %v5314
    %v5316 = vcombine.low %v5308, %v5315
    %v5317 = vcombine.low %v4995, %v4996
    %v5318 = vcombine.low %v4997, %v4998
    %v5319 = vcombine.low %v4999, %v5000
    %v5320 = vcombine.low %v5001, %v5002
    %v5322 = vunpack.c.l.s4 1966171168
    %v5323 = vunpack.c.0.s8 %v5322
    %v5324 = vlaneseq
    %v5325 = vshrl.u32 %v5324, 7
    %v5326 = vsub.s32 %v5323, %v5325
    %v5327 = vrot.slane %v5317, %v5326
    %v5329 = vunpack.c.l.s4 1966171168
    %v5330 = vunpack.c.0.s8 %v5329
    %v5331 = vlaneseq
    %v5332 = vshrl.u32 %v5331, 7
    %v5333 = vsub.s32 %v5330, %v5332
    %v5334 = vrot.slane %v5318, %v5333
    %v5336 = vunpack.c.l.s4 1966171168
    %v5337 = vunpack.c.0.s8 %v5336
    %v5338 = vlaneseq
    %v5339 = vshrl.u32 %v5338, 7
    %v5340 = vsub.s32 %v5337, %v5339
    %v5341 = vrot.slane %v5319, %v5340
    %v5343 = vunpack.c.l.s4 1966171168
    %v5344 = vunpack.c.0.s8 %v5343
    %v5345 = vlaneseq
    %v5346 = vshrl.u32 %v5345, 7
    %v5347 = vsub.s32 %v5344, %v5346
    %v5348 = vrot.slane %v5320, %v5347
    %v5349 = vcombine.low %v5327, %v5334
    %v5350 = vcombine.low %v5341, %v5348
    %v5352 = vunpack.c.l.s4 1966171168
    %v5353 = vunpack.c.0.s8 %v5352
    %v5354 = vlaneseq
    %v5355 = vshrl.u32 %v5354, 7
    %v5356 = vsub.s32 %v5353, %v5355
    %v5357 = vrot.slane %v5349, %v5356
    %v5359 = vunpack.c.l.s4 1966171168
    %v5360 = vunpack.c.0.s8 %v5359
    %v5361 = vlaneseq
    %v5362 = vshrl.u32 %v5361, 7
    %v5363 = vsub.s32 %v5360, %v5362
    %v5364 = vrot.slane %v5350, %v5363
    %v5365 = vcombine.low %v5357, %v5364
    %v5366 = vcombine.low %v5003, %v5004
    %v5367 = vcombine.low %v5005, %v5006
    %v5368 = vcombine.low %v5007, %v5008
    %v5370 = vunpack.c.l.s4 1966171168
    %v5371 = vunpack.c.0.s8 %v5370
    %v5372 = vlaneseq
    %v5373 = vshrl.u32 %v5372, 7
    %v5374 = vsub.s32 %v5371, %v5373
    %v5375 = vrot.slane %v5366, %v5374
    %v5377 = vunpack.c.l.s4 1966171168
    %v5378 = vunpack.c.0.s8 %v5377
    %v5379 = vlaneseq
    %v5380 = vshrl.u32 %v5379, 7
    %v5381 = vsub.s32 %v5378, %v5380
    %v5382 = vrot.slane %v5367, %v5381
    %v5384 = vunpack.c.l.s4 1966171168
    %v5385 = vunpack.c.0.s8 %v5384
    %v5386 = vlaneseq
    %v5387 = vshrl.u32 %v5386, 7
    %v5388 = vsub.s32 %v5385, %v5387
    %v5389 = vrot.slane %v5368, %v5388
    %v5391 = vunpack.c.l.s4 1966171168
    %v5392 = vunpack.c.0.s8 %v5391
    %v5393 = vlaneseq
    %v5394 = vshrl.u32 %v5393, 7
    %v5395 = vsub.s32 %v5392, %v5394
    %v5396 = vrot.slane %v5009, %v5395
    %v5397 = vcombine.low %v5375, %v5382
    %v5398 = vcombine.low %v5389, %v5396
    %v5400 = vunpack.c.l.s4 1966171168
    %v5401 = vunpack.c.0.s8 %v5400
    %v5402 = vlaneseq
    %v5403 = vshrl.u32 %v5402, 7
    %v5404 = vsub.s32 %v5401, %v5403
    %v5405 = vrot.slane %v5397, %v5404
    %v5407 = vunpack.c.l.s4 1966171168
    %v5408 = vunpack.c.0.s8 %v5407
    %v5409 = vlaneseq
    %v5410 = vshrl.u32 %v5409, 7
    %v5411 = vsub.s32 %v5408, %v5410
    %v5412 = vrot.slane %v5398, %v5411
    %v5413 = vcombine.low %v5405, %v5412
    %v5414 = vcombine.low %v5010, %v5011
    %v5415 = vcombine.low %v5012, %v5013
    %v5416 = vcombine.low %v5014, %v5015
    %v5417 = vcombine.low %v5016, %v5017
    %v5419 = vunpack.c.l.s4 1966171168
    %v5420 = vunpack.c.0.s8 %v5419
    %v5421 = vlaneseq
    %v5422 = vshrl.u32 %v5421, 7
    %v5423 = vsub.s32 %v5420, %v5422
    %v5424 = vrot.slane %v5414, %v5423
    %v5426 = vunpack.c.l.s4 1966171168
    %v5427 = vunpack.c.0.s8 %v5426
    %v5428 = vlaneseq
    %v5429 = vshrl.u32 %v5428, 7
    %v5430 = vsub.s32 %v5427, %v5429
    %v5431 = vrot.slane %v5415, %v5430
    %v5433 = vunpack.c.l.s4 1966171168
    %v5434 = vunpack.c.0.s8 %v5433
    %v5435 = vlaneseq
    %v5436 = vshrl.u32 %v5435, 7
    %v5437 = vsub.s32 %v5434, %v5436
    %v5438 = vrot.slane %v5416, %v5437
    %v5440 = vunpack.c.l.s4 1966171168
    %v5441 = vunpack.c.0.s8 %v5440
    %v5442 = vlaneseq
    %v5443 = vshrl.u32 %v5442, 7
    %v5444 = vsub.s32 %v5441, %v5443
    %v5445 = vrot.slane %v5417, %v5444
    %v5446 = vcombine.low %v5424, %v5431
    %v5447 = vcombine.low %v5438, %v5445
    %v5449 = vunpack.c.l.s4 1966171168
    %v5450 = vunpack.c.0.s8 %v5449
    %v5451 = vlaneseq
    %v5452 = vshrl.u32 %v5451, 7
    %v5453 = vsub.s32 %v5450, %v5452
    %v5454 = vrot.slane %v5446, %v5453
    %v5456 = vunpack.c.l.s4 1966171168
    %v5457 = vunpack.c.0.s8 %v5456
    %v5458 = vlaneseq
    %v5459 = vshrl.u32 %v5458, 7
    %v5460 = vsub.s32 %v5457, %v5459
    %v5461 = vrot.slane %v5447, %v5460
    %v5462 = vcombine.low %v5454, %v5461
    %v5463 = vcombine.low %v5018, %v5019
    %v5464 = vcombine.low %v5020, %v5021
    %v5465 = vcombine.low %v5022, %v5023
    %v5467 = vunpack.c.l.s4 1966171168
    %v5468 = vunpack.c.0.s8 %v5467
    %v5469 = vlaneseq
    %v5470 = vshrl.u32 %v5469, 7
    %v5471 = vsub.s32 %v5468, %v5470
    %v5472 = vrot.slane %v5463, %v5471
    %v5474 = vunpack.c.l.s4 1966171168
    %v5475 = vunpack.c.0.s8 %v5474
    %v5476 = vlaneseq
    %v5477 = vshrl.u32 %v5476, 7
    %v5478 = vsub.s32 %v5475, %v5477
    %v5479 = vrot.slane %v5464, %v5478
    %v5481 = vunpack.c.l.s4 1966171168
    %v5482 = vunpack.c.0.s8 %v5481
    %v5483 = vlaneseq
    %v5484 = vshrl.u32 %v5483, 7
    %v5485 = vsub.s32 %v5482, %v5484
    %v5486 = vrot.slane %v5465, %v5485
    %v5488 = vunpack.c.l.s4 1966171168
    %v5489 = vunpack.c.0.s8 %v5488
    %v5490 = vlaneseq
    %v5491 = vshrl.u32 %v5490, 7
    %v5492 = vsub.s32 %v5489, %v5491
    %v5493 = vrot.slane %v5024, %v5492
    %v5494 = vcombine.low %v5472, %v5479
    %v5495 = vcombine.low %v5486, %v5493
    %v5497 = vunpack.c.l.s4 1966171168
    %v5498 = vunpack.c.0.s8 %v5497
    %v5499 = vlaneseq
    %v5500 = vshrl.u32 %v5499, 7
    %v5501 = vsub.s32 %v5498, %v5500
    %v5502 = vrot.slane %v5494, %v5501
    %v5504 = vunpack.c.l.s4 1966171168
    %v5505 = vunpack.c.0.s8 %v5504
    %v5506 = vlaneseq
    %v5507 = vshrl.u32 %v5506, 7
    %v5508 = vsub.s32 %v5505, %v5507
    %v5509 = vrot.slane %v5495, %v5508
    %v5510 = vcombine.low %v5502, %v5509
    %v5511 = vcombine.low %v5025, %v5026
    %v5512 = vcombine.low %v5027, %v5028
    %v5513 = vcombine.low %v5029, %v5030
    %v5514 = vcombine.low %v5031, %v5032
    %v5516 = vunpack.c.l.s4 1966171168
    %v5517 = vunpack.c.0.s8 %v5516
    %v5518 = vlaneseq
    %v5519 = vshrl.u32 %v5518, 7
    %v5520 = vsub.s32 %v5517, %v5519
    %v5521 = vrot.slane %v5511, %v5520
    %v5523 = vunpack.c.l.s4 1966171168
    %v5524 = vunpack.c.0.s8 %v5523
    %v5525 = vlaneseq
    %v5526 = vshrl.u32 %v5525, 7
    %v5527 = vsub.s32 %v5524, %v5526
    %v5528 = vrot.slane %v5512, %v5527
    %v5530 = vunpack.c.l.s4 1966171168
    %v5531 = vunpack.c.0.s8 %v5530
    %v5532 = vlaneseq
    %v5533 = vshrl.u32 %v5532, 7
    %v5534 = vsub.s32 %v5531, %v5533
    %v5535 = vrot.slane %v5513, %v5534
    %v5537 = vunpack.c.l.s4 1966171168
    %v5538 = vunpack.c.0.s8 %v5537
    %v5539 = vlaneseq
    %v5540 = vshrl.u32 %v5539, 7
    %v5541 = vsub.s32 %v5538, %v5540
    %v5542 = vrot.slane %v5514, %v5541
    %v5543 = vcombine.low %v5521, %v5528
    %v5544 = vcombine.low %v5535, %v5542
    %v5546 = vunpack.c.l.s4 1966171168
    %v5547 = vunpack.c.0.s8 %v5546
    %v5548 = vlaneseq
    %v5549 = vshrl.u32 %v5548, 7
    %v5550 = vsub.s32 %v5547, %v5549
    %v5551 = vrot.slane %v5543, %v5550
    %v5553 = vunpack.c.l.s4 1966171168
    %v5554 = vunpack.c.0.s8 %v5553
    %v5555 = vlaneseq
    %v5556 = vshrl.u32 %v5555, 7
    %v5557 = vsub.s32 %v5554, %v5556
    %v5558 = vrot.slane %v5544, %v5557
    %v5559 = vcombine.low %v5551, %v5558
    %v5560 = vcombine.low %v5033, %v5034
    %v5561 = vcombine.low %v5035, %v5036
    %v5562 = vcombine.low %v5037, %v5038
    %v5564 = vunpack.c.l.s4 1966171168
    %v5565 = vunpack.c.0.s8 %v5564
    %v5566 = vlaneseq
    %v5567 = vshrl.u32 %v5566, 7
    %v5568 = vsub.s32 %v5565, %v5567
    %v5569 = vrot.slane %v5560, %v5568
    %v5571 = vunpack.c.l.s4 1966171168
    %v5572 = vunpack.c.0.s8 %v5571
    %v5573 = vlaneseq
    %v5574 = vshrl.u32 %v5573, 7
    %v5575 = vsub.s32 %v5572, %v5574
    %v5576 = vrot.slane %v5561, %v5575
    %v5578 = vunpack.c.l.s4 1966171168
    %v5579 = vunpack.c.0.s8 %v5578
    %v5580 = vlaneseq
    %v5581 = vshrl.u32 %v5580, 7
    %v5582 = vsub.s32 %v5579, %v5581
    %v5583 = vrot.slane %v5562, %v5582
    %v5585 = vunpack.c.l.s4 1966171168
    %v5586 = vunpack.c.0.s8 %v5585
    %v5587 = vlaneseq
    %v5588 = vshrl.u32 %v5587, 7
    %v5589 = vsub.s32 %v5586, %v5588
    %v5590 = vrot.slane %v5039, %v5589
    %v5591 = vcombine.low %v5569, %v5576
    %v5592 = vcombine.low %v5583, %v5590
    %v5594 = vunpack.c.l.s4 1966171168
    %v5595 = vunpack.c.0.s8 %v5594
    %v5596 = vlaneseq
    %v5597 = vshrl.u32 %v5596, 7
    %v5598 = vsub.s32 %v5595, %v5597
    %v5599 = vrot.slane %v5591, %v5598
    %v5601 = vunpack.c.l.s4 1966171168
    %v5602 = vunpack.c.0.s8 %v5601
    %v5603 = vlaneseq
    %v5604 = vshrl.u32 %v5603, 7
    %v5605 = vsub.s32 %v5602, %v5604
    %v5606 = vrot.slane %v5592, %v5605
    %v5607 = vcombine.low %v5599, %v5606
    %v5608 = vcombine.low %v5040, %v5041
    %v5609 = vcombine.low %v5042, %v5043
    %v5610 = vcombine.low %v5044, %v5045
    %v5611 = vcombine.low %v5046, %v5047
    %v5613 = vunpack.c.l.s4 1966171168
    %v5614 = vunpack.c.0.s8 %v5613
    %v5615 = vlaneseq
    %v5616 = vshrl.u32 %v5615, 7
    %v5617 = vsub.s32 %v5614, %v5616
    %v5618 = vrot.slane %v5608, %v5617
    %v5620 = vunpack.c.l.s4 1966171168
    %v5621 = vunpack.c.0.s8 %v5620
    %v5622 = vlaneseq
    %v5623 = vshrl.u32 %v5622, 7
    %v5624 = vsub.s32 %v5621, %v5623
    %v5625 = vrot.slane %v5609, %v5624
    %v5627 = vunpack.c.l.s4 1966171168
    %v5628 = vunpack.c.0.s8 %v5627
    %v5629 = vlaneseq
    %v5630 = vshrl.u32 %v5629, 7
    %v5631 = vsub.s32 %v5628, %v5630
    %v5632 = vrot.slane %v5610, %v5631
    %v5634 = vunpack.c.l.s4 1966171168
    %v5635 = vunpack.c.0.s8 %v5634
    %v5636 = vlaneseq
    %v5637 = vshrl.u32 %v5636, 7
    %v5638 = vsub.s32 %v5635, %v5637
    %v5639 = vrot.slane %v5611, %v5638
    %v5640 = vcombine.low %v5618, %v5625
    %v5641 = vcombine.low %v5632, %v5639
    %v5643 = vunpack.c.l.s4 1966171168
    %v5644 = vunpack.c.0.s8 %v5643
    %v5645 = vlaneseq
    %v5646 = vshrl.u32 %v5645, 7
    %v5647 = vsub.s32 %v5644, %v5646
    %v5648 = vrot.slane %v5640, %v5647
    %v5650 = vunpack.c.l.s4 1966171168
    %v5651 = vunpack.c.0.s8 %v5650
    %v5652 = vlaneseq
    %v5653 = vshrl.u32 %v5652, 7
    %v5654 = vsub.s32 %v5651, %v5653
    %v5655 = vrot.slane %v5641, %v5654
    %v5656 = vcombine.low %v5648, %v5655
    %v5657 = vcombine.low %v5048, %v5049
    %v5658 = vcombine.low %v5050, %v5051
    %v5659 = vcombine.low %v5052, %v5053
    %v5661 = vunpack.c.l.s4 1966171168
    %v5662 = vunpack.c.0.s8 %v5661
    %v5663 = vlaneseq
    %v5664 = vshrl.u32 %v5663, 7
    %v5665 = vsub.s32 %v5662, %v5664
    %v5666 = vrot.slane %v5657, %v5665
    %v5668 = vunpack.c.l.s4 1966171168
    %v5669 = vunpack.c.0.s8 %v5668
    %v5670 = vlaneseq
    %v5671 = vshrl.u32 %v5670, 7
    %v5672 = vsub.s32 %v5669, %v5671
    %v5673 = vrot.slane %v5658, %v5672
    %v5675 = vunpack.c.l.s4 1966171168
    %v5676 = vunpack.c.0.s8 %v5675
    %v5677 = vlaneseq
    %v5678 = vshrl.u32 %v5677, 7
    %v5679 = vsub.s32 %v5676, %v5678
    %v5680 = vrot.slane %v5659, %v5679
    %v5682 = vunpack.c.l.s4 1966171168
    %v5683 = vunpack.c.0.s8 %v5682
    %v5684 = vlaneseq
    %v5685 = vshrl.u32 %v5684, 7
    %v5686 = vsub.s32 %v5683, %v5685
    %v5687 = vrot.slane %v5054, %v5686
    %v5688 = vcombine.low %v5666, %v5673
    %v5689 = vcombine.low %v5680, %v5687
    %v5691 = vunpack.c.l.s4 1966171168
    %v5692 = vunpack.c.0.s8 %v5691
    %v5693 = vlaneseq
    %v5694 = vshrl.u32 %v5693, 7
    %v5695 = vsub.s32 %v5692, %v5694
    %v5696 = vrot.slane %v5688, %v5695
    %v5698 = vunpack.c.l.s4 1966171168
    %v5699 = vunpack.c.0.s8 %v5698
    %v5700 = vlaneseq
    %v5701 = vshrl.u32 %v5700, 7
    %v5702 = vsub.s32 %v5699, %v5701
    %v5703 = vrot.slane %v5689, %v5702
    %v5704 = vcombine.low %v5696, %v5703
    %v5705 = vcombine.low %v5055, %v5056
    %v5706 = vcombine.low %v5057, %v5058
    %v5707 = vcombine.low %v5059, %v5060
    %v5708 = vcombine.low %v5061, %v5062
    %v5710 = vunpack.c.l.s4 1966171168
    %v5711 = vunpack.c.0.s8 %v5710
    %v5712 = vlaneseq
    %v5713 = vshrl.u32 %v5712, 7
    %v5714 = vsub.s32 %v5711, %v5713
    %v5715 = vrot.slane %v5705, %v5714
    %v5717 = vunpack.c.l.s4 1966171168
    %v5718 = vunpack.c.0.s8 %v5717
    %v5719 = vlaneseq
    %v5720 = vshrl.u32 %v5719, 7
    %v5721 = vsub.s32 %v5718, %v5720
    %v5722 = vrot.slane %v5706, %v5721
    %v5724 = vunpack.c.l.s4 1966171168
    %v5725 = vunpack.c.0.s8 %v5724
    %v5726 = vlaneseq
    %v5727 = vshrl.u32 %v5726, 7
    %v5728 = vsub.s32 %v5725, %v5727
    %v5729 = vrot.slane %v5707, %v5728
    %v5731 = vunpack.c.l.s4 1966171168
    %v5732 = vunpack.c.0.s8 %v5731
    %v5733 = vlaneseq
    %v5734 = vshrl.u32 %v5733, 7
    %v5735 = vsub.s32 %v5732, %v5734
    %v5736 = vrot.slane %v5708, %v5735
    %v5737 = vcombine.low %v5715, %v5722
    %v5738 = vcombine.low %v5729, %v5736
    %v5740 = vunpack.c.l.s4 1966171168
    %v5741 = vunpack.c.0.s8 %v5740
    %v5742 = vlaneseq
    %v5743 = vshrl.u32 %v5742, 7
    %v5744 = vsub.s32 %v5741, %v5743
    %v5745 = vrot.slane %v5737, %v5744
    %v5747 = vunpack.c.l.s4 1966171168
    %v5748 = vunpack.c.0.s8 %v5747
    %v5749 = vlaneseq
    %v5750 = vshrl.u32 %v5749, 7
    %v5751 = vsub.s32 %v5748, %v5750
    %v5752 = vrot.slane %v5738, %v5751
    %v5753 = vcombine.low %v5745, %v5752
    %v5754 = vcombine.low %v5063, %v5064
    %v5755 = vcombine.low %v5065, %v5066
    %v5756 = vcombine.low %v5067, %v5068
    %v5758 = vunpack.c.l.s4 1966171168
    %v5759 = vunpack.c.0.s8 %v5758
    %v5760 = vlaneseq
    %v5761 = vshrl.u32 %v5760, 7
    %v5762 = vsub.s32 %v5759, %v5761
    %v5763 = vrot.slane %v5754, %v5762
    %v5765 = vunpack.c.l.s4 1966171168
    %v5766 = vunpack.c.0.s8 %v5765
    %v5767 = vlaneseq
    %v5768 = vshrl.u32 %v5767, 7
    %v5769 = vsub.s32 %v5766, %v5768
    %v5770 = vrot.slane %v5755, %v5769
    %v5772 = vunpack.c.l.s4 1966171168
    %v5773 = vunpack.c.0.s8 %v5772
    %v5774 = vlaneseq
    %v5775 = vshrl.u32 %v5774, 7
    %v5776 = vsub.s32 %v5773, %v5775
    %v5777 = vrot.slane %v5756, %v5776
    %v5779 = vunpack.c.l.s4 1966171168
    %v5780 = vunpack.c.0.s8 %v5779
    %v5781 = vlaneseq
    %v5782 = vshrl.u32 %v5781, 7
    %v5783 = vsub.s32 %v5780, %v5782
    %v5784 = vrot.slane %v5069, %v5783
    %v5785 = vcombine.low %v5763, %v5770
    %v5786 = vcombine.low %v5777, %v5784
    %v5788 = vunpack.c.l.s4 1966171168
    %v5789 = vunpack.c.0.s8 %v5788
    %v5790 = vlaneseq
    %v5791 = vshrl.u32 %v5790, 7
    %v5792 = vsub.s32 %v5789, %v5791
    %v5793 = vrot.slane %v5785, %v5792
    %v5795 = vunpack.c.l.s4 1966171168
    %v5796 = vunpack.c.0.s8 %v5795
    %v5797 = vlaneseq
    %v5798 = vshrl.u32 %v5797, 7
    %v5799 = vsub.s32 %v5796, %v5798
    %v5800 = vrot.slane %v5786, %v5799
    %v5801 = vcombine.low %v5793, %v5800
    %v5802 = vcombine.low %v5070, %v5071
    %v5803 = vcombine.low %v5072, %v5073
    %v5804 = vcombine.low %v5074, %v5075
    %v5805 = vcombine.low %v5076, %v5077
    %v5807 = vunpack.c.l.s4 1966171168
    %v5808 = vunpack.c.0.s8 %v5807
    %v5809 = vlaneseq
    %v5810 = vshrl.u32 %v5809, 7
    %v5811 = vsub.s32 %v5808, %v5810
    %v5812 = vrot.slane %v5802, %v5811
    %v5814 = vunpack.c.l.s4 1966171168
    %v5815 = vunpack.c.0.s8 %v5814
    %v5816 = vlaneseq
    %v5817 = vshrl.u32 %v5816, 7
    %v5818 = vsub.s32 %v5815, %v5817
    %v5819 = vrot.slane %v5803, %v5818
    %v5821 = vunpack.c.l.s4 1966171168
    %v5822 = vunpack.c.0.s8 %v5821
    %v5823 = vlaneseq
    %v5824 = vshrl.u32 %v5823, 7
    %v5825 = vsub.s32 %v5822, %v5824
    %v5826 = vrot.slane %v5804, %v5825
    %v5828 = vunpack.c.l.s4 1966171168
    %v5829 = vunpack.c.0.s8 %v5828
    %v5830 = vlaneseq
    %v5831 = vshrl.u32 %v5830, 7
    %v5832 = vsub.s32 %v5829, %v5831
    %v5833 = vrot.slane %v5805, %v5832
    %v5834 = vcombine.low %v5812, %v5819
    %v5835 = vcombine.low %v5826, %v5833
    %v5837 = vunpack.c.l.s4 1966171168
    %v5838 = vunpack.c.0.s8 %v5837
    %v5839 = vlaneseq
    %v5840 = vshrl.u32 %v5839, 7
    %v5841 = vsub.s32 %v5838, %v5840
    %v5842 = vrot.slane %v5834, %v5841
    %v5844 = vunpack.c.l.s4 1966171168
    %v5845 = vunpack.c.0.s8 %v5844
    %v5846 = vlaneseq
    %v5847 = vshrl.u32 %v5846, 7
    %v5848 = vsub.s32 %v5845, %v5847
    %v5849 = vrot.slane %v5835, %v5848
    %v5850 = vcombine.low %v5842, %v5849
    %v5851 = vcombine.low %v5078, %v5079
    %v5852 = vcombine.low %v5080, %v5081
    %v5853 = vcombine.low %v5082, %v5083
    %v5855 = vunpack.c.l.s4 1966171168
    %v5856 = vunpack.c.0.s8 %v5855
    %v5857 = vlaneseq
    %v5858 = vshrl.u32 %v5857, 7
    %v5859 = vsub.s32 %v5856, %v5858
    %v5860 = vrot.slane %v5851, %v5859
    %v5862 = vunpack.c.l.s4 1966171168
    %v5863 = vunpack.c.0.s8 %v5862
    %v5864 = vlaneseq
    %v5865 = vshrl.u32 %v5864, 7
    %v5866 = vsub.s32 %v5863, %v5865
    %v5867 = vrot.slane %v5852, %v5866
    %v5869 = vunpack.c.l.s4 1966171168
    %v5870 = vunpack.c.0.s8 %v5869
    %v5871 = vlaneseq
    %v5872 = vshrl.u32 %v5871, 7
    %v5873 = vsub.s32 %v5870, %v5872
    %v5874 = vrot.slane %v5853, %v5873
    %v5876 = vunpack.c.l.s4 1966171168
    %v5877 = vunpack.c.0.s8 %v5876
    %v5878 = vlaneseq
    %v5879 = vshrl.u32 %v5878, 7
    %v5880 = vsub.s32 %v5877, %v5879
    %v5881 = vrot.slane %v5084, %v5880
    %v5882 = vcombine.low %v5860, %v5867
    %v5883 = vcombine.low %v5874, %v5881
    %v5885 = vunpack.c.l.s4 1966171168
    %v5886 = vunpack.c.0.s8 %v5885
    %v5887 = vlaneseq
    %v5888 = vshrl.u32 %v5887, 7
    %v5889 = vsub.s32 %v5886, %v5888
    %v5890 = vrot.slane %v5882, %v5889
    %v5892 = vunpack.c.l.s4 1966171168
    %v5893 = vunpack.c.0.s8 %v5892
    %v5894 = vlaneseq
    %v5895 = vshrl.u32 %v5894, 7
    %v5896 = vsub.s32 %v5893, %v5895
    %v5897 = vrot.slane %v5883, %v5896
    %v5898 = vcombine.low %v5890, %v5897
    %v5899 = vcombine.low %v5085, %v5086
    %v5900 = vcombine.low %v5087, %v5088
    %v5901 = vcombine.low %v5089, %v5090
    %v5902 = vcombine.low %v5091, %v5092
    %v5904 = vunpack.c.l.s4 1966171168
    %v5905 = vunpack.c.0.s8 %v5904
    %v5906 = vlaneseq
    %v5907 = vshrl.u32 %v5906, 7
    %v5908 = vsub.s32 %v5905, %v5907
    %v5909 = vrot.slane %v5899, %v5908
    %v5911 = vunpack.c.l.s4 1966171168
    %v5912 = vunpack.c.0.s8 %v5911
    %v5913 = vlaneseq
    %v5914 = vshrl.u32 %v5913, 7
    %v5915 = vsub.s32 %v5912, %v5914
    %v5916 = vrot.slane %v5900, %v5915
    %v5918 = vunpack.c.l.s4 1966171168
    %v5919 = vunpack.c.0.s8 %v5918
    %v5920 = vlaneseq
    %v5921 = vshrl.u32 %v5920, 7
    %v5922 = vsub.s32 %v5919, %v5921
    %v5923 = vrot.slane %v5901, %v5922
    %v5925 = vunpack.c.l.s4 1966171168
    %v5926 = vunpack.c.0.s8 %v5925
    %v5927 = vlaneseq
    %v5928 = vshrl.u32 %v5927, 7
    %v5929 = vsub.s32 %v5926, %v5928
    %v5930 = vrot.slane %v5902, %v5929
    %v5931 = vcombine.low %v5909, %v5916
    %v5932 = vcombine.low %v5923, %v5930
    %v5934 = vunpack.c.l.s4 1966171168
    %v5935 = vunpack.c.0.s8 %v5934
    %v5936 = vlaneseq
    %v5937 = vshrl.u32 %v5936, 7
    %v5938 = vsub.s32 %v5935, %v5937
    %v5939 = vrot.slane %v5931, %v5938
    %v5941 = vunpack.c.l.s4 1966171168
    %v5942 = vunpack.c.0.s8 %v5941
    %v5943 = vlaneseq
    %v5944 = vshrl.u32 %v5943, 7
    %v5945 = vsub.s32 %v5942, %v5944
    %v5946 = vrot.slane %v5932, %v5945
    %v5947 = vcombine.low %v5939, %v5946
    %v5948 = vcombine.low %v5093, %v5094
    %v5949 = vcombine.low %v5095, %v5096
    %v5950 = vcombine.low %v5097, %v5098
    %v5952 = vunpack.c.l.s4 1966171168
    %v5953 = vunpack.c.0.s8 %v5952
    %v5954 = vlaneseq
    %v5955 = vshrl.u32 %v5954, 7
    %v5956 = vsub.s32 %v5953, %v5955
    %v5957 = vrot.slane %v5948, %v5956
    %v5959 = vunpack.c.l.s4 1966171168
    %v5960 = vunpack.c.0.s8 %v5959
    %v5961 = vlaneseq
    %v5962 = vshrl.u32 %v5961, 7
    %v5963 = vsub.s32 %v5960, %v5962
    %v5964 = vrot.slane %v5949, %v5963
    %v5966 = vunpack.c.l.s4 1966171168
    %v5967 = vunpack.c.0.s8 %v5966
    %v5968 = vlaneseq
    %v5969 = vshrl.u32 %v5968, 7
    %v5970 = vsub.s32 %v5967, %v5969
    %v5971 = vrot.slane %v5950, %v5970
    %v5973 = vunpack.c.l.s4 1966171168
    %v5974 = vunpack.c.0.s8 %v5973
    %v5975 = vlaneseq
    %v5976 = vshrl.u32 %v5975, 7
    %v5977 = vsub.s32 %v5974, %v5976
    %v5978 = vrot.slane %v5099, %v5977
    %v5979 = vcombine.low %v5957, %v5964
    %v5980 = vcombine.low %v5971, %v5978
    %v5982 = vunpack.c.l.s4 1966171168
    %v5983 = vunpack.c.0.s8 %v5982
    %v5984 = vlaneseq
    %v5985 = vshrl.u32 %v5984, 7
    %v5986 = vsub.s32 %v5983, %v5985
    %v5987 = vrot.slane %v5979, %v5986
    %v5989 = vunpack.c.l.s4 1966171168
    %v5990 = vunpack.c.0.s8 %v5989
    %v5991 = vlaneseq
    %v5992 = vshrl.u32 %v5991, 7
    %v5993 = vsub.s32 %v5990, %v5992
    %v5994 = vrot.slane %v5980, %v5993
    %v5995 = vcombine.low %v5987, %v5994
    %v6012 = vsel %vm1980, %v5316, -inf
    %v6013 = vmax.f32 %v5268, %v6012
    %v6014 = vrot.slane %v6013, 4
    %v6015 = vmax.f32 %v6013, %v6014
    %v6016 = vrot.slane %v6015, 2
    %v6017 = vmax.f32 %v6015, %v6016
    %v6018 = vrot.slane %v6017, 1
    %v6019 = vmax.f32 %v6017, %v6018
    %v6020 = vsel %vm1980, %v5413, -inf
    %v6021 = vmax.f32 %v5365, %v6020
    %v6022 = vrot.slane %v6021, 4
    %v6023 = vmax.f32 %v6021, %v6022
    %v6024 = vrot.slane %v6023, 2
    %v6025 = vmax.f32 %v6023, %v6024
    %v6026 = vrot.slane %v6025, 1
    %v6027 = vmax.f32 %v6025, %v6026
    %v6028 = vsel %vm1980, %v5510, -inf
    %v6029 = vmax.f32 %v5462, %v6028
    %v6030 = vrot.slane %v6029, 4
    %v6031 = vmax.f32 %v6029, %v6030
    %v6032 = vrot.slane %v6031, 2
    %v6033 = vmax.f32 %v6031, %v6032
    %v6034 = vrot.slane %v6033, 1
    %v6035 = vmax.f32 %v6033, %v6034
    %v6036 = vsel %vm1980, %v5607, -inf
    %v6037 = vmax.f32 %v5559, %v6036
    %v6038 = vrot.slane %v6037, 4
    %v6039 = vmax.f32 %v6037, %v6038
    %v6040 = vrot.slane %v6039, 2
    %v6041 = vmax.f32 %v6039, %v6040
    %v6042 = vrot.slane %v6041, 1
    %v6043 = vmax.f32 %v6041, %v6042
    %v6044 = vsel %vm1980, %v5704, -inf
    %v6045 = vmax.f32 %v5656, %v6044
    %v6046 = vrot.slane %v6045, 4
    %v6047 = vmax.f32 %v6045, %v6046
    %v6048 = vrot.slane %v6047, 2
    %v6049 = vmax.f32 %v6047, %v6048
    %v6050 = vrot.slane %v6049, 1
    %v6051 = vmax.f32 %v6049, %v6050
    %v6052 = vsel %vm1980, %v5801, -inf
    %v6053 = vmax.f32 %v5753, %v6052
    %v6054 = vrot.slane %v6053, 4
    %v6055 = vmax.f32 %v6053, %v6054
    %v6056 = vrot.slane %v6055, 2
    %v6057 = vmax.f32 %v6055, %v6056
    %v6058 = vrot.slane %v6057, 1
    %v6059 = vmax.f32 %v6057, %v6058
    %v6060 = vsel %vm1980, %v5898, -inf
    %v6061 = vmax.f32 %v5850, %v6060
    %v6062 = vrot.slane %v6061, 4
    %v6063 = vmax.f32 %v6061, %v6062
    %v6064 = vrot.slane %v6063, 2
    %v6065 = vmax.f32 %v6063, %v6064
    %v6066 = vrot.slane %v6065, 1
    %v6067 = vmax.f32 %v6065, %v6066
    %v6068 = vsel %vm1980, %v5995, -inf
    %v6069 = vmax.f32 %v5947, %v6068
    %v6070 = vrot.slane %v6069, 4
    %v6071 = vmax.f32 %v6069, %v6070
    %v6072 = vrot.slane %v6071, 2
    %v6073 = vmax.f32 %v6071, %v6072
    %v6074 = vrot.slane %v6073, 1
    %v6075 = vmax.f32 %v6073, %v6074
    %v6076 = vpack.c.bf16 %v6019, %v6019
    %v6077 = vpack.c.bf16 %v6027, %v6027
    %v6078 = vpack.c.bf16 %v6035, %v6035
    %v6079 = vpack.c.bf16 %v6043, %v6043
    %v6080 = vpack.c.bf16 %v6051, %v6051
    %v6081 = vpack.c.bf16 %v6059, %v6059
    %v6082 = vpack.c.bf16 %v6067, %v6067
    %v6083 = vpack.c.bf16 %v6075, %v6075
    %v6084 = vld [vmem:[#allocation2] sm:$0xf]
    %v6085 = vld [vmem:[#allocation2 + $0x4] sm:$0xf]
    %v6086 = vld [vmem:[#allocation2 + $0x8] sm:$0xf]
    %v6087 = vld [vmem:[#allocation2 + $0xc] sm:$0xf]
    %v6088 = vld [vmem:[#allocation2 + $0x10] sm:$0xf]
    %v6089 = vld [vmem:[#allocation2 + $0x14] sm:$0xf]
    %v6090 = vld [vmem:[#allocation2 + $0x18] sm:$0xf]
    %v6091 = vld [vmem:[#allocation2 + $0x1c] sm:$0xf]
    %v6092 = vld [vmem:[#allocation2 + $0x20] sm:$0xf]
    %v6093 = vld [vmem:[#allocation2 + $0x24] sm:$0xf]
    %v6094 = vld [vmem:[#allocation2 + $0x28] sm:$0xf]
    %v6095 = vld [vmem:[#allocation2 + $0x2c] sm:$0xf]
    %v6096 = vld [vmem:[#allocation2 + $0x30] sm:$0xf]
    %v6097 = vld [vmem:[#allocation2 + $0x34] sm:$0xf]
    %v6098 = vld [vmem:[#allocation2 + $0x38] sm:$0xf]
    %v6099 = vld [vmem:[#allocation2 + $0x3c] sm:$0xf]
    %v6100 = vld [vmem:[%s6] sm:$0x1]
    %v6102 = vlaneseq
    %v6103 = vshrl.u32 %v6102, 7
    %v6104 = vsub.s32 0, %v6103
    %v6105 = vrot.slane %v6100, %v6104
    %v6115 = vunpack.c.l.b16 %v6076
    %v6116 = vunpack.c.l.b16 %v6077
    %v6117 = vunpack.c.l.b16 %v6078
    %v6118 = vunpack.c.l.b16 %v6079
    %v6119 = vunpack.c.l.b16 %v6080
    %v6120 = vunpack.c.l.b16 %v6081
    %v6121 = vunpack.c.l.b16 %v6082
    %v6122 = vunpack.c.l.b16 %v6083
    %vm6123 = vcmask 1041409
    %v6124 = vsel %vm6123, %v6116, %v6115
    %vm6125 = vcmask 1042434
    %v6126 = vsel %vm6125, %v6117, %v6124
    %vm6127 = vcmask 1043459
    %v6128 = vsel %vm6127, %v6118, %v6126
    %vm6129 = vcmask 1044484
    %v6130 = vsel %vm6129, %v6119, %v6128
    %vm6131 = vcmask 1045509
    %v6132 = vsel %vm6131, %v6120, %v6130
    %vm6133 = vcmask 1046534
    %v6134 = vsel %vm6133, %v6121, %v6132
    %vm6135 = vcmask 1047559
    %v6136 = vsel %vm6135, %v6122, %v6134
    %v6137 = vpack.c.b16 %v6136, %v6136
    %v6155 = vunpack.c.l.b16 %v6084
    %v6156 = vunpack.c.l.b16 %v6085
    %v6157 = vunpack.c.l.b16 %v6086
    %v6158 = vunpack.c.l.b16 %v6087
    %v6159 = vunpack.c.l.b16 %v6088
    %v6160 = vunpack.c.l.b16 %v6089
    %v6161 = vunpack.c.l.b16 %v6090
    %v6162 = vunpack.c.l.b16 %v6091
    %v6163 = vunpack.c.l.b16 %v6092
    %v6164 = vunpack.c.l.b16 %v6093
    %v6165 = vunpack.c.l.b16 %v6094
    %v6166 = vunpack.c.l.b16 %v6095
    %v6167 = vunpack.c.l.b16 %v6096
    %v6168 = vunpack.c.l.b16 %v6097
    %v6169 = vunpack.c.l.b16 %v6098
    %v6170 = vunpack.c.l.b16 %v6099
    %v6171 = vpack.c.b16 %v6156, %v6155
    %v6172 = vpack.c.b16 %v6158, %v6157
    %v6173 = vpack.c.b16 %v6160, %v6159
    %v6174 = vpack.c.b16 %v6162, %v6161
    %v6175 = vpack.c.b16 %v6164, %v6163
    %v6176 = vpack.c.b16 %v6166, %v6165
    %v6177 = vpack.c.b16 %v6168, %v6167
    %v6178 = vpack.c.b16 %v6170, %v6169
    %6187 = vmatprep.subr.bf16.mxu0 0
    %6188 = vmatpush1.bf16.msra.mxu0 %v6171
    %6189 = vmatprep.subr.bf16.mxu0 0
    %6190 = vmatpush1.bf16.msra.mxu0 %v6172
    %6191 = vmatprep.subr.bf16.mxu0 0
    %6192 = vmatpush1.bf16.msra.mxu0 %v6173
    %6193 = vmatprep.subr.bf16.mxu0 0
    %6194 = vmatpush1.bf16.msra.mxu0 %v6174
    %6195 = vmatprep.subr.bf16.mxu0 0
    %6196 = vmatpush1.bf16.msra.mxu0 %v6175
    %6197 = vmatprep.subr.bf16.mxu0 0
    %6198 = vmatpush1.bf16.msra.mxu0 %v6176
    %6199 = vmatprep.subr.bf16.mxu0 0
    %6200 = vmatpush1.bf16.msra.mxu0 %v6177
    %6201 = vmatprep.subr.bf16.mxu0 0
    %6202 = vmatpush1.bf16.msra.mxu0 %v6178
    %6203 = vmatprep.subr.bf16.mxu0 0
    %6204 = vmatpush1.bf16.msra.mxu0 0
    %6205 = vmatprep.subr.bf16.mxu0 0
    %6206 = vmatpush1.bf16.msra.mxu0 0
    %6207 = vmatprep.subr.bf16.mxu0 0
    %6208 = vmatpush1.bf16.msra.mxu0 0
    %6209 = vmatprep.subr.bf16.mxu0 0
    %6210 = vmatpush1.bf16.msra.mxu0 0
    %6211 = vmatprep.subr.bf16.mxu0 0
    %6212 = vmatpush1.bf16.msra.mxu0 0
    %6213 = vmatprep.subr.bf16.mxu0 0
    %6214 = vmatpush1.bf16.msra.mxu0 0
    %6215 = vmatprep.subr.bf16.mxu0 0
    %6216 = vmatpush1.bf16.msra.mxu0 0
    %6217 = vmatprep.subr.bf16.mxu0 0
    %6218 = vmatpush1.bf16.msra.mxu0 0
    %6219 = vmatprep.mubr.bf16.mxu0 0
    %6220 = vmatmul.mubr.bf16.gmra.mrb[0].mxu0 %v6137
    %v6221 = vpop.f32.mrb[0].mxu0
    %v6222 = vadd.f32 %v6105, %v6221
    %v6223 = vpop.f32.mrb[0].mxu0
    %v6224 = vpop.f32.mrb[0].mxu0
    %v6225 = vpop.f32.mrb[0].mxu0
    %6226 = vdwg.mxu0
    %6227 = vst [vmem:[#allocation5] sm:$0xff] %v6222
    // Predicated region
    $region34: #{tpu_custom_call.1} parent=1 // pred_check
      _
    $region35: #{tpu_custom_call.1} parent=1 // pred_check_branch
      %6229 = sbr.rel (0) target = $region37
    $region36: #{tpu_custom_call.1} parent=1 // pred_region
      %s6231 = ssub.s32 128, 128
      %6232 = vsyncadd [#allocation4], %s6231
      %s6234 = sshll.u32 [#allocation5], 4
      %s6235 = int_to_ptr.vmem [resolvable:$true] %s6234
      %6237 = dma.vmem_to_hbm [thread:$0]  %s6235, 128, %s7, [#allocation4]
    $region37: #{tpu_custom_call.1} parent=1 // pred_fallthru
      _
    // Predicated region
    $region38: #{tpu_custom_call.1} parent=1 // pred_check
      _
    $region39: #{tpu_custom_call.1} parent=1 // pred_check_branch
      %6239 = sbr.rel (0) target = $region41
    $region40: #{tpu_custom_call.1} parent=1 // pred_region
      %6240 = dma.done [#allocation4], 128
    $region41: #{tpu_custom_call.1} parent=1 // pred_fallthru
      _
    %6241 = vsyncpa [#allocation3], 1
    %6242 = vsyncpa [#allocation4], 1

</llo_original>
